<compile_context>
chip_gen: v5e
topology: v5e:2x2
jax: 0.10.0
libtpu: 0.0.40
codegen_flags: <defaults>
</compile_context>

<pallas_src>
import math

import jax
import jax.numpy as jnp
from jax.experimental import pallas as pl
from jax.experimental.pallas import tpu as pltpu

BN_EPS = 1e-5

# Prefer the current name; fall back for older jax builds.
_CompilerParams = (getattr(pltpu, "CompilerParams", None)
                   or getattr(pltpu, "TPUCompilerParams", None))


def _make_unit_gcn_kernel(num_subset, rel_channels, out_channels, T, V, Nb):
    S, R, Cout = num_subset, rel_channels, out_channels
    TV = T * V

    def kernel(x_ref,      # (Cin, Nb*T*V)      bf16  lane-dense activations
               xbar_ref,   # (Nb, Cin, V)       f32   temporal mean of x
               AT_ref,     # (S, V, V)          f32   A[s].T  (AT[s][v,u] = A[s][u,v])
               w12_ref,    # (2*S*R, Cin)       f32   stacked conv1|conv2 weights
               b12_ref,    # (2*S*R, 1)         f32
               wbig_ref,   # ((S+1)*Cout, Cin)  bf16  [down ; conv3_0..S-1], BN folded
               bbig_ref,   # ((S+1)*Cout, 1)    f32   every per-channel shift folded
               w4_ref,     # (S, Cout, R)       f32   alpha folded
               b4_ref,     # (S, Cout, 1)       f32   alpha folded
               out_ref):   # (Cout, Nb*T*V)     f32   lane-dense output
        # ---- one big MXU matmul: down path + every conv3, whole batch block ----
        y_big = jnp.dot(wbig_ref[...], x_ref[...],
                        preferred_element_type=jnp.float32) + bbig_ref[...]
        # single relayout to aggregation-friendly (rows, Nb*T, V)
        y3 = y_big.reshape((S + 1) * Cout, Nb * T, V)
        acc = y3[:Cout]                                           # residual / "down"
        x3s = [y3[(s + 1) * Cout:(s + 2) * Cout] for s in range(S)]

        # ---- block-wide A-term: one well-shaped matmul per subset (M=Cout*Nb*T) ----
        for s in range(S):
            zA = jnp.dot(x3s[s].reshape(Cout * Nb * T, V), AT_ref[s],
                         preferred_element_type=jnp.float32)
            acc = acc + zA.reshape(Cout, Nb * T, V)

        # ---- per-element channel-wise topology refinement ----
        w12 = w12_ref[...]
        b12 = b12_ref[...]
        w4s = [w4_ref[s] for s in range(S)]
        b4s = [b4_ref[s] for s in range(S)]
        for n in range(Nb):
            # all conv1/conv2 of all subsets on the temporal mean: one tiny matmul
            y12 = jnp.dot(w12, xbar_ref[n],
                          preferred_element_type=jnp.float32) + b12       # (2SR, V)
            zm = None
            for s in range(S):
                x1 = y12[s * R:(s + 1) * R]                    # (R, V)  indexed by u
                x2 = y12[(S + s) * R:(S + s + 1) * R]          # (R, V)  indexed by v
                # build directly in contraction-friendly (r, v, u) order
                dT = jnp.tanh(x1[:, None, :] - x2[:, :, None])             # (R, V, V)
                mT = (jnp.dot(w4s[s], dT.reshape(R, V * V),
                              preferred_element_type=jnp.float32)
                      + b4s[s]).reshape(Cout, V, V)                        # (Cout, v, u)
                x3n = x3s[s][:, n * T:(n + 1) * T, :]                      # (Cout, T, V)
                z = jnp.einsum('otv,ovu->otu', x3n, mT,
                               preferred_element_type=jnp.float32)         # (Cout, T, V)
                zm = z if zm is None else zm + z
            res = jnp.maximum(acc[:, n * T:(n + 1) * T, :] + zm, 0.0)      # ReLU
            # one lane-dense store per element (offset is a multiple of 128)
            out_ref[:, n * TV:(n + 1) * TV] = res.reshape(Cout, TV)

    return kernel


def _pick_batch_block(N, batch_block):
    """Largest divisor of N <= batch_block that keeps >= 2 grid steps."""
    nb = max(1, min(batch_block, N))
    if N >= 2:
        nb = min(nb, max(1, N // 2))   # >= 2 steps: v7x dual-TC + pipeline overlap
    while N % nb:
        nb -= 1
    return nb


def _vmem_limit_bytes():
    """~80% of physical VMEM, capped at 100 MiB (v5e/v6e); ~51 MiB on v7x."""
    try:
        cap = getattr(pltpu.get_tpu_info(), "vmem_capacity_bytes", None)
        if cap:
            return min(100 * 1024 * 1024, (int(cap) * 4) // 5)
    except Exception:
        pass
    return 48 * 1024 * 1024            # conservative fallback, fits every generation


def unit_gcn_forward(x, params, *, batch_block=8):
    N, Cin, T, V = x.shape
    S = params['A'].shape[0]
    Cout = params['w3'].shape[1]
    R = params['w1'].shape[1]
    TV = T * V

    # ---- batch-invariant folding (eval-mode BN, alpha) ----------------------
    alpha = params['alpha'][0, 0]
    scale_y = params['bn_g'] * jax.lax.rsqrt(params['bn_v'] + BN_EPS)     # (Cout, 1)
    shift_y = params['bn_b'] - params['bn_m'] * scale_y
    dscale = params['dbn_g'] * jax.lax.rsqrt(params['dbn_v'] + BN_EPS)
    dshift = params['dbn_b'] - params['dbn_m'] * dscale

    w3f = params['w3'] * scale_y[None, :, :]          # final-BN scale into conv3
    b3f = params['b3'] * scale_y[None, :, :]
    w4a = params['w4'] * alpha                        # alpha into conv4
    b4a = params['b4'] * alpha
    wdf = params['wd'] * dscale                       # down-BN scale into down conv
    bdf = params['bd'] * dscale + dshift + shift_y    # every per-channel shift, once

    # stacked weights: one matmul for down + all conv3's, one for all conv1/conv2's
    wbig = jnp.concatenate([wdf[None], w3f], axis=0).reshape((S + 1) * Cout, Cin)
    bbig = jnp.concatenate([bdf[None], b3f], axis=0).reshape((S + 1) * Cout, 1)
    w12 = jnp.concatenate([params['w1'].reshape(S * R, Cin),
                           params['w2'].reshape(S * R, Cin)], axis=0)
    b12 = jnp.concatenate([params['b1'].reshape(S * R, 1),
                           params['b2'].reshape(S * R, 1)], axis=0)
    AT = jnp.transpose(params['A'], (0, 2, 1))        # pre-transposed adjacency

    # ---- lane-dense layout: batch folded into the lane dim, bf16 activations ----
    xf = jnp.transpose(x, (1, 0, 2, 3)).reshape(Cin, N * TV).astype(jnp.bfloat16)
    wbig = wbig.astype(jnp.bfloat16)
    xbar = jnp.mean(x, axis=2)                        # (N, Cin, V), f32 (tanh path)

    Nb = _pick_batch_block(N, batch_block)
    kernel = _make_unit_gcn_kernel(S, R, Cout, T, V, Nb)

    ordered = [AT, w12, b12, wbig, bbig, w4a, b4a]

    def full_spec(a):
        nd = a.ndim
        # NOTE: at production shapes these constant-index-map params would get
        # pipeline_mode=pl.Buffered(1); they are tiny at demo shapes.
        return pl.BlockSpec(a.shape, lambda n, _nd=nd: (0,) * _nd)

    in_specs = ([pl.BlockSpec((Cin, Nb * TV), lambda n: (0, n)),
                 pl.BlockSpec((Nb, Cin, V), lambda n: (n, 0, 0))]
                + [full_spec(a) for a in ordered])

    # NOTE: for real CTR-GCN shapes (Cout~256, T*V~1600) add a second grid axis
    # tiling T so double-buffered activation blocks stay inside the VMEM budget.
    out_flat = pl.pallas_call(
        kernel,
        out_shape=jax.ShapeDtypeStruct((Cout, N * TV), jnp.float32),
        grid=(N // Nb,),
        in_specs=in_specs,
        out_specs=pl.BlockSpec((Cout, Nb * TV), lambda n: (0, n)),
        compiler_params=_CompilerParams(
            dimension_semantics=("parallel",),        # batch axis: shard across TCs
            vmem_limit_bytes=_vmem_limit_bytes()),
    )(xf, xbar, *ordered)

    # (Cout, N*T*V) -> (N, Cout, T, V)
    return jnp.transpose(out_flat.reshape(Cout, N, T, V), (1, 0, 2, 3))


def init_params(key, Cin, Cout, S, V):
    """Deterministic parameter init mirroring unit_gcn.__init__ shapes."""
    if Cin in (3, 9):
        R = 8                      # rel_channels
    else:
        R = Cin // 8
    ks = iter(jax.random.split(key, 32))

    def kaiming(k, out_c, in_c):   # kaiming_normal_(mode='fan_out') for a 1x1 conv
        return jax.random.normal(k, (out_c, in_c), jnp.float32) * math.sqrt(2.0 / out_c)

    p = {}
    p['A'] = jax.random.uniform(next(ks), (S, V, V), jnp.float32)          # adaptive PA
    # module inits alpha=0 and bn.weight=1e-6; use nonzero values so the CTRGC path
    # contributes measurably (shapes identical).
    p['alpha'] = jnp.full((1, 1), 0.5, jnp.float32)
    p['w1'] = jnp.stack([kaiming(next(ks), R, Cin) for _ in range(S)])
    p['b1'] = jnp.zeros((S, R, 1), jnp.float32)
    p['w2'] = jnp.stack([kaiming(next(ks), R, Cin) for _ in range(S)])
    p['b2'] = jnp.zeros((S, R, 1), jnp.float32)
    p['w3'] = jnp.stack([kaiming(next(ks), Cout, Cin) for _ in range(S)])
    p['b3'] = jnp.zeros((S, Cout, 1), jnp.float32)
    p['w4'] = jnp.stack([kaiming(next(ks), Cout, R) for _ in range(S)])
    p['b4'] = jnp.zeros((S, Cout, 1), jnp.float32)
    p['bn_g'] = jnp.full((Cout, 1), 0.5, jnp.float32)
    p['bn_b'] = jnp.zeros((Cout, 1), jnp.float32)
    p['bn_m'] = jnp.zeros((Cout, 1), jnp.float32)
    p['bn_v'] = jnp.ones((Cout, 1), jnp.float32)
    p['wd'] = kaiming(next(ks), Cout, Cin)
    p['bd'] = jnp.zeros((Cout, 1), jnp.float32)
    p['dbn_g'] = jnp.ones((Cout, 1), jnp.float32)
    p['dbn_b'] = jnp.zeros((Cout, 1), jnp.float32)
    p['dbn_m'] = jnp.zeros((Cout, 1), jnp.float32)
    p['dbn_v'] = jnp.ones((Cout, 1), jnp.float32)
    return p


def unit_gcn_ref(x, p):
    """Pure-JAX reference mirroring the PyTorch forward (eval-mode BN, f32-highest)."""
    # TODO(synk): training-mode batch statistics of nn.BatchNorm2d are not replicated.
    PH = jax.lax.Precision.HIGHEST
    A = p['A']
    alpha = p['alpha'][0, 0]
    S = A.shape[0]
    y = 0.0
    for s in range(S):
        b1 = p['b1'][s, :, 0]; b2 = p['b2'][s, :, 0]
        b3 = p['b3'][s, :, 0]; b4 = p['b4'][s, :, 0]
        x1 = jnp.einsum('rc,nctv->nrtv', p['w1'][s], x, precision=PH) + b1[None, :, None, None]
        x2 = jnp.einsum('rc,nctv->nrtv', p['w2'][s], x, precision=PH) + b2[None, :, None, None]
        x3 = jnp.einsum('oc,nctv->notv', p['w3'][s], x, precision=PH) + b3[None, :, None, None]
        x1 = x1.mean(2)
        x2 = x2.mean(2)
        d = jnp.tanh(x1[..., :, None] - x2[..., None, :])
        m = jnp.einsum('or,nruv->nouv', p['w4'][s], d, precision=PH) + b4[None, :, None, None]
        m = m * alpha + A[s][None, None]
        y = y + jnp.einsum('ncuv,nctv->nctu', m, x3, precision=PH)
    scale = p['bn_g'][:, 0] / jnp.sqrt(p['bn_v'][:, 0] + BN_EPS)
    shift = p['bn_b'][:, 0] - p['bn_m'][:, 0] * scale
    y = y * scale[None, :, None, None] + shift[None, :, None, None]
    xd = jnp.einsum('oc,nctv->notv', p['wd'], x, precision=PH) + p['bd'][:, 0][None, :, None, None]
    dsc = p['dbn_g'][:, 0] / jnp.sqrt(p['dbn_v'][:, 0] + BN_EPS)
    dsh = p['dbn_b'][:, 0] - p['dbn_m'][:, 0] * dsc
    xd = xd * dsc[None, :, None, None] + dsh[None, :, None, None]
    return jax.nn.relu(y + xd)


if __name__ == "__main__":
    # Small shapes: N=2 batch, C_in=3 (skeleton xyz), C_out=16, T=8 frames, V=16 joints,
    # S=3 adjacency subsets.  T*V = 128 -> lane-dense kernel I/O; grid = (2,).
    N, Cin, Cout, T, V, S = 2, 3, 16, 8, 16, 3
    key = jax.random.PRNGKey(0)
    kx, kp = jax.random.split(key)
    x = jax.random.normal(kx, (N, Cin, T, V), jnp.float32)
    params = init_params(kp, Cin, Cout, S, V)

    fwd = jax.jit(lambda xx, pp: unit_gcn_forward(xx, pp))
    out = jax.block_until_ready(fwd(x, params))

    ref = unit_gcn_ref(x, params)
    assert out.shape == (N, Cout, T, V), out.shape
    assert bool(jnp.all(jnp.isfinite(out)))
    if not jnp.allclose(out, ref, rtol=2e-2, atol=2e-2):
        err = float(jnp.max(jnp.abs(out - ref)))
        raise AssertionError(f"Pallas kernel does not match JAX reference (max abs err {err})")
    print("KERNEL_OK")
</pallas_src>

<mosaic_0001>
module attributes {stable_mosaic.version = 11 : i64} {
  func.func @kernel(%arg0: i32, %arg1: memref<3x128xbf16, #tpu.memory_space<vmem>>, %arg2: memref<1x3x16xf32, #tpu.memory_space<vmem>>, %arg3: memref<3x16x16xf32, #tpu.memory_space<vmem>>, %arg4: memref<48x3xf32, #tpu.memory_space<vmem>>, %arg5: memref<48x1xf32, #tpu.memory_space<vmem>>, %arg6: memref<64x3xbf16, #tpu.memory_space<vmem>>, %arg7: memref<64x1xf32, #tpu.memory_space<vmem>>, %arg8: memref<3x16x8xf32, #tpu.memory_space<vmem>>, %arg9: memref<3x16x1xf32, #tpu.memory_space<vmem>>, %arg10: memref<16x128xf32, #tpu.memory_space<vmem>>) attributes {dimension_semantics = [#tpu.dimension_semantics<parallel>], iteration_bounds = array<i64: 2>, scalar_prefetch = 0 : i64, scratch_operands = 0 : i64, tpu.core_type = #tpu.core_type<tc>, window_params = [{transform_indices = @transform_0, window_bounds = array<i64: 3, 128>}, {transform_indices = @transform_1, window_bounds = array<i64: 1, 3, 16>}, {pipeline_mode = #tpu.pipeline_mode<synchronous>, transform_indices = @transform_2, window_bounds = array<i64: 3, 16, 16>}, {pipeline_mode = #tpu.pipeline_mode<synchronous>, transform_indices = @transform_3, window_bounds = array<i64: 48, 3>}, {pipeline_mode = #tpu.pipeline_mode<synchronous>, transform_indices = @transform_4, window_bounds = array<i64: 48, 1>}, {pipeline_mode = #tpu.pipeline_mode<synchronous>, transform_indices = @transform_5, window_bounds = array<i64: 64, 3>}, {pipeline_mode = #tpu.pipeline_mode<synchronous>, transform_indices = @transform_6, window_bounds = array<i64: 64, 1>}, {pipeline_mode = #tpu.pipeline_mode<synchronous>, transform_indices = @transform_7, window_bounds = array<i64: 3, 16, 8>}, {pipeline_mode = #tpu.pipeline_mode<synchronous>, transform_indices = @transform_8, window_bounds = array<i64: 3, 16, 1>}, {transform_indices = @transform_9, window_bounds = array<i64: 16, 128>}]} {
    %c0 = arith.constant 0 : index
    %c0_0 = arith.constant 0 : index
    %0 = vector.load %arg6[%c0, %c0_0] : memref<64x3xbf16, #tpu.memory_space<vmem>>, vector<64x3xbf16>
    %c0_1 = arith.constant 0 : index
    %c0_2 = arith.constant 0 : index
    %1 = vector.load %arg1[%c0_1, %c0_2] : memref<3x128xbf16, #tpu.memory_space<vmem>>, vector<3x128xbf16>
    %cst = arith.constant dense<0.000000e+00> : vector<64x128xf32>
    %2 = tpu.matmul %0, %1, %cst {dimension_numbers = #tpu.dot_dimension_numbers<[1], [0], [0], [1], [0, 0, 1, 1], [], []>} : vector<64x3xbf16>, vector<3x128xbf16>, vector<64x128xf32> -> vector<64x128xf32>
    %c0_3 = arith.constant 0 : index
    %c0_4 = arith.constant 0 : index
    %3 = vector.load %arg7[%c0_3, %c0_4] : memref<64x1xf32, #tpu.memory_space<vmem>>, vector<64x1xf32>
    %4 = vector.broadcast %3 : vector<64x1xf32> to vector<64x128xf32>
    %5 = arith.addf %2, %4 : vector<64x128xf32>
    %6 = vector.shape_cast %5 : vector<64x128xf32> to vector<64x8x16xf32>
    %7 = vector.extract_strided_slice %6 {offsets = [0, 0, 0], sizes = [16, 8, 16], strides = [1, 1, 1]} : vector<64x8x16xf32> to vector<16x8x16xf32>
    %8 = vector.extract_strided_slice %6 {offsets = [16, 0, 0], sizes = [16, 8, 16], strides = [1, 1, 1]} : vector<64x8x16xf32> to vector<16x8x16xf32>
    %9 = vector.extract_strided_slice %6 {offsets = [32, 0, 0], sizes = [16, 8, 16], strides = [1, 1, 1]} : vector<64x8x16xf32> to vector<16x8x16xf32>
    %10 = vector.extract_strided_slice %6 {offsets = [48, 0, 0], sizes = [16, 8, 16], strides = [1, 1, 1]} : vector<64x8x16xf32> to vector<16x8x16xf32>
    %11 = vector.shape_cast %8 : vector<16x8x16xf32> to vector<128x16xf32>
    %c0_5 = arith.constant 0 : index
    %c0_6 = arith.constant 0 : index
    %c0_7 = arith.constant 0 : index
    %12 = vector.load %arg3[%c0_5, %c0_6, %c0_7] : memref<3x16x16xf32, #tpu.memory_space<vmem>>, vector<1x16x16xf32>
    %13 = vector.shape_cast %12 : vector<1x16x16xf32> to vector<16x16xf32>
    %cst_8 = arith.constant dense<0.000000e+00> : vector<128x16xf32>
    %14 = tpu.matmul %11, %13, %cst_8 {dimension_numbers = #tpu.dot_dimension_numbers<[1], [0], [0], [1], [0, 0, 1, 1], [], []>} : vector<128x16xf32>, vector<16x16xf32>, vector<128x16xf32> -> vector<128x16xf32>
    %15 = vector.shape_cast %14 : vector<128x16xf32> to vector<16x8x16xf32>
    %16 = arith.addf %7, %15 : vector<16x8x16xf32>
    %17 = vector.shape_cast %9 : vector<16x8x16xf32> to vector<128x16xf32>
    %c1 = arith.constant 1 : index
    %c0_9 = arith.constant 0 : index
    %c0_10 = arith.constant 0 : index
    %18 = vector.load %arg3[%c1, %c0_9, %c0_10] : memref<3x16x16xf32, #tpu.memory_space<vmem>>, vector<1x16x16xf32>
    %19 = vector.shape_cast %18 : vector<1x16x16xf32> to vector<16x16xf32>
    %cst_11 = arith.constant dense<0.000000e+00> : vector<128x16xf32>
    %20 = tpu.matmul %17, %19, %cst_11 {dimension_numbers = #tpu.dot_dimension_numbers<[1], [0], [0], [1], [0, 0, 1, 1], [], []>} : vector<128x16xf32>, vector<16x16xf32>, vector<128x16xf32> -> vector<128x16xf32>
    %21 = vector.shape_cast %20 : vector<128x16xf32> to vector<16x8x16xf32>
    %22 = arith.addf %16, %21 : vector<16x8x16xf32>
    %23 = vector.shape_cast %10 : vector<16x8x16xf32> to vector<128x16xf32>
    %c2 = arith.constant 2 : index
    %c0_12 = arith.constant 0 : index
    %c0_13 = arith.constant 0 : index
    %24 = vector.load %arg3[%c2, %c0_12, %c0_13] : memref<3x16x16xf32, #tpu.memory_space<vmem>>, vector<1x16x16xf32>
    %25 = vector.shape_cast %24 : vector<1x16x16xf32> to vector<16x16xf32>
    %cst_14 = arith.constant dense<0.000000e+00> : vector<128x16xf32>
    %26 = tpu.matmul %23, %25, %cst_14 {dimension_numbers = #tpu.dot_dimension_numbers<[1], [0], [0], [1], [0, 0, 1, 1], [], []>} : vector<128x16xf32>, vector<16x16xf32>, vector<128x16xf32> -> vector<128x16xf32>
    %27 = vector.shape_cast %26 : vector<128x16xf32> to vector<16x8x16xf32>
    %28 = arith.addf %22, %27 : vector<16x8x16xf32>
    %c0_15 = arith.constant 0 : index
    %c0_16 = arith.constant 0 : index
    %29 = vector.load %arg4[%c0_15, %c0_16] : memref<48x3xf32, #tpu.memory_space<vmem>>, vector<48x3xf32>
    %c0_17 = arith.constant 0 : index
    %c0_18 = arith.constant 0 : index
    %30 = vector.load %arg5[%c0_17, %c0_18] : memref<48x1xf32, #tpu.memory_space<vmem>>, vector<48x1xf32>
    %c0_19 = arith.constant 0 : index
    %c0_20 = arith.constant 0 : index
    %c0_21 = arith.constant 0 : index
    %31 = vector.load %arg8[%c0_19, %c0_20, %c0_21] : memref<3x16x8xf32, #tpu.memory_space<vmem>>, vector<1x16x8xf32>
    %32 = vector.shape_cast %31 : vector<1x16x8xf32> to vector<16x8xf32>
    %c1_22 = arith.constant 1 : index
    %c0_23 = arith.constant 0 : index
    %c0_24 = arith.constant 0 : index
    %33 = vector.load %arg8[%c1_22, %c0_23, %c0_24] : memref<3x16x8xf32, #tpu.memory_space<vmem>>, vector<1x16x8xf32>
    %34 = vector.shape_cast %33 : vector<1x16x8xf32> to vector<16x8xf32>
    %c2_25 = arith.constant 2 : index
    %c0_26 = arith.constant 0 : index
    %c0_27 = arith.constant 0 : index
    %35 = vector.load %arg8[%c2_25, %c0_26, %c0_27] : memref<3x16x8xf32, #tpu.memory_space<vmem>>, vector<1x16x8xf32>
    %36 = vector.shape_cast %35 : vector<1x16x8xf32> to vector<16x8xf32>
    %c0_28 = arith.constant 0 : index
    %c0_29 = arith.constant 0 : index
    %c0_30 = arith.constant 0 : index
    %37 = vector.load %arg9[%c0_28, %c0_29, %c0_30] : memref<3x16x1xf32, #tpu.memory_space<vmem>>, vector<1x16x1xf32>
    %38 = vector.shape_cast %37 : vector<1x16x1xf32> to vector<16x1xf32>
    %c1_31 = arith.constant 1 : index
    %c0_32 = arith.constant 0 : index
    %c0_33 = arith.constant 0 : index
    %39 = vector.load %arg9[%c1_31, %c0_32, %c0_33] : memref<3x16x1xf32, #tpu.memory_space<vmem>>, vector<1x16x1xf32>
    %40 = vector.shape_cast %39 : vector<1x16x1xf32> to vector<16x1xf32>
    %c2_34 = arith.constant 2 : index
    %c0_35 = arith.constant 0 : index
    %c0_36 = arith.constant 0 : index
    %41 = vector.load %arg9[%c2_34, %c0_35, %c0_36] : memref<3x16x1xf32, #tpu.memory_space<vmem>>, vector<1x16x1xf32>
    %42 = vector.shape_cast %41 : vector<1x16x1xf32> to vector<16x1xf32>
    %c0_37 = arith.constant 0 : index
    %c0_38 = arith.constant 0 : index
    %c0_39 = arith.constant 0 : index
    %43 = vector.load %arg2[%c0_37, %c0_38, %c0_39] : memref<1x3x16xf32, #tpu.memory_space<vmem>>, vector<1x3x16xf32>
    %44 = vector.shape_cast %43 : vector<1x3x16xf32> to vector<3x16xf32>
    %cst_40 = arith.constant dense<0.000000e+00> : vector<48x16xf32>
    %45 = tpu.matmul %29, %44, %cst_40 {dimension_numbers = #tpu.dot_dimension_numbers<[1], [0], [0], [1], [0, 0, 1, 1], [], []>} : vector<48x3xf32>, vector<3x16xf32>, vector<48x16xf32> -> vector<48x16xf32>
    %46 = vector.broadcast %30 : vector<48x1xf32> to vector<48x16xf32>
    %47 = arith.addf %45, %46 : vector<48x16xf32>
    %48 = vector.extract_strided_slice %47 {offsets = [0, 0], sizes = [8, 16], strides = [1, 1]} : vector<48x16xf32> to vector<8x16xf32>
    %49 = vector.extract_strided_slice %47 {offsets = [24, 0], sizes = [8, 16], strides = [1, 1]} : vector<48x16xf32> to vector<8x16xf32>
    %50 = vector.shape_cast %48 : vector<8x16xf32> to vector<8x1x16xf32>
    %51 = vector.shape_cast %49 : vector<8x16xf32> to vector<8x16x1xf32>
    %52 = vector.broadcast %50 : vector<8x1x16xf32> to vector<8x16x16xf32>
    %53 = vector.broadcast %51 : vector<8x16x1xf32> to vector<8x16x16xf32>
    %54 = arith.subf %52, %53 : vector<8x16x16xf32>
    %55 = math.tanh %54 : vector<8x16x16xf32>
    %56 = vector.shape_cast %55 : vector<8x16x16xf32> to vector<8x256xf32>
    %cst_41 = arith.constant dense<0.000000e+00> : vector<16x256xf32>
    %57 = tpu.matmul %32, %56, %cst_41 {dimension_numbers = #tpu.dot_dimension_numbers<[1], [0], [0], [1], [0, 0, 1, 1], [], []>} : vector<16x8xf32>, vector<8x256xf32>, vector<16x256xf32> -> vector<16x256xf32>
    %58 = vector.broadcast %38 : vector<16x1xf32> to vector<16x256xf32>
    %59 = arith.addf %57, %58 : vector<16x256xf32>
    %60 = vector.shape_cast %59 : vector<16x256xf32> to vector<16x16x16xf32>
    "tpu.trace_start"() <{level = 10 : i32, message = "otv,ovu->otu"}> : () -> ()
    %cst_42 = arith.constant dense<0.000000e+00> : vector<16x8x16xf32>
    %61 = tpu.matmul %8, %60, %cst_42 {dimension_numbers = #tpu.dot_dimension_numbers<[2], [1], [1], [2], [0, 0, 0, 1, 1, 2], [0], [0]>} : vector<16x8x16xf32>, vector<16x16x16xf32>, vector<16x8x16xf32> -> vector<16x8x16xf32>
    "tpu.trace_stop"() : () -> ()
    %62 = vector.extract_strided_slice %47 {offsets = [8, 0], sizes = [8, 16], strides = [1, 1]} : vector<48x16xf32> to vector<8x16xf32>
    %63 = vector.extract_strided_slice %47 {offsets = [32, 0], sizes = [8, 16], strides = [1, 1]} : vector<48x16xf32> to vector<8x16xf32>
    %64 = vector.shape_cast %62 : vector<8x16xf32> to vector<8x1x16xf32>
    %65 = vector.shape_cast %63 : vector<8x16xf32> to vector<8x16x1xf32>
    %66 = vector.broadcast %64 : vector<8x1x16xf32> to vector<8x16x16xf32>
    %67 = vector.broadcast %65 : vector<8x16x1xf32> to vector<8x16x16xf32>
    %68 = arith.subf %66, %67 : vector<8x16x16xf32>
    %69 = math.tanh %68 : vector<8x16x16xf32>
    %70 = vector.shape_cast %69 : vector<8x16x16xf32> to vector<8x256xf32>
    %cst_43 = arith.constant dense<0.000000e+00> : vector<16x256xf32>
    %71 = tpu.matmul %34, %70, %cst_43 {dimension_numbers = #tpu.dot_dimension_numbers<[1], [0], [0], [1], [0, 0, 1, 1], [], []>} : vector<16x8xf32>, vector<8x256xf32>, vector<16x256xf32> -> vector<16x256xf32>
    %72 = vector.broadcast %40 : vector<16x1xf32> to vector<16x256xf32>
    %73 = arith.addf %71, %72 : vector<16x256xf32>
    %74 = vector.shape_cast %73 : vector<16x256xf32> to vector<16x16x16xf32>
    "tpu.trace_start"() <{level = 10 : i32, message = "otv,ovu->otu"}> : () -> ()
    %cst_44 = arith.constant dense<0.000000e+00> : vector<16x8x16xf32>
    %75 = tpu.matmul %9, %74, %cst_44 {dimension_numbers = #tpu.dot_dimension_numbers<[2], [1], [1], [2], [0, 0, 0, 1, 1, 2], [0], [0]>} : vector<16x8x16xf32>, vector<16x16x16xf32>, vector<16x8x16xf32> -> vector<16x8x16xf32>
    "tpu.trace_stop"() : () -> ()
    %76 = arith.addf %61, %75 : vector<16x8x16xf32>
    %77 = vector.extract_strided_slice %47 {offsets = [16, 0], sizes = [8, 16], strides = [1, 1]} : vector<48x16xf32> to vector<8x16xf32>
    %78 = vector.extract_strided_slice %47 {offsets = [40, 0], sizes = [8, 16], strides = [1, 1]} : vector<48x16xf32> to vector<8x16xf32>
    %79 = vector.shape_cast %77 : vector<8x16xf32> to vector<8x1x16xf32>
    %80 = vector.shape_cast %78 : vector<8x16xf32> to vector<8x16x1xf32>
    %81 = vector.broadcast %79 : vector<8x1x16xf32> to vector<8x16x16xf32>
    %82 = vector.broadcast %80 : vector<8x16x1xf32> to vector<8x16x16xf32>
    %83 = arith.subf %81, %82 : vector<8x16x16xf32>
    %84 = math.tanh %83 : vector<8x16x16xf32>
    %85 = vector.shape_cast %84 : vector<8x16x16xf32> to vector<8x256xf32>
    %cst_45 = arith.constant dense<0.000000e+00> : vector<16x256xf32>
    %86 = tpu.matmul %36, %85, %cst_45 {dimension_numbers = #tpu.dot_dimension_numbers<[1], [0], [0], [1], [0, 0, 1, 1], [], []>} : vector<16x8xf32>, vector<8x256xf32>, vector<16x256xf32> -> vector<16x256xf32>
    %87 = vector.broadcast %42 : vector<16x1xf32> to vector<16x256xf32>
    %88 = arith.addf %86, %87 : vector<16x256xf32>
    %89 = vector.shape_cast %88 : vector<16x256xf32> to vector<16x16x16xf32>
    "tpu.trace_start"() <{level = 10 : i32, message = "otv,ovu->otu"}> : () -> ()
    %cst_46 = arith.constant dense<0.000000e+00> : vector<16x8x16xf32>
    %90 = tpu.matmul %10, %89, %cst_46 {dimension_numbers = #tpu.dot_dimension_numbers<[2], [1], [1], [2], [0, 0, 0, 1, 1, 2], [0], [0]>} : vector<16x8x16xf32>, vector<16x16x16xf32>, vector<16x8x16xf32> -> vector<16x8x16xf32>
    "tpu.trace_stop"() : () -> ()
    %91 = arith.addf %76, %90 : vector<16x8x16xf32>
    %92 = arith.addf %28, %91 : vector<16x8x16xf32>
    %cst_47 = arith.constant 0.000000e+00 : f32
    %93 = vector.broadcast %cst_47 : f32 to vector<16x8x16xf32>
    %94 = arith.maximumf %92, %93 : vector<16x8x16xf32>
    %95 = vector.shape_cast %94 : vector<16x8x16xf32> to vector<16x128xf32>
    %c0_48 = arith.constant 0 : index
    %c0_49 = arith.constant 0 : index
    %96 = vector.load %arg10[%c0_48, %c0_49] : memref<16x128xf32, #tpu.memory_space<vmem>>, vector<16x128xf32>
    tpu.vector_store %arg10[%c0_48, %c0_49], %95 {strides = array<i32>} : memref<16x128xf32, #tpu.memory_space<vmem>>, vector<16x128xf32>,
    return
  }
  func.func @transform_0(%arg0: i32) -> (i32, i32) {
    %c0_i32 = arith.constant 0 : i32
    %c0_i32_0 = arith.constant 0 : i32
    return %c0_i32, %arg0 : i32, i32
  }
  func.func @transform_1(%arg0: i32) -> (i32, i32, i32) {
    %c0_i32 = arith.constant 0 : i32
    %c0_i32_0 = arith.constant 0 : i32
    %c0_i32_1 = arith.constant 0 : i32
    return %arg0, %c0_i32, %c0_i32_0 : i32, i32, i32
  }
  func.func @transform_2(%arg0: i32) -> (i32, i32, i32) {
    %c0_i32 = arith.constant 0 : i32
    %c0_i32_0 = arith.constant 0 : i32
    %c0_i32_1 = arith.constant 0 : i32
    %c0_i32_2 = arith.constant 0 : i32
    return %c0_i32, %c0_i32_0, %c0_i32_1 : i32, i32, i32
  }
  func.func @transform_3(%arg0: i32) -> (i32, i32) {
    %c0_i32 = arith.constant 0 : i32
    %c0_i32_0 = arith.constant 0 : i32
    %c0_i32_1 = arith.constant 0 : i32
    return %c0_i32, %c0_i32_0 : i32, i32
  }
  func.func @transform_4(%arg0: i32) -> (i32, i32) {
    %c0_i32 = arith.constant 0 : i32
    %c0_i32_0 = arith.constant 0 : i32
    %c0_i32_1 = arith.constant 0 : i32
    return %c0_i32, %c0_i32_0 : i32, i32
  }
  func.func @transform_5(%arg0: i32) -> (i32, i32) {
    %c0_i32 = arith.constant 0 : i32
    %c0_i32_0 = arith.constant 0 : i32
    %c0_i32_1 = arith.constant 0 : i32
    return %c0_i32, %c0_i32_0 : i32, i32
  }
  func.func @transform_6(%arg0: i32) -> (i32, i32) {
    %c0_i32 = arith.constant 0 : i32
    %c0_i32_0 = arith.constant 0 : i32
    %c0_i32_1 = arith.constant 0 : i32
    return %c0_i32, %c0_i32_0 : i32, i32
  }
  func.func @transform_7(%arg0: i32) -> (i32, i32, i32) {
    %c0_i32 = arith.constant 0 : i32
    %c0_i32_0 = arith.constant 0 : i32
    %c0_i32_1 = arith.constant 0 : i32
    %c0_i32_2 = arith.constant 0 : i32
    return %c0_i32, %c0_i32_0, %c0_i32_1 : i32, i32, i32
  }
  func.func @transform_8(%arg0: i32) -> (i32, i32, i32) {
    %c0_i32 = arith.constant 0 : i32
    %c0_i32_0 = arith.constant 0 : i32
    %c0_i32_1 = arith.constant 0 : i32
    %c0_i32_2 = arith.constant 0 : i32
    return %c0_i32, %c0_i32_0, %c0_i32_1 : i32, i32, i32
  }
  func.func @transform_9(%arg0: i32) -> (i32, i32) {
    %c0_i32 = arith.constant 0 : i32
    %c0_i32_0 = arith.constant 0 : i32
    return %c0_i32, %arg0 : i32, i32
  }
}

</mosaic_0001>

<llo_original>
// kernel: _lambda_.1
$region0: #{_lambda_.1}
  #allocation0 [shape = 'u32[]', space=smem, size = 0x4, offset = 0x4, fixed_abs, tag = 'smem constant byte address 0x4 - core index']
  #allocation1 [shape = 'u32[72,128]{1,0:T(1,128)}', space=vmem, size = 0x9000, scoped, tag = 'internal scratch']
  %s0 = inlined_call_operand.vmem [shape: bf16[3,256], index: 0, kind: input, shape index: {}]
  %s1 = inlined_call_operand.vmem [shape: f32[2,3,16], index: 1, kind: input, shape index: {}]
  %s2 = inlined_call_operand.vmem [shape: f32[3,16,16], index: 2, kind: input, shape index: {}]
  %s3 = inlined_call_operand.vmem [shape: f32[48,3], index: 3, kind: input, shape index: {}]
  %s4 = inlined_call_operand.vmem [shape: f32[48,1], index: 4, kind: input, shape index: {}]
  %s5 = inlined_call_operand.vmem [shape: bf16[64,3], index: 5, kind: input, shape index: {}]
  %s6 = inlined_call_operand.vmem [shape: f32[64,1], index: 6, kind: input, shape index: {}]
  %s7 = inlined_call_operand.vmem [shape: f32[3,16,8], index: 7, kind: input, shape index: {}]
  %s8 = inlined_call_operand.vmem [shape: f32[3,16,1], index: 8, kind: input, shape index: {}]
  %s9 = inlined_call_operand.vmem [shape: f32[16,256], index: 9, kind: output, shape index: {}]
  %s10 = sld [smem:[#allocation0]]
  $region103: #{_lambda_.1} parent=0
    _
  %s12 = ssub.s32 1, %s10
  %s13 = scalar_select 0, %s12, %s10
  $region1: #{_lambda_.1} parent=0
    #allocation2 [shape = 'u8[16384]{0}', space=vmem, size = 0x4000, scoped, tag = 'output window, operand 0']
    loop: start=0, step=1, limit=4
    $region2: #{_lambda_.1} parent=1 // loop_pre_header
      _
    $region3: #{_lambda_.1} parent=1 // loop_header
      %s15 = sphi 0, %s19
      %p16 = scmp.ge.s32.totalorder %s15, 4
      %s25 = sphi 0, %s27
      %s28 = sphi 0, %s25
      %s29 = sphi 0, %s28
      %s45 = sphi 0, %s29
      %s51 = sphi 0, %s53
      %s54 = sphi 0, %s51
      %s55 = sphi 0, %s54
      %s71 = sphi 0, %s55
      %s75 = sphi 0, %s75
      %s77 = sphi 0, %s75
      %s78 = sphi 0, %s77
      %s92 = sphi 0, %s78
      %s96 = sphi 0, %s96
      %s98 = sphi 0, %s96
      %s99 = sphi 0, %s98
      %s113 = sphi 0, %s99
      %s117 = sphi 0, %s117
      %s119 = sphi 0, %s117
      %s120 = sphi 0, %s119
      %s134 = sphi 0, %s120
      %s138 = sphi 0, %s138
      %s140 = sphi 0, %s138
      %s141 = sphi 0, %s140
      %s155 = sphi 0, %s141
      %s159 = sphi 0, %s159
      %s161 = sphi 0, %s159
      %s162 = sphi 0, %s161
      %s176 = sphi 0, %s162
      %s180 = sphi 0, %s180
      %s182 = sphi 0, %s180
      %s183 = sphi 0, %s182
      %s197 = sphi 0, %s183
      %s201 = sphi 0, %s201
      %s203 = sphi 0, %s201
      %s204 = sphi 0, %s203
      %s218 = sphi 0, %s204
      %s224 = sphi 0, %s226
      %s227 = sphi 0, %s224
      %s228 = sphi 0, %s227
      %s244 = sphi 0, %s228
    $region4: #{_lambda_.1} parent=1 // loop_header_branch
      %18 = sbr.rel (%p16) target = $region8
    $region5: #{_lambda_.1} parent=1 // loop_body
      %s20 = ssub.s32 %s15, 1
      %s21 = ssub.s32 %s15, 2
      %s22 = sadd.s32 %s15, 1
      %s23 = ssub.s32 %s15, %s22
      %p24 = scmp.eq.s32.totalorder %s23, 0
      %s26 = sadd.s32 %s25, 1
      %s27 = scalar_select %p24, %s25, %s26
      %p30 = pneg %p24
      %p31 = scmp.eq.s32.totalorder %s15, 1
      %p32 = por %p30, %p31
      %p33 = scmp.ne.s32.totalorder %s25, %s28
      %p34 = scmp.eq.s32.totalorder %s15, 0
      %p35 = por %p33, %p34
      %p36 = scmp.ne.s32.totalorder %s25, %s28
      %p37 = scmp.eq.s32.totalorder %s20, 1
      %p38 = por %p36, %p37
      %p39 = scmp.ne.s32.totalorder %s28, %s29
      %p40 = scmp.eq.s32.totalorder %s20, 0
      %p41 = por %p39, %p40
      %p42 = scmp.ne.s32.totalorder %s28, %s29
      %p43 = scmp.eq.s32.totalorder %s21, 1
      %p44 = por %p42, %p43
      %p46 = scmp.ne.s32.totalorder %s29, %s45
      %p47 = scmp.eq.s32.totalorder %s21, 0
      %p48 = por %p46, %p47
      %s49 = ssub.s32 %s15, %s22
      %p50 = scmp.eq.s32.totalorder %s49, 0
      %s52 = sadd.s32 %s51, 1
      %s53 = scalar_select %p50, %s51, %s52
      %p56 = pneg %p50
      %p57 = scmp.eq.s32.totalorder %s15, 1
      %p58 = por %p56, %p57
      %p59 = scmp.ne.s32.totalorder %s51, %s54
      %p60 = scmp.eq.s32.totalorder %s15, 0
      %p61 = por %p59, %p60
      %p62 = scmp.ne.s32.totalorder %s51, %s54
      %p63 = scmp.eq.s32.totalorder %s20, 1
      %p64 = por %p62, %p63
      %p65 = scmp.ne.s32.totalorder %s54, %s55
      %p66 = scmp.eq.s32.totalorder %s20, 0
      %p67 = por %p65, %p66
      %p68 = scmp.ne.s32.totalorder %s54, %s55
      %p69 = scmp.eq.s32.totalorder %s21, 1
      %p70 = por %p68, %p69
      %p72 = scmp.ne.s32.totalorder %s55, %s71
      %p73 = scmp.eq.s32.totalorder %s21, 0
      %p74 = por %p72, %p73
      %s76 = sadd.s32 %s75, 1
      %p79 = scmp.eq.s32.totalorder %s15, 1
      %p80 = scmp.ne.s32.totalorder %s75, %s77
      %p81 = scmp.eq.s32.totalorder %s15, 0
      %p82 = por %p80, %p81
      %p83 = scmp.ne.s32.totalorder %s75, %s77
      %p84 = scmp.eq.s32.totalorder %s20, 1
      %p85 = por %p83, %p84
      %p86 = scmp.ne.s32.totalorder %s77, %s78
      %p87 = scmp.eq.s32.totalorder %s20, 0
      %p88 = por %p86, %p87
      %p89 = scmp.ne.s32.totalorder %s77, %s78
      %p90 = scmp.eq.s32.totalorder %s21, 1
      %p91 = por %p89, %p90
      %p93 = scmp.ne.s32.totalorder %s78, %s92
      %p94 = scmp.eq.s32.totalorder %s21, 0
      %p95 = por %p93, %p94
      %s97 = sadd.s32 %s96, 1
      %p100 = scmp.eq.s32.totalorder %s15, 1
      %p101 = scmp.ne.s32.totalorder %s96, %s98
      %p102 = scmp.eq.s32.totalorder %s15, 0
      %p103 = por %p101, %p102
      %p104 = scmp.ne.s32.totalorder %s96, %s98
      %p105 = scmp.eq.s32.totalorder %s20, 1
      %p106 = por %p104, %p105
      %p107 = scmp.ne.s32.totalorder %s98, %s99
      %p108 = scmp.eq.s32.totalorder %s20, 0
      %p109 = por %p107, %p108
      %p110 = scmp.ne.s32.totalorder %s98, %s99
      %p111 = scmp.eq.s32.totalorder %s21, 1
      %p112 = por %p110, %p111
      %p114 = scmp.ne.s32.totalorder %s99, %s113
      %p115 = scmp.eq.s32.totalorder %s21, 0
      %p116 = por %p114, %p115
      %s118 = sadd.s32 %s117, 1
      %p121 = scmp.eq.s32.totalorder %s15, 1
      %p122 = scmp.ne.s32.totalorder %s117, %s119
      %p123 = scmp.eq.s32.totalorder %s15, 0
      %p124 = por %p122, %p123
      %p125 = scmp.ne.s32.totalorder %s117, %s119
      %p126 = scmp.eq.s32.totalorder %s20, 1
      %p127 = por %p125, %p126
      %p128 = scmp.ne.s32.totalorder %s119, %s120
      %p129 = scmp.eq.s32.totalorder %s20, 0
      %p130 = por %p128, %p129
      %p131 = scmp.ne.s32.totalorder %s119, %s120
      %p132 = scmp.eq.s32.totalorder %s21, 1
      %p133 = por %p131, %p132
      %p135 = scmp.ne.s32.totalorder %s120, %s134
      %p136 = scmp.eq.s32.totalorder %s21, 0
      %p137 = por %p135, %p136
      %s139 = sadd.s32 %s138, 1
      %p142 = scmp.eq.s32.totalorder %s15, 1
      %p143 = scmp.ne.s32.totalorder %s138, %s140
      %p144 = scmp.eq.s32.totalorder %s15, 0
      %p145 = por %p143, %p144
      %p146 = scmp.ne.s32.totalorder %s138, %s140
      %p147 = scmp.eq.s32.totalorder %s20, 1
      %p148 = por %p146, %p147
      %p149 = scmp.ne.s32.totalorder %s140, %s141
      %p150 = scmp.eq.s32.totalorder %s20, 0
      %p151 = por %p149, %p150
      %p152 = scmp.ne.s32.totalorder %s140, %s141
      %p153 = scmp.eq.s32.totalorder %s21, 1
      %p154 = por %p152, %p153
      %p156 = scmp.ne.s32.totalorder %s141, %s155
      %p157 = scmp.eq.s32.totalorder %s21, 0
      %p158 = por %p156, %p157
      %s160 = sadd.s32 %s159, 1
      %p163 = scmp.eq.s32.totalorder %s15, 1
      %p164 = scmp.ne.s32.totalorder %s159, %s161
      %p165 = scmp.eq.s32.totalorder %s15, 0
      %p166 = por %p164, %p165
      %p167 = scmp.ne.s32.totalorder %s159, %s161
      %p168 = scmp.eq.s32.totalorder %s20, 1
      %p169 = por %p167, %p168
      %p170 = scmp.ne.s32.totalorder %s161, %s162
      %p171 = scmp.eq.s32.totalorder %s20, 0
      %p172 = por %p170, %p171
      %p173 = scmp.ne.s32.totalorder %s161, %s162
      %p174 = scmp.eq.s32.totalorder %s21, 1
      %p175 = por %p173, %p174
      %p177 = scmp.ne.s32.totalorder %s162, %s176
      %p178 = scmp.eq.s32.totalorder %s21, 0
      %p179 = por %p177, %p178
      %s181 = sadd.s32 %s180, 1
      %p184 = scmp.eq.s32.totalorder %s15, 1
      %p185 = scmp.ne.s32.totalorder %s180, %s182
      %p186 = scmp.eq.s32.totalorder %s15, 0
      %p187 = por %p185, %p186
      %p188 = scmp.ne.s32.totalorder %s180, %s182
      %p189 = scmp.eq.s32.totalorder %s20, 1
      %p190 = por %p188, %p189
      %p191 = scmp.ne.s32.totalorder %s182, %s183
      %p192 = scmp.eq.s32.totalorder %s20, 0
      %p193 = por %p191, %p192
      %p194 = scmp.ne.s32.totalorder %s182, %s183
      %p195 = scmp.eq.s32.totalorder %s21, 1
      %p196 = por %p194, %p195
      %p198 = scmp.ne.s32.totalorder %s183, %s197
      %p199 = scmp.eq.s32.totalorder %s21, 0
      %p200 = por %p198, %p199
      %s202 = sadd.s32 %s201, 1
      %p205 = scmp.eq.s32.totalorder %s15, 1
      %p206 = scmp.ne.s32.totalorder %s201, %s203
      %p207 = scmp.eq.s32.totalorder %s15, 0
      %p208 = por %p206, %p207
      %p209 = scmp.ne.s32.totalorder %s201, %s203
      %p210 = scmp.eq.s32.totalorder %s20, 1
      %p211 = por %p209, %p210
      %p212 = scmp.ne.s32.totalorder %s203, %s204
      %p213 = scmp.eq.s32.totalorder %s20, 0
      %p214 = por %p212, %p213
      %p215 = scmp.ne.s32.totalorder %s203, %s204
      %p216 = scmp.eq.s32.totalorder %s21, 1
      %p217 = por %p215, %p216
      %p219 = scmp.ne.s32.totalorder %s204, %s218
      %p220 = scmp.eq.s32.totalorder %s21, 0
      %p221 = por %p219, %p220
      %s222 = ssub.s32 %s15, %s22
      %p223 = scmp.eq.s32.totalorder %s222, 0
      %s225 = sadd.s32 %s224, 1
      %s226 = scalar_select %p223, %s224, %s225
      %p229 = pneg %p223
      %p230 = scmp.eq.s32.totalorder %s15, 1
      %p231 = por %p229, %p230
      %p232 = scmp.ne.s32.totalorder %s224, %s227
      %p233 = scmp.eq.s32.totalorder %s15, 0
      %p234 = por %p232, %p233
      %p235 = scmp.ne.s32.totalorder %s224, %s227
      %p236 = scmp.eq.s32.totalorder %s20, 1
      %p237 = por %p235, %p236
      %p238 = scmp.ne.s32.totalorder %s227, %s228
      %p239 = scmp.eq.s32.totalorder %s20, 0
      %p240 = por %p238, %p239
      %p241 = scmp.ne.s32.totalorder %s227, %s228
      %p242 = scmp.eq.s32.totalorder %s21, 1
      %p243 = por %p241, %p242
      %p245 = scmp.ne.s32.totalorder %s228, %s244
      %p246 = scmp.eq.s32.totalorder %s21, 0
      %p247 = por %p245, %p246
      %p248 = scmp.le.s32.totalorder 1, %s15
      %p249 = scmp.lt.s32.totalorder %s15, 3
      %p250 = pnand %p248, %p249
      %p251 = pneg %p250
      // Predicated region
      $region9: #{_lambda_.1} parent=5 // pred_check
        _
      $region10: #{_lambda_.1} parent=5 // pred_check_branch
        %253 = sbr.rel (%p250) target = $region12
      $region11: #{_lambda_.1} parent=5 // pred_region
        %s254 = ssub.s32 %s15, 1
        // Predicated region
        $region13: #{_lambda_.1} parent=11 // pred_check
          %p255 = pneg %p88
        $region14: #{_lambda_.1} parent=11 // pred_check_branch
          %257 = sbr.rel (%p255) target = $region16
        $region15: #{_lambda_.1} parent=11 // pred_region
          _
        $region16: #{_lambda_.1} parent=11 // pred_fallthru
          _
        // Predicated region
        $region17: #{_lambda_.1} parent=11 // pred_check
          %p258 = pneg %p109
        $region18: #{_lambda_.1} parent=11 // pred_check_branch
          %260 = sbr.rel (%p258) target = $region20
        $region19: #{_lambda_.1} parent=11 // pred_region
          _
        $region20: #{_lambda_.1} parent=11 // pred_fallthru
          _
        // Predicated region
        $region21: #{_lambda_.1} parent=11 // pred_check
          %p261 = pneg %p130
        $region22: #{_lambda_.1} parent=11 // pred_check_branch
          %263 = sbr.rel (%p261) target = $region24
        $region23: #{_lambda_.1} parent=11 // pred_region
          _
        $region24: #{_lambda_.1} parent=11 // pred_fallthru
          _
        // Predicated region
        $region25: #{_lambda_.1} parent=11 // pred_check
          %p264 = pneg %p151
        $region26: #{_lambda_.1} parent=11 // pred_check_branch
          %266 = sbr.rel (%p264) target = $region28
        $region27: #{_lambda_.1} parent=11 // pred_region
          _
        $region28: #{_lambda_.1} parent=11 // pred_fallthru
          _
        // Predicated region
        $region29: #{_lambda_.1} parent=11 // pred_check
          %p267 = pneg %p172
        $region30: #{_lambda_.1} parent=11 // pred_check_branch
          %269 = sbr.rel (%p267) target = $region32
        $region31: #{_lambda_.1} parent=11 // pred_region
          _
        $region32: #{_lambda_.1} parent=11 // pred_fallthru
          _
        // Predicated region
        $region33: #{_lambda_.1} parent=11 // pred_check
          %p270 = pneg %p193
        $region34: #{_lambda_.1} parent=11 // pred_check_branch
          %272 = sbr.rel (%p270) target = $region36
        $region35: #{_lambda_.1} parent=11 // pred_region
          _
        $region36: #{_lambda_.1} parent=11 // pred_fallthru
          _
        // Predicated region
        $region37: #{_lambda_.1} parent=11 // pred_check
          %p273 = pneg %p214
        $region38: #{_lambda_.1} parent=11 // pred_check_branch
          %275 = sbr.rel (%p273) target = $region40
        $region39: #{_lambda_.1} parent=11 // pred_region
          _
        $region40: #{_lambda_.1} parent=11 // pred_fallthru
          _
      $region12: #{_lambda_.1} parent=5 // pred_fallthru
        _
      %p276 = scmp.lt.s32.totalorder %s15, 2
      // Predicated region
      $region41: #{_lambda_.1} parent=5 // pred_check
        %p277 = pneg %p276
      $region42: #{_lambda_.1} parent=5 // pred_check_branch
        %279 = sbr.rel (%p277) target = $region44
      $region43: #{_lambda_.1} parent=5 // pred_region
        // Predicated region
        $region45: #{_lambda_.1} parent=43 // pred_check
          %p280 = pneg %p35
        $region46: #{_lambda_.1} parent=43 // pred_check_branch
          %282 = sbr.rel (%p280) target = $region48
        $region47: #{_lambda_.1} parent=43 // pred_region
          %p283 = scmp.lt.s32.totalorder %s15, 1
          %s284 = scalar_select %p283, %s15, 1
          %s285 = smul.addr %s284, 2
          %s286 = scalar_lea.vmem %s0, %s285
        $region48: #{_lambda_.1} parent=43 // pred_fallthru
          _
        // Predicated region
        $region49: #{_lambda_.1} parent=43 // pred_check
          %p287 = pneg %p61
        $region50: #{_lambda_.1} parent=43 // pred_check_branch
          %289 = sbr.rel (%p287) target = $region52
        $region51: #{_lambda_.1} parent=43 // pred_region
          %p290 = scmp.lt.s32.totalorder %s15, 1
          %s291 = scalar_select %p290, %s15, 1
          %s292 = smul.addr %s291, 4
          %s293 = scalar_lea.vmem %s1, %s292
        $region52: #{_lambda_.1} parent=43 // pred_fallthru
          _
      $region44: #{_lambda_.1} parent=5 // pred_fallthru
        _
      %p294 = scmp.le.s32.totalorder 1, %s15
      %p295 = scmp.lt.s32.totalorder %s15, 3
      %p296 = pnand %p294, %p295
      %p297 = pneg %p296
      // Predicated region
      $region53: #{_lambda_.1} parent=5 // pred_check
        _
      $region54: #{_lambda_.1} parent=5 // pred_check_branch
        %299 = sbr.rel (%p296) target = $region56
      $region55: #{_lambda_.1} parent=5 // pred_region
        %s300 = ssub.s32 %s15, 1
        %p301 = scmp.lt.s32.totalorder %s20, 1
        %s302 = scalar_select %p301, %s20, 1
        %s303 = smul.addr %s302, 2
        %s304 = scalar_lea.vmem %s0, %s303
        %p305 = pneg %p41
        %p306 = pneg %p38
        %p307 = scmp.lt.s32.totalorder %s20, 1
        %s308 = scalar_select %p307, %s20, 1
        %s309 = smul.addr %s308, 4
        %s310 = scalar_lea.vmem %s1, %s309
        %p311 = pneg %p67
        %p312 = pneg %p64
        %p313 = pneg %p88
        %p314 = pneg %p85
        %p315 = pneg %p109
        %p316 = pneg %p106
        %p317 = pneg %p130
        %p318 = pneg %p127
        %p319 = pneg %p151
        %p320 = pneg %p148
        %p321 = pneg %p172
        %p322 = pneg %p169
        %p323 = pneg %p193
        %p324 = pneg %p190
        %p325 = pneg %p214
        %p326 = pneg %p211
        %p327 = pneg %p240
        %p328 = pneg %p237
        %s329 = sand.u32 %s227, 1
        %s330 = sand.u32 %s227, 1
        %s331 = smul.addr %s330, 16
        %s332 = scalar_lea.vmem [#allocation2], %s331
        %p333 = scmp.lt.s32.totalorder %s20, 1
        %s334 = scalar_select %p333, %s20, 1
        %s335 = smul.addr %s334, 2
        %s336 = scalar_lea.vmem %s0, %s335
        %p337 = scmp.lt.s32.totalorder %s20, 1
        %s338 = scalar_select %p337, %s20, 1
        %s339 = smul.addr %s338, 4
        %s340 = scalar_lea.vmem %s1, %s339
        %v342 = vld [vmem:[%s5] sm:$0xf]
        %v343 = vld [vmem:[%s5 + $0x4] sm:$0xf]
        %v344 = vld [vmem:[%s5 + $0x8] sm:$0xf]
        %v345 = vld [vmem:[%s5 + $0xc] sm:$0xf]
        %v346 = vld [vmem:[%s5 + $0x10] sm:$0xf]
        %v347 = vld [vmem:[%s5 + $0x14] sm:$0xf]
        %v348 = vld [vmem:[%s5 + $0x18] sm:$0xf]
        %v349 = vld [vmem:[%s5 + $0x1c] sm:$0xf]
        %v350 = vld [vmem:[%s336] sm:$0x3]
        %v351 = vld [vmem:[%s6] sm:$0xff]
        %v352 = vld [vmem:[%s6 + $0x8] sm:$0xff]
        %v353 = vld [vmem:[%s6 + $0x10] sm:$0xff]
        %v354 = vld [vmem:[%s6 + $0x18] sm:$0xff]
        %v355 = vld [vmem:[%s6 + $0x20] sm:$0xff]
        %v356 = vld [vmem:[%s6 + $0x28] sm:$0xff]
        %v357 = vld [vmem:[%s6 + $0x30] sm:$0xff]
        %v358 = vld [vmem:[%s6 + $0x38] sm:$0xff]
        %360 = vset.pattern.permute.xlu0 0
        %361 = vperm.xlu0 %360, %v351
        %v362 = vpop.permute.xlu0 %361
        %365 = vset.pattern.permute.xlu0 0
        %366 = vperm.xlu0 %365, %v352
        %v367 = vpop.permute.xlu0 %366
        %370 = vset.pattern.permute.xlu0 0
        %371 = vperm.xlu0 %370, %v353
        %v372 = vpop.permute.xlu0 %371
        %375 = vset.pattern.permute.xlu0 0
        %376 = vperm.xlu0 %375, %v354
        %v377 = vpop.permute.xlu0 %376
        %380 = vset.pattern.permute.xlu0 0
        %381 = vperm.xlu0 %380, %v355
        %v382 = vpop.permute.xlu0 %381
        %385 = vset.pattern.permute.xlu0 0
        %386 = vperm.xlu0 %385, %v356
        %v387 = vpop.permute.xlu0 %386
        %390 = vset.pattern.permute.xlu0 0
        %391 = vperm.xlu0 %390, %v357
        %v392 = vpop.permute.xlu0 %391
        %395 = vset.pattern.permute.xlu0 0
        %396 = vperm.xlu0 %395, %v358
        %v397 = vpop.permute.xlu0 %396
        %v407 = vunpack.c.l.b16 %v342
        %v408 = vunpack.c.l.b16 %v343
        %v409 = vunpack.c.l.b16 %v344
        %v410 = vunpack.c.l.b16 %v345
        %v411 = vunpack.c.l.b16 %v346
        %v412 = vunpack.c.l.b16 %v347
        %v413 = vunpack.c.l.b16 %v348
        %v414 = vunpack.c.l.b16 %v349
        %v415 = vpack.c.b16 %v408, %v407
        %v416 = vpack.c.b16 %v410, %v409
        %v417 = vpack.c.b16 %v412, %v411
        %v418 = vpack.c.b16 %v414, %v413
        %vm419 = vcmask 23552
        %v421 = vsel %vm419, %v415, 0
        %v424 = vsel %vm419, %v416, 0
        %v427 = vsel %vm419, %v417, 0
        %v430 = vsel %vm419, %v418, 0
        %vm432 = vcmask 1040384
        %vm433 = vcmask 1041408
        %v434 = vsel %vm432, 4294967295, 65535
        %v435 = vsel %vm433, %v434, 0
        %v437 = vand.u32 %v350, %v435
        %439 = vmatpush.bf16.msra.mxu0 0
        %440 = vmatpush.bf16.msra.mxu0 0
        %441 = vmatpush.bf16.msra.mxu0 0
        %442 = vmatpush.bf16.msra.mxu0 0
        %443 = vmatpush.bf16.msra.mxu0 0
        %444 = vmatpush.bf16.msra.mxu0 0
        %445 = vmatpush.bf16.msra.mxu0 0
        %446 = vmatpush.bf16.msra.mxu0 %v437
        %447 = vmatmul.bf16.gmra.mxu0 %v421
        %v448 = vpop.f32.mrf.mxu0
        %v449 = vadd.f32 %v362, %v448
        %v450 = vpop.f32.mrf.mxu0
        %v451 = vadd.f32 %v367, %v450
        %452 = vmatmul.bf16.gmra.mxu0 %v424
        %v453 = vpop.f32.mrf.mxu0
        %v454 = vadd.f32 %v372, %v453
        %v455 = vpop.f32.mrf.mxu0
        %v456 = vadd.f32 %v377, %v455
        %457 = vmatmul.bf16.gmra.mxu0 %v427
        %v458 = vpop.f32.mrf.mxu0
        %v459 = vadd.f32 %v382, %v458
        %v460 = vpop.f32.mrf.mxu0
        %v461 = vadd.f32 %v387, %v460
        %462 = vmatmul.bf16.gmra.mxu0 %v430
        %v463 = vpop.f32.mrf.mxu0
        %v464 = vadd.f32 %v392, %v463
        %v465 = vpop.f32.mrf.mxu0
        %v466 = vadd.f32 %v397, %v465
        %467 = vdwg.mxu0
        %476 = vrot.lane.b32.xlu0 %v449, 112
        %v477 = vpop.permute.xlu0 %476
        %478 = vrot.lane.b32.xlu0 %v451, 112
        %v479 = vpop.permute.xlu0 %478
        %480 = vrot.lane.b32.xlu0 %v454, 112
        %v481 = vpop.permute.xlu0 %480
        %482 = vrot.lane.b32.xlu0 %v456, 112
        %v483 = vpop.permute.xlu0 %482
        %484 = vrot.lane.b32.xlu0 %v459, 112
        %v485 = vpop.permute.xlu0 %484
        %486 = vrot.lane.b32.xlu0 %v461, 112
        %v487 = vpop.permute.xlu0 %486
        %488 = vrot.lane.b32.xlu0 %v464, 112
        %v489 = vpop.permute.xlu0 %488
        %490 = vrot.lane.b32.xlu0 %v466, 112
        %v491 = vpop.permute.xlu0 %490
        %500 = vrot.lane.b32.xlu0 %v449, 96
        %v501 = vpop.permute.xlu0 %500
        %502 = vrot.lane.b32.xlu0 %v451, 96
        %v503 = vpop.permute.xlu0 %502
        %504 = vrot.lane.b32.xlu0 %v454, 96
        %v505 = vpop.permute.xlu0 %504
        %506 = vrot.lane.b32.xlu0 %v456, 96
        %v507 = vpop.permute.xlu0 %506
        %508 = vrot.lane.b32.xlu0 %v459, 96
        %v509 = vpop.permute.xlu0 %508
        %510 = vrot.lane.b32.xlu0 %v461, 96
        %v511 = vpop.permute.xlu0 %510
        %512 = vrot.lane.b32.xlu0 %v464, 96
        %v513 = vpop.permute.xlu0 %512
        %514 = vrot.lane.b32.xlu0 %v466, 96
        %v515 = vpop.permute.xlu0 %514
        %524 = vrot.lane.b32.xlu0 %v449, 80
        %v525 = vpop.permute.xlu0 %524
        %526 = vrot.lane.b32.xlu0 %v451, 80
        %v527 = vpop.permute.xlu0 %526
        %528 = vrot.lane.b32.xlu0 %v454, 80
        %v529 = vpop.permute.xlu0 %528
        %530 = vrot.lane.b32.xlu0 %v456, 80
        %v531 = vpop.permute.xlu0 %530
        %532 = vrot.lane.b32.xlu0 %v459, 80
        %v533 = vpop.permute.xlu0 %532
        %534 = vrot.lane.b32.xlu0 %v461, 80
        %v535 = vpop.permute.xlu0 %534
        %536 = vrot.lane.b32.xlu0 %v464, 80
        %v537 = vpop.permute.xlu0 %536
        %538 = vrot.lane.b32.xlu0 %v466, 80
        %v539 = vpop.permute.xlu0 %538
        %548 = vrot.lane.b32.xlu0 %v449, 64
        %v549 = vpop.permute.xlu0 %548
        %550 = vrot.lane.b32.xlu0 %v451, 64
        %v551 = vpop.permute.xlu0 %550
        %552 = vrot.lane.b32.xlu0 %v454, 64
        %v553 = vpop.permute.xlu0 %552
        %554 = vrot.lane.b32.xlu0 %v456, 64
        %v555 = vpop.permute.xlu0 %554
        %556 = vrot.lane.b32.xlu0 %v459, 64
        %v557 = vpop.permute.xlu0 %556
        %558 = vrot.lane.b32.xlu0 %v461, 64
        %v559 = vpop.permute.xlu0 %558
        %560 = vrot.lane.b32.xlu0 %v464, 64
        %v561 = vpop.permute.xlu0 %560
        %562 = vrot.lane.b32.xlu0 %v466, 64
        %v563 = vpop.permute.xlu0 %562
        %572 = vrot.lane.b32.xlu0 %v449, 48
        %v573 = vpop.permute.xlu0 %572
        %574 = vrot.lane.b32.xlu0 %v451, 48
        %v575 = vpop.permute.xlu0 %574
        %576 = vrot.lane.b32.xlu0 %v454, 48
        %v577 = vpop.permute.xlu0 %576
        %578 = vrot.lane.b32.xlu0 %v456, 48
        %v579 = vpop.permute.xlu0 %578
        %580 = vrot.lane.b32.xlu0 %v459, 48
        %v581 = vpop.permute.xlu0 %580
        %582 = vrot.lane.b32.xlu0 %v461, 48
        %v583 = vpop.permute.xlu0 %582
        %584 = vrot.lane.b32.xlu0 %v464, 48
        %v585 = vpop.permute.xlu0 %584
        %586 = vrot.lane.b32.xlu0 %v466, 48
        %v587 = vpop.permute.xlu0 %586
        %596 = vrot.lane.b32.xlu0 %v449, 32
        %v597 = vpop.permute.xlu0 %596
        %598 = vrot.lane.b32.xlu0 %v451, 32
        %v599 = vpop.permute.xlu0 %598
        %600 = vrot.lane.b32.xlu0 %v454, 32
        %v601 = vpop.permute.xlu0 %600
        %602 = vrot.lane.b32.xlu0 %v456, 32
        %v603 = vpop.permute.xlu0 %602
        %604 = vrot.lane.b32.xlu0 %v459, 32
        %v605 = vpop.permute.xlu0 %604
        %606 = vrot.lane.b32.xlu0 %v461, 32
        %v607 = vpop.permute.xlu0 %606
        %608 = vrot.lane.b32.xlu0 %v464, 32
        %v609 = vpop.permute.xlu0 %608
        %610 = vrot.lane.b32.xlu0 %v466, 32
        %v611 = vpop.permute.xlu0 %610
        %620 = vrot.lane.b32.xlu0 %v449, 16
        %v621 = vpop.permute.xlu0 %620
        %622 = vrot.lane.b32.xlu0 %v451, 16
        %v623 = vpop.permute.xlu0 %622
        %624 = vrot.lane.b32.xlu0 %v454, 16
        %v625 = vpop.permute.xlu0 %624
        %626 = vrot.lane.b32.xlu0 %v456, 16
        %v627 = vpop.permute.xlu0 %626
        %628 = vrot.lane.b32.xlu0 %v459, 16
        %v629 = vpop.permute.xlu0 %628
        %630 = vrot.lane.b32.xlu0 %v461, 16
        %v631 = vpop.permute.xlu0 %630
        %632 = vrot.lane.b32.xlu0 %v464, 16
        %v633 = vpop.permute.xlu0 %632
        %634 = vrot.lane.b32.xlu0 %v466, 16
        %v635 = vpop.permute.xlu0 %634
        %v644 = vrot.slane %v501, 4
        %vm645 = vcmask 1047556
        %v646 = vsel %vm645, %v644, %v449
        %v647 = vrot.slane %v449, 4
        %v648 = vsel %vm645, %v501, %v647
        %v650 = vunpack.c.l.s4 1983009808
        %v651 = vunpack.c.0.s8 %v650
        %v652 = vperm.slane %v646, %v651
        %v654 = vunpack.c.l.s4 1983009808
        %v655 = vunpack.c.0.s8 %v654
        %v656 = vperm.slane %v648, %v655
        %v657 = vrot.slane %v525, 4
        %v658 = vsel %vm645, %v657, %v477
        %v659 = vrot.slane %v477, 4
        %v660 = vsel %vm645, %v525, %v659
        %v662 = vunpack.c.l.s4 1983009808
        %v663 = vunpack.c.0.s8 %v662
        %v664 = vperm.slane %v658, %v663
        %v666 = vunpack.c.l.s4 1983009808
        %v667 = vunpack.c.0.s8 %v666
        %v668 = vperm.slane %v660, %v667
        %v669 = vrot.slane %v597, 4
        %v670 = vsel %vm645, %v669, %v549
        %v671 = vrot.slane %v549, 4
        %v672 = vsel %vm645, %v597, %v671
        %v674 = vunpack.c.l.s4 1983009808
        %v675 = vunpack.c.0.s8 %v674
        %v676 = vperm.slane %v670, %v675
        %v678 = vunpack.c.l.s4 1983009808
        %v679 = vunpack.c.0.s8 %v678
        %v680 = vperm.slane %v672, %v679
        %v681 = vrot.slane %v621, 4
        %v682 = vsel %vm645, %v681, %v573
        %v683 = vrot.slane %v573, 4
        %v684 = vsel %vm645, %v621, %v683
        %v686 = vunpack.c.l.s4 1983009808
        %v687 = vunpack.c.0.s8 %v686
        %v688 = vperm.slane %v682, %v687
        %v690 = vunpack.c.l.s4 1983009808
        %v691 = vunpack.c.0.s8 %v690
        %v692 = vperm.slane %v684, %v691
        %v693 = vrot.slane %v664, 4
        %v694 = vsel %vm645, %v693, %v652
        %v695 = vrot.slane %v652, 4
        %v696 = vsel %vm645, %v664, %v695
        %v698 = vunpack.c.l.s4 1934713408
        %v699 = vunpack.c.0.s8 %v698
        %v700 = vperm.slane %v694, %v699
        %v702 = vunpack.c.l.s4 1934713408
        %v703 = vunpack.c.0.s8 %v702
        %v704 = vperm.slane %v696, %v703
        %v705 = vrot.slane %v668, 4
        %v706 = vsel %vm645, %v705, %v656
        %v707 = vrot.slane %v656, 4
        %v708 = vsel %vm645, %v668, %v707
        %v710 = vunpack.c.l.s4 1934713408
        %v711 = vunpack.c.0.s8 %v710
        %v712 = vperm.slane %v706, %v711
        %v714 = vunpack.c.l.s4 1934713408
        %v715 = vunpack.c.0.s8 %v714
        %v716 = vperm.slane %v708, %v715
        %v717 = vrot.slane %v688, 4
        %v718 = vsel %vm645, %v717, %v676
        %v719 = vrot.slane %v676, 4
        %v720 = vsel %vm645, %v688, %v719
        %v722 = vunpack.c.l.s4 1934713408
        %v723 = vunpack.c.0.s8 %v722
        %v724 = vperm.slane %v718, %v723
        %v726 = vunpack.c.l.s4 1934713408
        %v727 = vunpack.c.0.s8 %v726
        %v728 = vperm.slane %v720, %v727
        %v729 = vrot.slane %v692, 4
        %v730 = vsel %vm645, %v729, %v680
        %v731 = vrot.slane %v680, 4
        %v732 = vsel %vm645, %v692, %v731
        %v734 = vunpack.c.l.s4 1934713408
        %v735 = vunpack.c.0.s8 %v734
        %v736 = vperm.slane %v730, %v735
        %v738 = vunpack.c.l.s4 1934713408
        %v739 = vunpack.c.0.s8 %v738
        %v740 = vperm.slane %v732, %v739
        %v741 = vrot.slane %v724, 4
        %v742 = vsel %vm645, %v741, %v700
        %v743 = vrot.slane %v700, 4
        %v744 = vsel %vm645, %v724, %v743
        %v745 = vrot.slane %v728, 4
        %v746 = vsel %vm645, %v745, %v704
        %v747 = vrot.slane %v704, 4
        %v748 = vsel %vm645, %v728, %v747
        %v749 = vrot.slane %v736, 4
        %v750 = vsel %vm645, %v749, %v712
        %v751 = vrot.slane %v712, 4
        %v752 = vsel %vm645, %v736, %v751
        %v753 = vrot.slane %v740, 4
        %v754 = vsel %vm645, %v753, %v716
        %v755 = vrot.slane %v716, 4
        %v756 = vsel %vm645, %v740, %v755
        %v757 = vrot.slane %v503, 4
        %v758 = vsel %vm645, %v757, %v451
        %v759 = vrot.slane %v451, 4
        %v760 = vsel %vm645, %v503, %v759
        %v762 = vunpack.c.l.s4 1983009808
        %v763 = vunpack.c.0.s8 %v762
        %v764 = vperm.slane %v758, %v763
        %v766 = vunpack.c.l.s4 1983009808
        %v767 = vunpack.c.0.s8 %v766
        %v768 = vperm.slane %v760, %v767
        %v769 = vrot.slane %v527, 4
        %v770 = vsel %vm645, %v769, %v479
        %v771 = vrot.slane %v479, 4
        %v772 = vsel %vm645, %v527, %v771
        %v774 = vunpack.c.l.s4 1983009808
        %v775 = vunpack.c.0.s8 %v774
        %v776 = vperm.slane %v770, %v775
        %v778 = vunpack.c.l.s4 1983009808
        %v779 = vunpack.c.0.s8 %v778
        %v780 = vperm.slane %v772, %v779
        %v781 = vrot.slane %v599, 4
        %v782 = vsel %vm645, %v781, %v551
        %v783 = vrot.slane %v551, 4
        %v784 = vsel %vm645, %v599, %v783
        %v786 = vunpack.c.l.s4 1983009808
        %v787 = vunpack.c.0.s8 %v786
        %v788 = vperm.slane %v782, %v787
        %v790 = vunpack.c.l.s4 1983009808
        %v791 = vunpack.c.0.s8 %v790
        %v792 = vperm.slane %v784, %v791
        %v793 = vrot.slane %v623, 4
        %v794 = vsel %vm645, %v793, %v575
        %v795 = vrot.slane %v575, 4
        %v796 = vsel %vm645, %v623, %v795
        %v798 = vunpack.c.l.s4 1983009808
        %v799 = vunpack.c.0.s8 %v798
        %v800 = vperm.slane %v794, %v799
        %v802 = vunpack.c.l.s4 1983009808
        %v803 = vunpack.c.0.s8 %v802
        %v804 = vperm.slane %v796, %v803
        %v805 = vrot.slane %v776, 4
        %v806 = vsel %vm645, %v805, %v764
        %v807 = vrot.slane %v764, 4
        %v808 = vsel %vm645, %v776, %v807
        %v810 = vunpack.c.l.s4 1934713408
        %v811 = vunpack.c.0.s8 %v810
        %v812 = vperm.slane %v806, %v811
        %v814 = vunpack.c.l.s4 1934713408
        %v815 = vunpack.c.0.s8 %v814
        %v816 = vperm.slane %v808, %v815
        %v817 = vrot.slane %v780, 4
        %v818 = vsel %vm645, %v817, %v768
        %v819 = vrot.slane %v768, 4
        %v820 = vsel %vm645, %v780, %v819
        %v822 = vunpack.c.l.s4 1934713408
        %v823 = vunpack.c.0.s8 %v822
        %v824 = vperm.slane %v818, %v823
        %v826 = vunpack.c.l.s4 1934713408
        %v827 = vunpack.c.0.s8 %v826
        %v828 = vperm.slane %v820, %v827
        %v829 = vrot.slane %v800, 4
        %v830 = vsel %vm645, %v829, %v788
        %v831 = vrot.slane %v788, 4
        %v832 = vsel %vm645, %v800, %v831
        %v834 = vunpack.c.l.s4 1934713408
        %v835 = vunpack.c.0.s8 %v834
        %v836 = vperm.slane %v830, %v835
        %v838 = vunpack.c.l.s4 1934713408
        %v839 = vunpack.c.0.s8 %v838
        %v840 = vperm.slane %v832, %v839
        %v841 = vrot.slane %v804, 4
        %v842 = vsel %vm645, %v841, %v792
        %v843 = vrot.slane %v792, 4
        %v844 = vsel %vm645, %v804, %v843
        %v846 = vunpack.c.l.s4 1934713408
        %v847 = vunpack.c.0.s8 %v846
        %v848 = vperm.slane %v842, %v847
        %v850 = vunpack.c.l.s4 1934713408
        %v851 = vunpack.c.0.s8 %v850
        %v852 = vperm.slane %v844, %v851
        %v853 = vrot.slane %v836, 4
        %v854 = vsel %vm645, %v853, %v812
        %v855 = vrot.slane %v812, 4
        %v856 = vsel %vm645, %v836, %v855
        %v857 = vrot.slane %v840, 4
        %v858 = vsel %vm645, %v857, %v816
        %v859 = vrot.slane %v816, 4
        %v860 = vsel %vm645, %v840, %v859
        %v861 = vrot.slane %v848, 4
        %v862 = vsel %vm645, %v861, %v824
        %v863 = vrot.slane %v824, 4
        %v864 = vsel %vm645, %v848, %v863
        %v865 = vrot.slane %v852, 4
        %v866 = vsel %vm645, %v865, %v828
        %v867 = vrot.slane %v828, 4
        %v868 = vsel %vm645, %v852, %v867
        %v869 = vrot.slane %v505, 4
        %v870 = vsel %vm645, %v869, %v454
        %v871 = vrot.slane %v454, 4
        %v872 = vsel %vm645, %v505, %v871
        %v874 = vunpack.c.l.s4 1983009808
        %v875 = vunpack.c.0.s8 %v874
        %v876 = vperm.slane %v870, %v875
        %v878 = vunpack.c.l.s4 1983009808
        %v879 = vunpack.c.0.s8 %v878
        %v880 = vperm.slane %v872, %v879
        %v881 = vrot.slane %v529, 4
        %v882 = vsel %vm645, %v881, %v481
        %v883 = vrot.slane %v481, 4
        %v884 = vsel %vm645, %v529, %v883
        %v886 = vunpack.c.l.s4 1983009808
        %v887 = vunpack.c.0.s8 %v886
        %v888 = vperm.slane %v882, %v887
        %v890 = vunpack.c.l.s4 1983009808
        %v891 = vunpack.c.0.s8 %v890
        %v892 = vperm.slane %v884, %v891
        %v893 = vrot.slane %v601, 4
        %v894 = vsel %vm645, %v893, %v553
        %v895 = vrot.slane %v553, 4
        %v896 = vsel %vm645, %v601, %v895
        %v898 = vunpack.c.l.s4 1983009808
        %v899 = vunpack.c.0.s8 %v898
        %v900 = vperm.slane %v894, %v899
        %v902 = vunpack.c.l.s4 1983009808
        %v903 = vunpack.c.0.s8 %v902
        %v904 = vperm.slane %v896, %v903
        %v905 = vrot.slane %v625, 4
        %v906 = vsel %vm645, %v905, %v577
        %v907 = vrot.slane %v577, 4
        %v908 = vsel %vm645, %v625, %v907
        %v910 = vunpack.c.l.s4 1983009808
        %v911 = vunpack.c.0.s8 %v910
        %v912 = vperm.slane %v906, %v911
        %v914 = vunpack.c.l.s4 1983009808
        %v915 = vunpack.c.0.s8 %v914
        %v916 = vperm.slane %v908, %v915
        %v917 = vrot.slane %v888, 4
        %v918 = vsel %vm645, %v917, %v876
        %v919 = vrot.slane %v876, 4
        %v920 = vsel %vm645, %v888, %v919
        %v922 = vunpack.c.l.s4 1934713408
        %v923 = vunpack.c.0.s8 %v922
        %v924 = vperm.slane %v918, %v923
        %v926 = vunpack.c.l.s4 1934713408
        %v927 = vunpack.c.0.s8 %v926
        %v928 = vperm.slane %v920, %v927
        %v929 = vrot.slane %v892, 4
        %v930 = vsel %vm645, %v929, %v880
        %v931 = vrot.slane %v880, 4
        %v932 = vsel %vm645, %v892, %v931
        %v934 = vunpack.c.l.s4 1934713408
        %v935 = vunpack.c.0.s8 %v934
        %v936 = vperm.slane %v930, %v935
        %v938 = vunpack.c.l.s4 1934713408
        %v939 = vunpack.c.0.s8 %v938
        %v940 = vperm.slane %v932, %v939
        %v941 = vrot.slane %v912, 4
        %v942 = vsel %vm645, %v941, %v900
        %v943 = vrot.slane %v900, 4
        %v944 = vsel %vm645, %v912, %v943
        %v946 = vunpack.c.l.s4 1934713408
        %v947 = vunpack.c.0.s8 %v946
        %v948 = vperm.slane %v942, %v947
        %v950 = vunpack.c.l.s4 1934713408
        %v951 = vunpack.c.0.s8 %v950
        %v952 = vperm.slane %v944, %v951
        %v953 = vrot.slane %v916, 4
        %v954 = vsel %vm645, %v953, %v904
        %v955 = vrot.slane %v904, 4
        %v956 = vsel %vm645, %v916, %v955
        %v958 = vunpack.c.l.s4 1934713408
        %v959 = vunpack.c.0.s8 %v958
        %v960 = vperm.slane %v954, %v959
        %v962 = vunpack.c.l.s4 1934713408
        %v963 = vunpack.c.0.s8 %v962
        %v964 = vperm.slane %v956, %v963
        %v965 = vrot.slane %v948, 4
        %v966 = vsel %vm645, %v965, %v924
        %v967 = vrot.slane %v924, 4
        %v968 = vsel %vm645, %v948, %v967
        %v969 = vrot.slane %v952, 4
        %v970 = vsel %vm645, %v969, %v928
        %v971 = vrot.slane %v928, 4
        %v972 = vsel %vm645, %v952, %v971
        %v973 = vrot.slane %v960, 4
        %v974 = vsel %vm645, %v973, %v936
        %v975 = vrot.slane %v936, 4
        %v976 = vsel %vm645, %v960, %v975
        %v977 = vrot.slane %v964, 4
        %v978 = vsel %vm645, %v977, %v940
        %v979 = vrot.slane %v940, 4
        %v980 = vsel %vm645, %v964, %v979
        %v981 = vrot.slane %v507, 4
        %v982 = vsel %vm645, %v981, %v456
        %v983 = vrot.slane %v456, 4
        %v984 = vsel %vm645, %v507, %v983
        %v986 = vunpack.c.l.s4 1983009808
        %v987 = vunpack.c.0.s8 %v986
        %v988 = vperm.slane %v982, %v987
        %v990 = vunpack.c.l.s4 1983009808
        %v991 = vunpack.c.0.s8 %v990
        %v992 = vperm.slane %v984, %v991
        %v993 = vrot.slane %v531, 4
        %v994 = vsel %vm645, %v993, %v483
        %v995 = vrot.slane %v483, 4
        %v996 = vsel %vm645, %v531, %v995
        %v998 = vunpack.c.l.s4 1983009808
        %v999 = vunpack.c.0.s8 %v998
        %v1000 = vperm.slane %v994, %v999
        %v1002 = vunpack.c.l.s4 1983009808
        %v1003 = vunpack.c.0.s8 %v1002
        %v1004 = vperm.slane %v996, %v1003
        %v1005 = vrot.slane %v603, 4
        %v1006 = vsel %vm645, %v1005, %v555
        %v1007 = vrot.slane %v555, 4
        %v1008 = vsel %vm645, %v603, %v1007
        %v1010 = vunpack.c.l.s4 1983009808
        %v1011 = vunpack.c.0.s8 %v1010
        %v1012 = vperm.slane %v1006, %v1011
        %v1014 = vunpack.c.l.s4 1983009808
        %v1015 = vunpack.c.0.s8 %v1014
        %v1016 = vperm.slane %v1008, %v1015
        %v1017 = vrot.slane %v627, 4
        %v1018 = vsel %vm645, %v1017, %v579
        %v1019 = vrot.slane %v579, 4
        %v1020 = vsel %vm645, %v627, %v1019
        %v1022 = vunpack.c.l.s4 1983009808
        %v1023 = vunpack.c.0.s8 %v1022
        %v1024 = vperm.slane %v1018, %v1023
        %v1026 = vunpack.c.l.s4 1983009808
        %v1027 = vunpack.c.0.s8 %v1026
        %v1028 = vperm.slane %v1020, %v1027
        %v1029 = vrot.slane %v1000, 4
        %v1030 = vsel %vm645, %v1029, %v988
        %v1031 = vrot.slane %v988, 4
        %v1032 = vsel %vm645, %v1000, %v1031
        %v1034 = vunpack.c.l.s4 1934713408
        %v1035 = vunpack.c.0.s8 %v1034
        %v1036 = vperm.slane %v1030, %v1035
        %v1038 = vunpack.c.l.s4 1934713408
        %v1039 = vunpack.c.0.s8 %v1038
        %v1040 = vperm.slane %v1032, %v1039
        %v1041 = vrot.slane %v1004, 4
        %v1042 = vsel %vm645, %v1041, %v992
        %v1043 = vrot.slane %v992, 4
        %v1044 = vsel %vm645, %v1004, %v1043
        %v1046 = vunpack.c.l.s4 1934713408
        %v1047 = vunpack.c.0.s8 %v1046
        %v1048 = vperm.slane %v1042, %v1047
        %v1050 = vunpack.c.l.s4 1934713408
        %v1051 = vunpack.c.0.s8 %v1050
        %v1052 = vperm.slane %v1044, %v1051
        %v1053 = vrot.slane %v1024, 4
        %v1054 = vsel %vm645, %v1053, %v1012
        %v1055 = vrot.slane %v1012, 4
        %v1056 = vsel %vm645, %v1024, %v1055
        %v1058 = vunpack.c.l.s4 1934713408
        %v1059 = vunpack.c.0.s8 %v1058
        %v1060 = vperm.slane %v1054, %v1059
        %v1062 = vunpack.c.l.s4 1934713408
        %v1063 = vunpack.c.0.s8 %v1062
        %v1064 = vperm.slane %v1056, %v1063
        %v1065 = vrot.slane %v1028, 4
        %v1066 = vsel %vm645, %v1065, %v1016
        %v1067 = vrot.slane %v1016, 4
        %v1068 = vsel %vm645, %v1028, %v1067
        %v1070 = vunpack.c.l.s4 1934713408
        %v1071 = vunpack.c.0.s8 %v1070
        %v1072 = vperm.slane %v1066, %v1071
        %v1074 = vunpack.c.l.s4 1934713408
        %v1075 = vunpack.c.0.s8 %v1074
        %v1076 = vperm.slane %v1068, %v1075
        %v1077 = vrot.slane %v1060, 4
        %v1078 = vsel %vm645, %v1077, %v1036
        %v1079 = vrot.slane %v1036, 4
        %v1080 = vsel %vm645, %v1060, %v1079
        %v1081 = vrot.slane %v1064, 4
        %v1082 = vsel %vm645, %v1081, %v1040
        %v1083 = vrot.slane %v1040, 4
        %v1084 = vsel %vm645, %v1064, %v1083
        %v1085 = vrot.slane %v1072, 4
        %v1086 = vsel %vm645, %v1085, %v1048
        %v1087 = vrot.slane %v1048, 4
        %v1088 = vsel %vm645, %v1072, %v1087
        %v1089 = vrot.slane %v1076, 4
        %v1090 = vsel %vm645, %v1089, %v1052
        %v1091 = vrot.slane %v1052, 4
        %v1092 = vsel %vm645, %v1076, %v1091
        %v1093 = vrot.slane %v509, 4
        %v1094 = vsel %vm645, %v1093, %v459
        %v1095 = vrot.slane %v459, 4
        %v1096 = vsel %vm645, %v509, %v1095
        %v1098 = vunpack.c.l.s4 1983009808
        %v1099 = vunpack.c.0.s8 %v1098
        %v1100 = vperm.slane %v1094, %v1099
        %v1102 = vunpack.c.l.s4 1983009808
        %v1103 = vunpack.c.0.s8 %v1102
        %v1104 = vperm.slane %v1096, %v1103
        %v1105 = vrot.slane %v533, 4
        %v1106 = vsel %vm645, %v1105, %v485
        %v1107 = vrot.slane %v485, 4
        %v1108 = vsel %vm645, %v533, %v1107
        %v1110 = vunpack.c.l.s4 1983009808
        %v1111 = vunpack.c.0.s8 %v1110
        %v1112 = vperm.slane %v1106, %v1111
        %v1114 = vunpack.c.l.s4 1983009808
        %v1115 = vunpack.c.0.s8 %v1114
        %v1116 = vperm.slane %v1108, %v1115
        %v1117 = vrot.slane %v605, 4
        %v1118 = vsel %vm645, %v1117, %v557
        %v1119 = vrot.slane %v557, 4
        %v1120 = vsel %vm645, %v605, %v1119
        %v1122 = vunpack.c.l.s4 1983009808
        %v1123 = vunpack.c.0.s8 %v1122
        %v1124 = vperm.slane %v1118, %v1123
        %v1126 = vunpack.c.l.s4 1983009808
        %v1127 = vunpack.c.0.s8 %v1126
        %v1128 = vperm.slane %v1120, %v1127
        %v1129 = vrot.slane %v629, 4
        %v1130 = vsel %vm645, %v1129, %v581
        %v1131 = vrot.slane %v581, 4
        %v1132 = vsel %vm645, %v629, %v1131
        %v1134 = vunpack.c.l.s4 1983009808
        %v1135 = vunpack.c.0.s8 %v1134
        %v1136 = vperm.slane %v1130, %v1135
        %v1138 = vunpack.c.l.s4 1983009808
        %v1139 = vunpack.c.0.s8 %v1138
        %v1140 = vperm.slane %v1132, %v1139
        %v1141 = vrot.slane %v1112, 4
        %v1142 = vsel %vm645, %v1141, %v1100
        %v1143 = vrot.slane %v1100, 4
        %v1144 = vsel %vm645, %v1112, %v1143
        %v1146 = vunpack.c.l.s4 1934713408
        %v1147 = vunpack.c.0.s8 %v1146
        %v1148 = vperm.slane %v1142, %v1147
        %v1150 = vunpack.c.l.s4 1934713408
        %v1151 = vunpack.c.0.s8 %v1150
        %v1152 = vperm.slane %v1144, %v1151
        %v1153 = vrot.slane %v1116, 4
        %v1154 = vsel %vm645, %v1153, %v1104
        %v1155 = vrot.slane %v1104, 4
        %v1156 = vsel %vm645, %v1116, %v1155
        %v1158 = vunpack.c.l.s4 1934713408
        %v1159 = vunpack.c.0.s8 %v1158
        %v1160 = vperm.slane %v1154, %v1159
        %v1162 = vunpack.c.l.s4 1934713408
        %v1163 = vunpack.c.0.s8 %v1162
        %v1164 = vperm.slane %v1156, %v1163
        %v1165 = vrot.slane %v1136, 4
        %v1166 = vsel %vm645, %v1165, %v1124
        %v1167 = vrot.slane %v1124, 4
        %v1168 = vsel %vm645, %v1136, %v1167
        %v1170 = vunpack.c.l.s4 1934713408
        %v1171 = vunpack.c.0.s8 %v1170
        %v1172 = vperm.slane %v1166, %v1171
        %v1174 = vunpack.c.l.s4 1934713408
        %v1175 = vunpack.c.0.s8 %v1174
        %v1176 = vperm.slane %v1168, %v1175
        %v1177 = vrot.slane %v1140, 4
        %v1178 = vsel %vm645, %v1177, %v1128
        %v1179 = vrot.slane %v1128, 4
        %v1180 = vsel %vm645, %v1140, %v1179
        %v1182 = vunpack.c.l.s4 1934713408
        %v1183 = vunpack.c.0.s8 %v1182
        %v1184 = vperm.slane %v1178, %v1183
        %v1186 = vunpack.c.l.s4 1934713408
        %v1187 = vunpack.c.0.s8 %v1186
        %v1188 = vperm.slane %v1180, %v1187
        %v1189 = vrot.slane %v1172, 4
        %v1190 = vsel %vm645, %v1189, %v1148
        %v1191 = vrot.slane %v1148, 4
        %v1192 = vsel %vm645, %v1172, %v1191
        %v1193 = vrot.slane %v1176, 4
        %v1194 = vsel %vm645, %v1193, %v1152
        %v1195 = vrot.slane %v1152, 4
        %v1196 = vsel %vm645, %v1176, %v1195
        %v1197 = vrot.slane %v1184, 4
        %v1198 = vsel %vm645, %v1197, %v1160
        %v1199 = vrot.slane %v1160, 4
        %v1200 = vsel %vm645, %v1184, %v1199
        %v1201 = vrot.slane %v1188, 4
        %v1202 = vsel %vm645, %v1201, %v1164
        %v1203 = vrot.slane %v1164, 4
        %v1204 = vsel %vm645, %v1188, %v1203
        %v1205 = vrot.slane %v511, 4
        %v1206 = vsel %vm645, %v1205, %v461
        %v1207 = vrot.slane %v461, 4
        %v1208 = vsel %vm645, %v511, %v1207
        %v1210 = vunpack.c.l.s4 1983009808
        %v1211 = vunpack.c.0.s8 %v1210
        %v1212 = vperm.slane %v1206, %v1211
        %v1214 = vunpack.c.l.s4 1983009808
        %v1215 = vunpack.c.0.s8 %v1214
        %v1216 = vperm.slane %v1208, %v1215
        %v1217 = vrot.slane %v535, 4
        %v1218 = vsel %vm645, %v1217, %v487
        %v1219 = vrot.slane %v487, 4
        %v1220 = vsel %vm645, %v535, %v1219
        %v1222 = vunpack.c.l.s4 1983009808
        %v1223 = vunpack.c.0.s8 %v1222
        %v1224 = vperm.slane %v1218, %v1223
        %v1226 = vunpack.c.l.s4 1983009808
        %v1227 = vunpack.c.0.s8 %v1226
        %v1228 = vperm.slane %v1220, %v1227
        %v1229 = vrot.slane %v607, 4
        %v1230 = vsel %vm645, %v1229, %v559
        %v1231 = vrot.slane %v559, 4
        %v1232 = vsel %vm645, %v607, %v1231
        %v1234 = vunpack.c.l.s4 1983009808
        %v1235 = vunpack.c.0.s8 %v1234
        %v1236 = vperm.slane %v1230, %v1235
        %v1238 = vunpack.c.l.s4 1983009808
        %v1239 = vunpack.c.0.s8 %v1238
        %v1240 = vperm.slane %v1232, %v1239
        %v1241 = vrot.slane %v631, 4
        %v1242 = vsel %vm645, %v1241, %v583
        %v1243 = vrot.slane %v583, 4
        %v1244 = vsel %vm645, %v631, %v1243
        %v1246 = vunpack.c.l.s4 1983009808
        %v1247 = vunpack.c.0.s8 %v1246
        %v1248 = vperm.slane %v1242, %v1247
        %v1250 = vunpack.c.l.s4 1983009808
        %v1251 = vunpack.c.0.s8 %v1250
        %v1252 = vperm.slane %v1244, %v1251
        %v1253 = vrot.slane %v1224, 4
        %v1254 = vsel %vm645, %v1253, %v1212
        %v1255 = vrot.slane %v1212, 4
        %v1256 = vsel %vm645, %v1224, %v1255
        %v1258 = vunpack.c.l.s4 1934713408
        %v1259 = vunpack.c.0.s8 %v1258
        %v1260 = vperm.slane %v1254, %v1259
        %v1262 = vunpack.c.l.s4 1934713408
        %v1263 = vunpack.c.0.s8 %v1262
        %v1264 = vperm.slane %v1256, %v1263
        %v1265 = vrot.slane %v1228, 4
        %v1266 = vsel %vm645, %v1265, %v1216
        %v1267 = vrot.slane %v1216, 4
        %v1268 = vsel %vm645, %v1228, %v1267
        %v1270 = vunpack.c.l.s4 1934713408
        %v1271 = vunpack.c.0.s8 %v1270
        %v1272 = vperm.slane %v1266, %v1271
        %v1274 = vunpack.c.l.s4 1934713408
        %v1275 = vunpack.c.0.s8 %v1274
        %v1276 = vperm.slane %v1268, %v1275
        %v1277 = vrot.slane %v1248, 4
        %v1278 = vsel %vm645, %v1277, %v1236
        %v1279 = vrot.slane %v1236, 4
        %v1280 = vsel %vm645, %v1248, %v1279
        %v1282 = vunpack.c.l.s4 1934713408
        %v1283 = vunpack.c.0.s8 %v1282
        %v1284 = vperm.slane %v1278, %v1283
        %v1286 = vunpack.c.l.s4 1934713408
        %v1287 = vunpack.c.0.s8 %v1286
        %v1288 = vperm.slane %v1280, %v1287
        %v1289 = vrot.slane %v1252, 4
        %v1290 = vsel %vm645, %v1289, %v1240
        %v1291 = vrot.slane %v1240, 4
        %v1292 = vsel %vm645, %v1252, %v1291
        %v1294 = vunpack.c.l.s4 1934713408
        %v1295 = vunpack.c.0.s8 %v1294
        %v1296 = vperm.slane %v1290, %v1295
        %v1298 = vunpack.c.l.s4 1934713408
        %v1299 = vunpack.c.0.s8 %v1298
        %v1300 = vperm.slane %v1292, %v1299
        %v1301 = vrot.slane %v1284, 4
        %v1302 = vsel %vm645, %v1301, %v1260
        %v1303 = vrot.slane %v1260, 4
        %v1304 = vsel %vm645, %v1284, %v1303
        %v1305 = vrot.slane %v1288, 4
        %v1306 = vsel %vm645, %v1305, %v1264
        %v1307 = vrot.slane %v1264, 4
        %v1308 = vsel %vm645, %v1288, %v1307
        %v1309 = vrot.slane %v1296, 4
        %v1310 = vsel %vm645, %v1309, %v1272
        %v1311 = vrot.slane %v1272, 4
        %v1312 = vsel %vm645, %v1296, %v1311
        %v1313 = vrot.slane %v1300, 4
        %v1314 = vsel %vm645, %v1313, %v1276
        %v1315 = vrot.slane %v1276, 4
        %v1316 = vsel %vm645, %v1300, %v1315
        %v1317 = vrot.slane %v513, 4
        %v1318 = vsel %vm645, %v1317, %v464
        %v1319 = vrot.slane %v464, 4
        %v1320 = vsel %vm645, %v513, %v1319
        %v1322 = vunpack.c.l.s4 1983009808
        %v1323 = vunpack.c.0.s8 %v1322
        %v1324 = vperm.slane %v1318, %v1323
        %v1326 = vunpack.c.l.s4 1983009808
        %v1327 = vunpack.c.0.s8 %v1326
        %v1328 = vperm.slane %v1320, %v1327
        %v1329 = vrot.slane %v537, 4
        %v1330 = vsel %vm645, %v1329, %v489
        %v1331 = vrot.slane %v489, 4
        %v1332 = vsel %vm645, %v537, %v1331
        %v1334 = vunpack.c.l.s4 1983009808
        %v1335 = vunpack.c.0.s8 %v1334
        %v1336 = vperm.slane %v1330, %v1335
        %v1338 = vunpack.c.l.s4 1983009808
        %v1339 = vunpack.c.0.s8 %v1338
        %v1340 = vperm.slane %v1332, %v1339
        %v1341 = vrot.slane %v609, 4
        %v1342 = vsel %vm645, %v1341, %v561
        %v1343 = vrot.slane %v561, 4
        %v1344 = vsel %vm645, %v609, %v1343
        %v1346 = vunpack.c.l.s4 1983009808
        %v1347 = vunpack.c.0.s8 %v1346
        %v1348 = vperm.slane %v1342, %v1347
        %v1350 = vunpack.c.l.s4 1983009808
        %v1351 = vunpack.c.0.s8 %v1350
        %v1352 = vperm.slane %v1344, %v1351
        %v1353 = vrot.slane %v633, 4
        %v1354 = vsel %vm645, %v1353, %v585
        %v1355 = vrot.slane %v585, 4
        %v1356 = vsel %vm645, %v633, %v1355
        %v1358 = vunpack.c.l.s4 1983009808
        %v1359 = vunpack.c.0.s8 %v1358
        %v1360 = vperm.slane %v1354, %v1359
        %v1362 = vunpack.c.l.s4 1983009808
        %v1363 = vunpack.c.0.s8 %v1362
        %v1364 = vperm.slane %v1356, %v1363
        %v1365 = vrot.slane %v1336, 4
        %v1366 = vsel %vm645, %v1365, %v1324
        %v1367 = vrot.slane %v1324, 4
        %v1368 = vsel %vm645, %v1336, %v1367
        %v1370 = vunpack.c.l.s4 1934713408
        %v1371 = vunpack.c.0.s8 %v1370
        %v1372 = vperm.slane %v1366, %v1371
        %v1374 = vunpack.c.l.s4 1934713408
        %v1375 = vunpack.c.0.s8 %v1374
        %v1376 = vperm.slane %v1368, %v1375
        %v1377 = vrot.slane %v1340, 4
        %v1378 = vsel %vm645, %v1377, %v1328
        %v1379 = vrot.slane %v1328, 4
        %v1380 = vsel %vm645, %v1340, %v1379
        %v1382 = vunpack.c.l.s4 1934713408
        %v1383 = vunpack.c.0.s8 %v1382
        %v1384 = vperm.slane %v1378, %v1383
        %v1386 = vunpack.c.l.s4 1934713408
        %v1387 = vunpack.c.0.s8 %v1386
        %v1388 = vperm.slane %v1380, %v1387
        %v1389 = vrot.slane %v1360, 4
        %v1390 = vsel %vm645, %v1389, %v1348
        %v1391 = vrot.slane %v1348, 4
        %v1392 = vsel %vm645, %v1360, %v1391
        %v1394 = vunpack.c.l.s4 1934713408
        %v1395 = vunpack.c.0.s8 %v1394
        %v1396 = vperm.slane %v1390, %v1395
        %v1398 = vunpack.c.l.s4 1934713408
        %v1399 = vunpack.c.0.s8 %v1398
        %v1400 = vperm.slane %v1392, %v1399
        %v1401 = vrot.slane %v1364, 4
        %v1402 = vsel %vm645, %v1401, %v1352
        %v1403 = vrot.slane %v1352, 4
        %v1404 = vsel %vm645, %v1364, %v1403
        %v1406 = vunpack.c.l.s4 1934713408
        %v1407 = vunpack.c.0.s8 %v1406
        %v1408 = vperm.slane %v1402, %v1407
        %v1410 = vunpack.c.l.s4 1934713408
        %v1411 = vunpack.c.0.s8 %v1410
        %v1412 = vperm.slane %v1404, %v1411
        %v1413 = vrot.slane %v1396, 4
        %v1414 = vsel %vm645, %v1413, %v1372
        %v1415 = vrot.slane %v1372, 4
        %v1416 = vsel %vm645, %v1396, %v1415
        %v1417 = vrot.slane %v1400, 4
        %v1418 = vsel %vm645, %v1417, %v1376
        %v1419 = vrot.slane %v1376, 4
        %v1420 = vsel %vm645, %v1400, %v1419
        %v1421 = vrot.slane %v1408, 4
        %v1422 = vsel %vm645, %v1421, %v1384
        %v1423 = vrot.slane %v1384, 4
        %v1424 = vsel %vm645, %v1408, %v1423
        %v1425 = vrot.slane %v1412, 4
        %v1426 = vsel %vm645, %v1425, %v1388
        %v1427 = vrot.slane %v1388, 4
        %v1428 = vsel %vm645, %v1412, %v1427
        %v1429 = vrot.slane %v515, 4
        %v1430 = vsel %vm645, %v1429, %v466
        %v1431 = vrot.slane %v466, 4
        %v1432 = vsel %vm645, %v515, %v1431
        %v1434 = vunpack.c.l.s4 1983009808
        %v1435 = vunpack.c.0.s8 %v1434
        %v1436 = vperm.slane %v1430, %v1435
        %v1438 = vunpack.c.l.s4 1983009808
        %v1439 = vunpack.c.0.s8 %v1438
        %v1440 = vperm.slane %v1432, %v1439
        %v1441 = vrot.slane %v539, 4
        %v1442 = vsel %vm645, %v1441, %v491
        %v1443 = vrot.slane %v491, 4
        %v1444 = vsel %vm645, %v539, %v1443
        %v1446 = vunpack.c.l.s4 1983009808
        %v1447 = vunpack.c.0.s8 %v1446
        %v1448 = vperm.slane %v1442, %v1447
        %v1450 = vunpack.c.l.s4 1983009808
        %v1451 = vunpack.c.0.s8 %v1450
        %v1452 = vperm.slane %v1444, %v1451
        %v1453 = vrot.slane %v611, 4
        %v1454 = vsel %vm645, %v1453, %v563
        %v1455 = vrot.slane %v563, 4
        %v1456 = vsel %vm645, %v611, %v1455
        %v1458 = vunpack.c.l.s4 1983009808
        %v1459 = vunpack.c.0.s8 %v1458
        %v1460 = vperm.slane %v1454, %v1459
        %v1462 = vunpack.c.l.s4 1983009808
        %v1463 = vunpack.c.0.s8 %v1462
        %v1464 = vperm.slane %v1456, %v1463
        %v1465 = vrot.slane %v635, 4
        %v1466 = vsel %vm645, %v1465, %v587
        %v1467 = vrot.slane %v587, 4
        %v1468 = vsel %vm645, %v635, %v1467
        %v1470 = vunpack.c.l.s4 1983009808
        %v1471 = vunpack.c.0.s8 %v1470
        %v1472 = vperm.slane %v1466, %v1471
        %v1474 = vunpack.c.l.s4 1983009808
        %v1475 = vunpack.c.0.s8 %v1474
        %v1476 = vperm.slane %v1468, %v1475
        %v1477 = vrot.slane %v1448, 4
        %v1478 = vsel %vm645, %v1477, %v1436
        %v1479 = vrot.slane %v1436, 4
        %v1480 = vsel %vm645, %v1448, %v1479
        %v1482 = vunpack.c.l.s4 1934713408
        %v1483 = vunpack.c.0.s8 %v1482
        %v1484 = vperm.slane %v1478, %v1483
        %v1486 = vunpack.c.l.s4 1934713408
        %v1487 = vunpack.c.0.s8 %v1486
        %v1488 = vperm.slane %v1480, %v1487
        %v1489 = vrot.slane %v1452, 4
        %v1490 = vsel %vm645, %v1489, %v1440
        %v1491 = vrot.slane %v1440, 4
        %v1492 = vsel %vm645, %v1452, %v1491
        %v1494 = vunpack.c.l.s4 1934713408
        %v1495 = vunpack.c.0.s8 %v1494
        %v1496 = vperm.slane %v1490, %v1495
        %v1498 = vunpack.c.l.s4 1934713408
        %v1499 = vunpack.c.0.s8 %v1498
        %v1500 = vperm.slane %v1492, %v1499
        %v1501 = vrot.slane %v1472, 4
        %v1502 = vsel %vm645, %v1501, %v1460
        %v1503 = vrot.slane %v1460, 4
        %v1504 = vsel %vm645, %v1472, %v1503
        %v1506 = vunpack.c.l.s4 1934713408
        %v1507 = vunpack.c.0.s8 %v1506
        %v1508 = vperm.slane %v1502, %v1507
        %v1510 = vunpack.c.l.s4 1934713408
        %v1511 = vunpack.c.0.s8 %v1510
        %v1512 = vperm.slane %v1504, %v1511
        %v1513 = vrot.slane %v1476, 4
        %v1514 = vsel %vm645, %v1513, %v1464
        %v1515 = vrot.slane %v1464, 4
        %v1516 = vsel %vm645, %v1476, %v1515
        %v1518 = vunpack.c.l.s4 1934713408
        %v1519 = vunpack.c.0.s8 %v1518
        %v1520 = vperm.slane %v1514, %v1519
        %v1522 = vunpack.c.l.s4 1934713408
        %v1523 = vunpack.c.0.s8 %v1522
        %v1524 = vperm.slane %v1516, %v1523
        %v1525 = vrot.slane %v1508, 4
        %v1526 = vsel %vm645, %v1525, %v1484
        %v1527 = vrot.slane %v1484, 4
        %v1528 = vsel %vm645, %v1508, %v1527
        %v1529 = vrot.slane %v1512, 4
        %v1530 = vsel %vm645, %v1529, %v1488
        %v1531 = vrot.slane %v1488, 4
        %v1532 = vsel %vm645, %v1512, %v1531
        %v1533 = vrot.slane %v1520, 4
        %v1534 = vsel %vm645, %v1533, %v1496
        %v1535 = vrot.slane %v1496, 4
        %v1536 = vsel %vm645, %v1520, %v1535
        %v1537 = vrot.slane %v1524, 4
        %v1538 = vsel %vm645, %v1537, %v1500
        %v1539 = vrot.slane %v1500, 4
        %v1540 = vsel %vm645, %v1524, %v1539
        %v1541 = vld [vmem:[%s2] sm:$0xff]
        %v1542 = vld [vmem:[%s2 + $0x8] sm:$0xff]
        %vm1543 = vcmask 130048
        %v1545 = vsel %vm1543, %v966, 0
        %v1548 = vsel %vm1543, %v968, 0
        %v1551 = vsel %vm1543, %v970, 0
        %v1554 = vsel %vm1543, %v972, 0
        %v1557 = vsel %vm1543, %v974, 0
        %v1560 = vsel %vm1543, %v976, 0
        %v1563 = vsel %vm1543, %v978, 0
        %v1566 = vsel %vm1543, %v980, 0
        %v1569 = vsel %vm1543, %v1078, 0
        %v1572 = vsel %vm1543, %v1080, 0
        %v1575 = vsel %vm1543, %v1082, 0
        %v1578 = vsel %vm1543, %v1084, 0
        %v1581 = vsel %vm1543, %v1086, 0
        %v1584 = vsel %vm1543, %v1088, 0
        %v1587 = vsel %vm1543, %v1090, 0
        %v1590 = vsel %vm1543, %v1092, 0
        %1592 = vmatpush.msra.mxu0 0.0
        %1593 = vmatpush.msra.mxu0 0.0
        %1594 = vmatpush.msra.mxu0 0.0
        %1595 = vmatpush.msra.mxu0 0.0
        %1596 = vmatpush.msra.mxu0 0.0
        %1597 = vmatpush.msra.mxu0 0.0
        %1598 = vmatpush.msra.mxu0 0.0
        %1599 = vmatpush.msra.mxu0 0.0
        %1600 = vmatpush.msra.mxu0 0.0
        %1601 = vmatpush.msra.mxu0 0.0
        %1602 = vmatpush.msra.mxu0 0.0
        %1603 = vmatpush.msra.mxu0 0.0
        %1604 = vmatpush.msra.mxu0 0.0
        %1605 = vmatpush.msra.mxu0 0.0
        %1606 = vmatpush.msra.mxu0 %v1542
        %1607 = vmatpush.msra.mxu0 %v1541
        %1608 = vmatmul.f32.gmra.mxu0 %v1545
        %v1609 = vpop.f32.mrf.mxu0
        %v1610 = vadd.f32 0.0, %v1609
        %1611 = vmatmul.f32.gmra.mxu0 %v1548
        %v1612 = vpop.f32.mrf.mxu0
        %v1613 = vadd.f32 0.0, %v1612
        %1614 = vmatmul.f32.gmra.mxu0 %v1551
        %v1615 = vpop.f32.mrf.mxu0
        %v1616 = vadd.f32 0.0, %v1615
        %1617 = vmatmul.f32.gmra.mxu0 %v1554
        %v1618 = vpop.f32.mrf.mxu0
        %v1619 = vadd.f32 0.0, %v1618
        %1620 = vmatmul.f32.gmra.mxu0 %v1557
        %v1621 = vpop.f32.mrf.mxu0
        %v1622 = vadd.f32 0.0, %v1621
        %1623 = vmatmul.f32.gmra.mxu0 %v1560
        %v1624 = vpop.f32.mrf.mxu0
        %v1625 = vadd.f32 0.0, %v1624
        %1626 = vmatmul.f32.gmra.mxu0 %v1563
        %v1627 = vpop.f32.mrf.mxu0
        %v1628 = vadd.f32 0.0, %v1627
        %1629 = vmatmul.f32.gmra.mxu0 %v1566
        %v1630 = vpop.f32.mrf.mxu0
        %v1631 = vadd.f32 0.0, %v1630
        %1632 = vmatmul.f32.gmra.mxu0 %v1569
        %v1633 = vpop.f32.mrf.mxu0
        %v1634 = vadd.f32 0.0, %v1633
        %1635 = vmatmul.f32.gmra.mxu0 %v1572
        %v1636 = vpop.f32.mrf.mxu0
        %v1637 = vadd.f32 0.0, %v1636
        %1638 = vmatmul.f32.gmra.mxu0 %v1575
        %v1639 = vpop.f32.mrf.mxu0
        %v1640 = vadd.f32 0.0, %v1639
        %1641 = vmatmul.f32.gmra.mxu0 %v1578
        %v1642 = vpop.f32.mrf.mxu0
        %v1643 = vadd.f32 0.0, %v1642
        %1644 = vmatmul.f32.gmra.mxu0 %v1581
        %v1645 = vpop.f32.mrf.mxu0
        %v1646 = vadd.f32 0.0, %v1645
        %1647 = vmatmul.f32.gmra.mxu0 %v1584
        %v1648 = vpop.f32.mrf.mxu0
        %v1649 = vadd.f32 0.0, %v1648
        %1650 = vmatmul.f32.gmra.mxu0 %v1587
        %v1651 = vpop.f32.mrf.mxu0
        %v1652 = vadd.f32 0.0, %v1651
        %1653 = vmatmul.f32.gmra.mxu0 %v1590
        %v1654 = vpop.f32.mrf.mxu0
        %v1655 = vadd.f32 0.0, %v1654
        %1656 = vdwg.mxu0
        %v1657 = vadd.f32 %v742, %v1610
        %v1658 = vadd.f32 %v744, %v1613
        %v1659 = vadd.f32 %v746, %v1616
        %v1660 = vadd.f32 %v748, %v1619
        %v1661 = vadd.f32 %v750, %v1622
        %v1662 = vadd.f32 %v752, %v1625
        %v1663 = vadd.f32 %v754, %v1628
        %v1664 = vadd.f32 %v756, %v1631
        %v1665 = vadd.f32 %v854, %v1634
        %v1666 = vadd.f32 %v856, %v1637
        %v1667 = vadd.f32 %v858, %v1640
        %v1668 = vadd.f32 %v860, %v1643
        %v1669 = vadd.f32 %v862, %v1646
        %v1670 = vadd.f32 %v864, %v1649
        %v1671 = vadd.f32 %v866, %v1652
        %v1672 = vadd.f32 %v868, %v1655
        %s1673 = scalar_lea.vmem %s2, 16
        %v1674 = vld [vmem:[%s1673] sm:$0xff]
        %v1675 = vld [vmem:[%s1673 + $0x8] sm:$0xff]
        %v1677 = vsel %vm1543, %v1190, 0
        %v1680 = vsel %vm1543, %v1192, 0
        %v1683 = vsel %vm1543, %v1194, 0
        %v1686 = vsel %vm1543, %v1196, 0
        %v1689 = vsel %vm1543, %v1198, 0
        %v1692 = vsel %vm1543, %v1200, 0
        %v1695 = vsel %vm1543, %v1202, 0
        %v1698 = vsel %vm1543, %v1204, 0
        %v1701 = vsel %vm1543, %v1302, 0
        %v1704 = vsel %vm1543, %v1304, 0
        %v1707 = vsel %vm1543, %v1306, 0
        %v1710 = vsel %vm1543, %v1308, 0
        %v1713 = vsel %vm1543, %v1310, 0
        %v1716 = vsel %vm1543, %v1312, 0
        %v1719 = vsel %vm1543, %v1314, 0
        %v1722 = vsel %vm1543, %v1316, 0
        %1724 = vmatpush.msra.mxu0 0.0
        %1725 = vmatpush.msra.mxu0 0.0
        %1726 = vmatpush.msra.mxu0 0.0
        %1727 = vmatpush.msra.mxu0 0.0
        %1728 = vmatpush.msra.mxu0 0.0
        %1729 = vmatpush.msra.mxu0 0.0
        %1730 = vmatpush.msra.mxu0 0.0
        %1731 = vmatpush.msra.mxu0 0.0
        %1732 = vmatpush.msra.mxu0 0.0
        %1733 = vmatpush.msra.mxu0 0.0
        %1734 = vmatpush.msra.mxu0 0.0
        %1735 = vmatpush.msra.mxu0 0.0
        %1736 = vmatpush.msra.mxu0 0.0
        %1737 = vmatpush.msra.mxu0 0.0
        %1738 = vmatpush.msra.mxu0 %v1675
        %1739 = vmatpush.msra.mxu0 %v1674
        %1740 = vmatmul.f32.gmra.mxu0 %v1677
        %v1741 = vpop.f32.mrf.mxu0
        %v1742 = vadd.f32 0.0, %v1741
        %1743 = vmatmul.f32.gmra.mxu0 %v1680
        %v1744 = vpop.f32.mrf.mxu0
        %v1745 = vadd.f32 0.0, %v1744
        %1746 = vmatmul.f32.gmra.mxu0 %v1683
        %v1747 = vpop.f32.mrf.mxu0
        %v1748 = vadd.f32 0.0, %v1747
        %1749 = vmatmul.f32.gmra.mxu0 %v1686
        %v1750 = vpop.f32.mrf.mxu0
        %v1751 = vadd.f32 0.0, %v1750
        %1752 = vmatmul.f32.gmra.mxu0 %v1689
        %v1753 = vpop.f32.mrf.mxu0
        %v1754 = vadd.f32 0.0, %v1753
        %1755 = vmatmul.f32.gmra.mxu0 %v1692
        %v1756 = vpop.f32.mrf.mxu0
        %v1757 = vadd.f32 0.0, %v1756
        %1758 = vmatmul.f32.gmra.mxu0 %v1695
        %v1759 = vpop.f32.mrf.mxu0
        %v1760 = vadd.f32 0.0, %v1759
        %1761 = vmatmul.f32.gmra.mxu0 %v1698
        %v1762 = vpop.f32.mrf.mxu0
        %v1763 = vadd.f32 0.0, %v1762
        %1764 = vmatmul.f32.gmra.mxu0 %v1701
        %v1765 = vpop.f32.mrf.mxu0
        %v1766 = vadd.f32 0.0, %v1765
        %1767 = vmatmul.f32.gmra.mxu0 %v1704
        %v1768 = vpop.f32.mrf.mxu0
        %v1769 = vadd.f32 0.0, %v1768
        %1770 = vmatmul.f32.gmra.mxu0 %v1707
        %v1771 = vpop.f32.mrf.mxu0
        %v1772 = vadd.f32 0.0, %v1771
        %1773 = vmatmul.f32.gmra.mxu0 %v1710
        %v1774 = vpop.f32.mrf.mxu0
        %v1775 = vadd.f32 0.0, %v1774
        %1776 = vmatmul.f32.gmra.mxu0 %v1713
        %v1777 = vpop.f32.mrf.mxu0
        %v1778 = vadd.f32 0.0, %v1777
        %1779 = vmatmul.f32.gmra.mxu0 %v1716
        %v1780 = vpop.f32.mrf.mxu0
        %v1781 = vadd.f32 0.0, %v1780
        %1782 = vmatmul.f32.gmra.mxu0 %v1719
        %v1783 = vpop.f32.mrf.mxu0
        %v1784 = vadd.f32 0.0, %v1783
        %1785 = vmatmul.f32.gmra.mxu0 %v1722
        %v1786 = vpop.f32.mrf.mxu0
        %v1787 = vadd.f32 0.0, %v1786
        %1788 = vdwg.mxu0
        %v1789 = vadd.f32 %v1657, %v1742
        %v1790 = vadd.f32 %v1658, %v1745
        %v1791 = vadd.f32 %v1659, %v1748
        %v1792 = vadd.f32 %v1660, %v1751
        %v1793 = vadd.f32 %v1661, %v1754
        %v1794 = vadd.f32 %v1662, %v1757
        %v1795 = vadd.f32 %v1663, %v1760
        %v1796 = vadd.f32 %v1664, %v1763
        %v1797 = vadd.f32 %v1665, %v1766
        %v1798 = vadd.f32 %v1666, %v1769
        %v1799 = vadd.f32 %v1667, %v1772
        %v1800 = vadd.f32 %v1668, %v1775
        %v1801 = vadd.f32 %v1669, %v1778
        %v1802 = vadd.f32 %v1670, %v1781
        %v1803 = vadd.f32 %v1671, %v1784
        %v1804 = vadd.f32 %v1672, %v1787
        %s1805 = scalar_lea.vmem %s2, 32
        %v1806 = vld [vmem:[%s1805] sm:$0xff]
        %v1807 = vld [vmem:[%s1805 + $0x8] sm:$0xff]
        %v1809 = vsel %vm1543, %v1414, 0
        %v1812 = vsel %vm1543, %v1416, 0
        %v1815 = vsel %vm1543, %v1418, 0
        %v1818 = vsel %vm1543, %v1420, 0
        %v1821 = vsel %vm1543, %v1422, 0
        %v1824 = vsel %vm1543, %v1424, 0
        %v1827 = vsel %vm1543, %v1426, 0
        %v1830 = vsel %vm1543, %v1428, 0
        %v1833 = vsel %vm1543, %v1526, 0
        %v1836 = vsel %vm1543, %v1528, 0
        %v1839 = vsel %vm1543, %v1530, 0
        %v1842 = vsel %vm1543, %v1532, 0
        %v1845 = vsel %vm1543, %v1534, 0
        %v1848 = vsel %vm1543, %v1536, 0
        %v1851 = vsel %vm1543, %v1538, 0
        %v1854 = vsel %vm1543, %v1540, 0
        %1856 = vmatpush.msra.mxu0 0.0
        %1857 = vmatpush.msra.mxu0 0.0
        %1858 = vmatpush.msra.mxu0 0.0
        %1859 = vmatpush.msra.mxu0 0.0
        %1860 = vmatpush.msra.mxu0 0.0
        %1861 = vmatpush.msra.mxu0 0.0
        %1862 = vmatpush.msra.mxu0 0.0
        %1863 = vmatpush.msra.mxu0 0.0
        %1864 = vmatpush.msra.mxu0 0.0
        %1865 = vmatpush.msra.mxu0 0.0
        %1866 = vmatpush.msra.mxu0 0.0
        %1867 = vmatpush.msra.mxu0 0.0
        %1868 = vmatpush.msra.mxu0 0.0
        %1869 = vmatpush.msra.mxu0 0.0
        %1870 = vmatpush.msra.mxu0 %v1807
        %1871 = vmatpush.msra.mxu0 %v1806
        %1872 = vmatmul.f32.gmra.mxu0 %v1809
        %v1873 = vpop.f32.mrf.mxu0
        %v1874 = vadd.f32 0.0, %v1873
        %1875 = vmatmul.f32.gmra.mxu0 %v1812
        %v1876 = vpop.f32.mrf.mxu0
        %v1877 = vadd.f32 0.0, %v1876
        %1878 = vmatmul.f32.gmra.mxu0 %v1815
        %v1879 = vpop.f32.mrf.mxu0
        %v1880 = vadd.f32 0.0, %v1879
        %1881 = vmatmul.f32.gmra.mxu0 %v1818
        %v1882 = vpop.f32.mrf.mxu0
        %v1883 = vadd.f32 0.0, %v1882
        %1884 = vmatmul.f32.gmra.mxu0 %v1821
        %v1885 = vpop.f32.mrf.mxu0
        %v1886 = vadd.f32 0.0, %v1885
        %1887 = vmatmul.f32.gmra.mxu0 %v1824
        %v1888 = vpop.f32.mrf.mxu0
        %v1889 = vadd.f32 0.0, %v1888
        %1890 = vmatmul.f32.gmra.mxu0 %v1827
        %v1891 = vpop.f32.mrf.mxu0
        %v1892 = vadd.f32 0.0, %v1891
        %1893 = vmatmul.f32.gmra.mxu0 %v1830
        %v1894 = vpop.f32.mrf.mxu0
        %v1895 = vadd.f32 0.0, %v1894
        %1896 = vmatmul.f32.gmra.mxu0 %v1833
        %v1897 = vpop.f32.mrf.mxu0
        %v1898 = vadd.f32 0.0, %v1897
        %1899 = vmatmul.f32.gmra.mxu0 %v1836
        %v1900 = vpop.f32.mrf.mxu0
        %v1901 = vadd.f32 0.0, %v1900
        %1902 = vmatmul.f32.gmra.mxu0 %v1839
        %v1903 = vpop.f32.mrf.mxu0
        %v1904 = vadd.f32 0.0, %v1903
        %1905 = vmatmul.f32.gmra.mxu0 %v1842
        %v1906 = vpop.f32.mrf.mxu0
        %v1907 = vadd.f32 0.0, %v1906
        %1908 = vmatmul.f32.gmra.mxu0 %v1845
        %v1909 = vpop.f32.mrf.mxu0
        %v1910 = vadd.f32 0.0, %v1909
        %1911 = vmatmul.f32.gmra.mxu0 %v1848
        %v1912 = vpop.f32.mrf.mxu0
        %v1913 = vadd.f32 0.0, %v1912
        %1914 = vmatmul.f32.gmra.mxu0 %v1851
        %v1915 = vpop.f32.mrf.mxu0
        %v1916 = vadd.f32 0.0, %v1915
        %1917 = vmatmul.f32.gmra.mxu0 %v1854
        %v1918 = vpop.f32.mrf.mxu0
        %v1919 = vadd.f32 0.0, %v1918
        %1920 = vdwg.mxu0
        %v1921 = vadd.f32 %v1789, %v1874
        %v1922 = vadd.f32 %v1790, %v1877
        %v1923 = vadd.f32 %v1791, %v1880
        %v1924 = vadd.f32 %v1792, %v1883
        %v1925 = vadd.f32 %v1793, %v1886
        %v1926 = vadd.f32 %v1794, %v1889
        %v1927 = vadd.f32 %v1795, %v1892
        %v1928 = vadd.f32 %v1796, %v1895
        %v1929 = vadd.f32 %v1797, %v1898
        %v1930 = vadd.f32 %v1798, %v1901
        %v1931 = vadd.f32 %v1799, %v1904
        %v1932 = vadd.f32 %v1800, %v1907
        %v1933 = vadd.f32 %v1801, %v1910
        %v1934 = vadd.f32 %v1802, %v1913
        %v1935 = vadd.f32 %v1803, %v1916
        %v1936 = vadd.f32 %v1804, %v1919
        %v1937 = vld [vmem:[%s3] sm:$0xff]
        %v1938 = vld [vmem:[%s3 + $0x8] sm:$0xff]
        %v1939 = vld [vmem:[%s3 + $0x10] sm:$0xff]
        %v1940 = vld [vmem:[%s3 + $0x18] sm:$0xff]
        %v1941 = vld [vmem:[%s3 + $0x20] sm:$0xff]
        %v1942 = vld [vmem:[%s3 + $0x28] sm:$0xff]
        %v1943 = vld [vmem:[%s4] sm:$0xff]
        %v1944 = vld [vmem:[%s4 + $0x8] sm:$0xff]
        %v1945 = vld [vmem:[%s4 + $0x10] sm:$0xff]
        %v1946 = vld [vmem:[%s4 + $0x18] sm:$0xff]
        %v1947 = vld [vmem:[%s4 + $0x20] sm:$0xff]
        %v1948 = vld [vmem:[%s4 + $0x28] sm:$0xff]
        %v1949 = vld [vmem:[%s7] sm:$0xff]
        %v1950 = vld [vmem:[%s7 + $0x8] sm:$0xff]
        %s1951 = scalar_lea.vmem %s7, 16
        %v1952 = vld [vmem:[%s1951] sm:$0xff]
        %v1953 = vld [vmem:[%s1951 + $0x8] sm:$0xff]
        %s1954 = scalar_lea.vmem %s7, 32
        %v1955 = vld [vmem:[%s1954] sm:$0xff]
        %v1956 = vld [vmem:[%s1954 + $0x8] sm:$0xff]
        %v1957 = vld [vmem:[%s8] sm:$0xff]
        %v1958 = vld [vmem:[%s8 + $0x8] sm:$0xff]
        %s1959 = scalar_lea.vmem %s8, 16
        %v1960 = vld [vmem:[%s1959] sm:$0xff]
        %v1961 = vld [vmem:[%s1959 + $0x8] sm:$0xff]
        %s1962 = scalar_lea.vmem %s8, 32
        %v1963 = vld [vmem:[%s1962] sm:$0xff]
        %v1964 = vld [vmem:[%s1962 + $0x8] sm:$0xff]
        %v1965 = vld [vmem:[%s340] sm:$0x7]
        %1967 = vset.pattern.permute.xlu0 0
        %1968 = vperm.xlu0 %1967, %v1943
        %v1969 = vpop.permute.xlu0 %1968
        %1972 = vset.pattern.permute.xlu0 0
        %1973 = vperm.xlu0 %1972, %v1944
        %v1974 = vpop.permute.xlu0 %1973
        %1977 = vset.pattern.permute.xlu0 0
        %1978 = vperm.xlu0 %1977, %v1945
        %v1979 = vpop.permute.xlu0 %1978
        %1982 = vset.pattern.permute.xlu0 0
        %1983 = vperm.xlu0 %1982, %v1946
        %v1984 = vpop.permute.xlu0 %1983
        %1987 = vset.pattern.permute.xlu0 0
        %1988 = vperm.xlu0 %1987, %v1947
        %v1989 = vpop.permute.xlu0 %1988
        %1992 = vset.pattern.permute.xlu0 0
        %1993 = vperm.xlu0 %1992, %v1948
        %v1994 = vpop.permute.xlu0 %1993
        %v1997 = vsel %vm419, %v1937, 0
        %v2000 = vsel %vm419, %v1938, 0
        %v2003 = vsel %vm419, %v1939, 0
        %v2006 = vsel %vm419, %v1940, 0
        %v2009 = vsel %vm419, %v1941, 0
        %v2012 = vsel %vm419, %v1942, 0
        %vm2014 = vcmask 1042432
        %v2016 = vsel %vm2014, %v1965, 0
        %2018 = vmatpush.msra.mxu0 0.0
        %2019 = vmatpush.msra.mxu0 0.0
        %2020 = vmatpush.msra.mxu0 0.0
        %2021 = vmatpush.msra.mxu0 0.0
        %2022 = vmatpush.msra.mxu0 0.0
        %2023 = vmatpush.msra.mxu0 0.0
        %2024 = vmatpush.msra.mxu0 0.0
        %2025 = vmatpush.msra.mxu0 0.0
        %2026 = vmatpush.msra.mxu0 0.0
        %2027 = vmatpush.msra.mxu0 0.0
        %2028 = vmatpush.msra.mxu0 0.0
        %2029 = vmatpush.msra.mxu0 0.0
        %2030 = vmatpush.msra.mxu0 0.0
        %2031 = vmatpush.msra.mxu0 0.0
        %2032 = vmatpush.msra.mxu0 0.0
        %2033 = vmatpush.msra.mxu0 %v2016
        %2034 = vmatmul.f32.gmra.mxu0 %v1997
        %v2035 = vpop.f32.mrf.mxu0
        %v2036 = vadd.f32 %v1969, %v2035
        %2037 = vmatmul.f32.gmra.mxu0 %v2000
        %v2038 = vpop.f32.mrf.mxu0
        %v2039 = vadd.f32 %v1974, %v2038
        %2040 = vmatmul.f32.gmra.mxu0 %v2003
        %v2041 = vpop.f32.mrf.mxu0
        %v2042 = vadd.f32 %v1979, %v2041
        %2043 = vmatmul.f32.gmra.mxu0 %v2006
        %v2044 = vpop.f32.mrf.mxu0
        %v2045 = vadd.f32 %v1984, %v2044
        %2046 = vmatmul.f32.gmra.mxu0 %v2009
        %v2047 = vpop.f32.mrf.mxu0
        %v2048 = vadd.f32 %v1989, %v2047
        %2049 = vmatmul.f32.gmra.mxu0 %v2012
        %v2050 = vpop.f32.mrf.mxu0
        %v2051 = vadd.f32 %v1994, %v2050
        %2052 = vdwg.mxu0
        %v2054 = vrot.slane %v2036, 1
        %v2055 = vrot.slane %v2036, 2
        %v2056 = vrot.slane %v2036, 3
        %v2057 = vrot.slane %v2036, 4
        %v2058 = vrot.slane %v2036, 5
        %v2059 = vrot.slane %v2036, 6
        %v2060 = vrot.slane %v2036, 7
        %v2061 = vperm.slane %v2045, 0
        %v2062 = vlaneseq
        %v2063 = vshrl.u32 %v2062, 7
        %2065 = vset.pattern.permute.xlu0 %v2063
        %2066 = vperm.xlu0 %2065, %v2061
        %v2067 = vpop.permute.xlu0 %2066
        %v2068 = vlaneseq
        %v2069 = vshrl.u32 %v2068, 7
        %v2070 = vadd.s32 %v2069, 8
        %2071 = vset.pattern.permute.xlu0 %v2070
        %2072 = vperm.xlu0 %2071, %v2061
        %v2073 = vpop.permute.xlu0 %2072
        %v2074 = vperm.slane %v2045, 1
        %v2075 = vlaneseq
        %v2076 = vshrl.u32 %v2075, 7
        %2078 = vset.pattern.permute.xlu0 %v2076
        %2079 = vperm.xlu0 %2078, %v2074
        %v2080 = vpop.permute.xlu0 %2079
        %v2081 = vlaneseq
        %v2082 = vshrl.u32 %v2081, 7
        %v2083 = vadd.s32 %v2082, 8
        %2084 = vset.pattern.permute.xlu0 %v2083
        %2085 = vperm.xlu0 %2084, %v2074
        %v2086 = vpop.permute.xlu0 %2085
        %v2087 = vperm.slane %v2045, 2
        %v2088 = vlaneseq
        %v2089 = vshrl.u32 %v2088, 7
        %2091 = vset.pattern.permute.xlu0 %v2089
        %2092 = vperm.xlu0 %2091, %v2087
        %v2093 = vpop.permute.xlu0 %2092
        %v2094 = vlaneseq
        %v2095 = vshrl.u32 %v2094, 7
        %v2096 = vadd.s32 %v2095, 8
        %2097 = vset.pattern.permute.xlu0 %v2096
        %2098 = vperm.xlu0 %2097, %v2087
        %v2099 = vpop.permute.xlu0 %2098
        %v2100 = vperm.slane %v2045, 3
        %v2101 = vlaneseq
        %v2102 = vshrl.u32 %v2101, 7
        %2104 = vset.pattern.permute.xlu0 %v2102
        %2105 = vperm.xlu0 %2104, %v2100
        %v2106 = vpop.permute.xlu0 %2105
        %v2107 = vlaneseq
        %v2108 = vshrl.u32 %v2107, 7
        %v2109 = vadd.s32 %v2108, 8
        %2110 = vset.pattern.permute.xlu0 %v2109
        %2111 = vperm.xlu0 %2110, %v2100
        %v2112 = vpop.permute.xlu0 %2111
        %v2113 = vperm.slane %v2045, 4
        %v2114 = vlaneseq
        %v2115 = vshrl.u32 %v2114, 7
        %2117 = vset.pattern.permute.xlu0 %v2115
        %2118 = vperm.xlu0 %2117, %v2113
        %v2119 = vpop.permute.xlu0 %2118
        %v2120 = vlaneseq
        %v2121 = vshrl.u32 %v2120, 7
        %v2122 = vadd.s32 %v2121, 8
        %2123 = vset.pattern.permute.xlu0 %v2122
        %2124 = vperm.xlu0 %2123, %v2113
        %v2125 = vpop.permute.xlu0 %2124
        %v2126 = vperm.slane %v2045, 5
        %v2127 = vlaneseq
        %v2128 = vshrl.u32 %v2127, 7
        %2130 = vset.pattern.permute.xlu0 %v2128
        %2131 = vperm.xlu0 %2130, %v2126
        %v2132 = vpop.permute.xlu0 %2131
        %v2133 = vlaneseq
        %v2134 = vshrl.u32 %v2133, 7
        %v2135 = vadd.s32 %v2134, 8
        %2136 = vset.pattern.permute.xlu0 %v2135
        %2137 = vperm.xlu0 %2136, %v2126
        %v2138 = vpop.permute.xlu0 %2137
        %v2139 = vperm.slane %v2045, 6
        %v2140 = vlaneseq
        %v2141 = vshrl.u32 %v2140, 7
        %2143 = vset.pattern.permute.xlu0 %v2141
        %2144 = vperm.xlu0 %2143, %v2139
        %v2145 = vpop.permute.xlu0 %2144
        %v2146 = vlaneseq
        %v2147 = vshrl.u32 %v2146, 7
        %v2148 = vadd.s32 %v2147, 8
        %2149 = vset.pattern.permute.xlu0 %v2148
        %2150 = vperm.xlu0 %2149, %v2139
        %v2151 = vpop.permute.xlu0 %2150
        %v2152 = vperm.slane %v2045, 7
        %v2153 = vlaneseq
        %v2154 = vshrl.u32 %v2153, 7
        %2156 = vset.pattern.permute.xlu0 %v2154
        %2157 = vperm.xlu0 %2156, %v2152
        %v2158 = vpop.permute.xlu0 %2157
        %v2159 = vlaneseq
        %v2160 = vshrl.u32 %v2159, 7
        %v2161 = vadd.s32 %v2160, 8
        %2162 = vset.pattern.permute.xlu0 %v2161
        %2163 = vperm.xlu0 %2162, %v2152
        %v2164 = vpop.permute.xlu0 %2163
        %v2165 = vperm.slane %v2036, 0
        %v2166 = vperm.slane %v2054, 0
        %v2167 = vperm.slane %v2055, 0
        %v2168 = vperm.slane %v2056, 0
        %v2169 = vperm.slane %v2057, 0
        %v2170 = vperm.slane %v2058, 0
        %v2171 = vperm.slane %v2059, 0
        %v2172 = vperm.slane %v2060, 0
        %v2181 = vsub.f32 %v2165, %v2067
        %v2182 = vsub.f32 %v2165, %v2073
        %v2183 = vsub.f32 %v2166, %v2080
        %v2184 = vsub.f32 %v2166, %v2086
        %v2185 = vsub.f32 %v2167, %v2093
        %v2186 = vsub.f32 %v2167, %v2099
        %v2187 = vsub.f32 %v2168, %v2106
        %v2188 = vsub.f32 %v2168, %v2112
        %v2189 = vsub.f32 %v2169, %v2119
        %v2190 = vsub.f32 %v2169, %v2125
        %v2191 = vsub.f32 %v2170, %v2132
        %v2192 = vsub.f32 %v2170, %v2138
        %v2193 = vsub.f32 %v2171, %v2145
        %v2194 = vsub.f32 %v2171, %v2151
        %v2195 = vsub.f32 %v2172, %v2158
        %v2196 = vsub.f32 %v2172, %v2164
        %v2197 = vtanh.pop %v2181
        %v2198 = vtanh.pop %v2182
        %v2199 = vtanh.pop %v2183
        %v2200 = vtanh.pop %v2184
        %v2201 = vtanh.pop %v2185
        %v2202 = vtanh.pop %v2186
        %v2203 = vtanh.pop %v2187
        %v2204 = vtanh.pop %v2188
        %v2205 = vtanh.pop %v2189
        %v2206 = vtanh.pop %v2190
        %v2207 = vtanh.pop %v2191
        %v2208 = vtanh.pop %v2192
        %v2209 = vtanh.pop %v2193
        %v2210 = vtanh.pop %v2194
        %v2211 = vtanh.pop %v2195
        %v2212 = vtanh.pop %v2196
        %v2213 = vrot.slane %v2201, 4
        %v2214 = vsel %vm645, %v2213, %v2197
        %v2215 = vrot.slane %v2197, 4
        %v2216 = vsel %vm645, %v2201, %v2215
        %v2218 = vunpack.c.l.s4 1983009808
        %v2219 = vunpack.c.0.s8 %v2218
        %v2220 = vperm.slane %v2214, %v2219
        %v2222 = vunpack.c.l.s4 1983009808
        %v2223 = vunpack.c.0.s8 %v2222
        %v2224 = vperm.slane %v2216, %v2223
        %v2225 = vrot.slane %v2203, 4
        %v2226 = vsel %vm645, %v2225, %v2199
        %v2227 = vrot.slane %v2199, 4
        %v2228 = vsel %vm645, %v2203, %v2227
        %v2230 = vunpack.c.l.s4 1983009808
        %v2231 = vunpack.c.0.s8 %v2230
        %v2232 = vperm.slane %v2226, %v2231
        %v2234 = vunpack.c.l.s4 1983009808
        %v2235 = vunpack.c.0.s8 %v2234
        %v2236 = vperm.slane %v2228, %v2235
        %v2237 = vrot.slane %v2209, 4
        %v2238 = vsel %vm645, %v2237, %v2205
        %v2239 = vrot.slane %v2205, 4
        %v2240 = vsel %vm645, %v2209, %v2239
        %v2242 = vunpack.c.l.s4 1983009808
        %v2243 = vunpack.c.0.s8 %v2242
        %v2244 = vperm.slane %v2238, %v2243
        %v2246 = vunpack.c.l.s4 1983009808
        %v2247 = vunpack.c.0.s8 %v2246
        %v2248 = vperm.slane %v2240, %v2247
        %v2249 = vrot.slane %v2211, 4
        %v2250 = vsel %vm645, %v2249, %v2207
        %v2251 = vrot.slane %v2207, 4
        %v2252 = vsel %vm645, %v2211, %v2251
        %v2254 = vunpack.c.l.s4 1983009808
        %v2255 = vunpack.c.0.s8 %v2254
        %v2256 = vperm.slane %v2250, %v2255
        %v2258 = vunpack.c.l.s4 1983009808
        %v2259 = vunpack.c.0.s8 %v2258
        %v2260 = vperm.slane %v2252, %v2259
        %v2261 = vrot.slane %v2232, 4
        %v2262 = vsel %vm645, %v2261, %v2220
        %v2263 = vrot.slane %v2220, 4
        %v2264 = vsel %vm645, %v2232, %v2263
        %v2266 = vunpack.c.l.s4 1934713408
        %v2267 = vunpack.c.0.s8 %v2266
        %v2268 = vperm.slane %v2262, %v2267
        %v2270 = vunpack.c.l.s4 1934713408
        %v2271 = vunpack.c.0.s8 %v2270
        %v2272 = vperm.slane %v2264, %v2271
        %v2273 = vrot.slane %v2236, 4
        %v2274 = vsel %vm645, %v2273, %v2224
        %v2275 = vrot.slane %v2224, 4
        %v2276 = vsel %vm645, %v2236, %v2275
        %v2278 = vunpack.c.l.s4 1934713408
        %v2279 = vunpack.c.0.s8 %v2278
        %v2280 = vperm.slane %v2274, %v2279
        %v2282 = vunpack.c.l.s4 1934713408
        %v2283 = vunpack.c.0.s8 %v2282
        %v2284 = vperm.slane %v2276, %v2283
        %v2285 = vrot.slane %v2256, 4
        %v2286 = vsel %vm645, %v2285, %v2244
        %v2287 = vrot.slane %v2244, 4
        %v2288 = vsel %vm645, %v2256, %v2287
        %v2290 = vunpack.c.l.s4 1934713408
        %v2291 = vunpack.c.0.s8 %v2290
        %v2292 = vperm.slane %v2286, %v2291
        %v2294 = vunpack.c.l.s4 1934713408
        %v2295 = vunpack.c.0.s8 %v2294
        %v2296 = vperm.slane %v2288, %v2295
        %v2297 = vrot.slane %v2260, 4
        %v2298 = vsel %vm645, %v2297, %v2248
        %v2299 = vrot.slane %v2248, 4
        %v2300 = vsel %vm645, %v2260, %v2299
        %v2302 = vunpack.c.l.s4 1934713408
        %v2303 = vunpack.c.0.s8 %v2302
        %v2304 = vperm.slane %v2298, %v2303
        %v2306 = vunpack.c.l.s4 1934713408
        %v2307 = vunpack.c.0.s8 %v2306
        %v2308 = vperm.slane %v2300, %v2307
        %v2309 = vrot.slane %v2292, 4
        %v2310 = vsel %vm645, %v2309, %v2268
        %v2311 = vrot.slane %v2268, 4
        %v2312 = vsel %vm645, %v2292, %v2311
        %v2313 = vrot.slane %v2296, 4
        %v2314 = vsel %vm645, %v2313, %v2272
        %v2315 = vrot.slane %v2272, 4
        %v2316 = vsel %vm645, %v2296, %v2315
        %v2317 = vrot.slane %v2304, 4
        %v2318 = vsel %vm645, %v2317, %v2280
        %v2319 = vrot.slane %v2280, 4
        %v2320 = vsel %vm645, %v2304, %v2319
        %v2321 = vrot.slane %v2308, 4
        %v2322 = vsel %vm645, %v2321, %v2284
        %v2323 = vrot.slane %v2284, 4
        %v2324 = vsel %vm645, %v2308, %v2323
        %v2325 = vrot.slane %v2202, 4
        %v2326 = vsel %vm645, %v2325, %v2198
        %v2327 = vrot.slane %v2198, 4
        %v2328 = vsel %vm645, %v2202, %v2327
        %v2330 = vunpack.c.l.s4 1983009808
        %v2331 = vunpack.c.0.s8 %v2330
        %v2332 = vperm.slane %v2326, %v2331
        %v2334 = vunpack.c.l.s4 1983009808
        %v2335 = vunpack.c.0.s8 %v2334
        %v2336 = vperm.slane %v2328, %v2335
        %v2337 = vrot.slane %v2204, 4
        %v2338 = vsel %vm645, %v2337, %v2200
        %v2339 = vrot.slane %v2200, 4
        %v2340 = vsel %vm645, %v2204, %v2339
        %v2342 = vunpack.c.l.s4 1983009808
        %v2343 = vunpack.c.0.s8 %v2342
        %v2344 = vperm.slane %v2338, %v2343
        %v2346 = vunpack.c.l.s4 1983009808
        %v2347 = vunpack.c.0.s8 %v2346
        %v2348 = vperm.slane %v2340, %v2347
        %v2349 = vrot.slane %v2210, 4
        %v2350 = vsel %vm645, %v2349, %v2206
        %v2351 = vrot.slane %v2206, 4
        %v2352 = vsel %vm645, %v2210, %v2351
        %v2354 = vunpack.c.l.s4 1983009808
        %v2355 = vunpack.c.0.s8 %v2354
        %v2356 = vperm.slane %v2350, %v2355
        %v2358 = vunpack.c.l.s4 1983009808
        %v2359 = vunpack.c.0.s8 %v2358
        %v2360 = vperm.slane %v2352, %v2359
        %v2361 = vrot.slane %v2212, 4
        %v2362 = vsel %vm645, %v2361, %v2208
        %v2363 = vrot.slane %v2208, 4
        %v2364 = vsel %vm645, %v2212, %v2363
        %v2366 = vunpack.c.l.s4 1983009808
        %v2367 = vunpack.c.0.s8 %v2366
        %v2368 = vperm.slane %v2362, %v2367
        %v2370 = vunpack.c.l.s4 1983009808
        %v2371 = vunpack.c.0.s8 %v2370
        %v2372 = vperm.slane %v2364, %v2371
        %v2373 = vrot.slane %v2344, 4
        %v2374 = vsel %vm645, %v2373, %v2332
        %v2375 = vrot.slane %v2332, 4
        %v2376 = vsel %vm645, %v2344, %v2375
        %v2378 = vunpack.c.l.s4 1934713408
        %v2379 = vunpack.c.0.s8 %v2378
        %v2380 = vperm.slane %v2374, %v2379
        %v2382 = vunpack.c.l.s4 1934713408
        %v2383 = vunpack.c.0.s8 %v2382
        %v2384 = vperm.slane %v2376, %v2383
        %v2385 = vrot.slane %v2348, 4
        %v2386 = vsel %vm645, %v2385, %v2336
        %v2387 = vrot.slane %v2336, 4
        %v2388 = vsel %vm645, %v2348, %v2387
        %v2390 = vunpack.c.l.s4 1934713408
        %v2391 = vunpack.c.0.s8 %v2390
        %v2392 = vperm.slane %v2386, %v2391
        %v2394 = vunpack.c.l.s4 1934713408
        %v2395 = vunpack.c.0.s8 %v2394
        %v2396 = vperm.slane %v2388, %v2395
        %v2397 = vrot.slane %v2368, 4
        %v2398 = vsel %vm645, %v2397, %v2356
        %v2399 = vrot.slane %v2356, 4
        %v2400 = vsel %vm645, %v2368, %v2399
        %v2402 = vunpack.c.l.s4 1934713408
        %v2403 = vunpack.c.0.s8 %v2402
        %v2404 = vperm.slane %v2398, %v2403
        %v2406 = vunpack.c.l.s4 1934713408
        %v2407 = vunpack.c.0.s8 %v2406
        %v2408 = vperm.slane %v2400, %v2407
        %v2409 = vrot.slane %v2372, 4
        %v2410 = vsel %vm645, %v2409, %v2360
        %v2411 = vrot.slane %v2360, 4
        %v2412 = vsel %vm645, %v2372, %v2411
        %v2414 = vunpack.c.l.s4 1934713408
        %v2415 = vunpack.c.0.s8 %v2414
        %v2416 = vperm.slane %v2410, %v2415
        %v2418 = vunpack.c.l.s4 1934713408
        %v2419 = vunpack.c.0.s8 %v2418
        %v2420 = vperm.slane %v2412, %v2419
        %v2421 = vrot.slane %v2404, 4
        %v2422 = vsel %vm645, %v2421, %v2380
        %v2423 = vrot.slane %v2380, 4
        %v2424 = vsel %vm645, %v2404, %v2423
        %v2425 = vrot.slane %v2408, 4
        %v2426 = vsel %vm645, %v2425, %v2384
        %v2427 = vrot.slane %v2384, 4
        %v2428 = vsel %vm645, %v2408, %v2427
        %v2429 = vrot.slane %v2416, 4
        %v2430 = vsel %vm645, %v2429, %v2392
        %v2431 = vrot.slane %v2392, 4
        %v2432 = vsel %vm645, %v2416, %v2431
        %v2433 = vrot.slane %v2420, 4
        %v2434 = vsel %vm645, %v2433, %v2396
        %v2435 = vrot.slane %v2396, 4
        %v2436 = vsel %vm645, %v2420, %v2435
        %2438 = vrot.lane.b32.xlu0 %v2312, 16
        %v2439 = vpop.permute.xlu0 %2438
        %2442 = vrot.lane.b32.xlu0 %v2314, 32
        %v2443 = vpop.permute.xlu0 %2442
        %2446 = vrot.lane.b32.xlu0 %v2316, 48
        %v2447 = vpop.permute.xlu0 %2446
        %2450 = vrot.lane.b32.xlu0 %v2318, 64
        %v2451 = vpop.permute.xlu0 %2450
        %2454 = vrot.lane.b32.xlu0 %v2320, 80
        %v2455 = vpop.permute.xlu0 %2454
        %2458 = vrot.lane.b32.xlu0 %v2322, 96
        %v2459 = vpop.permute.xlu0 %2458
        %2462 = vrot.lane.b32.xlu0 %v2324, 112
        %v2463 = vpop.permute.xlu0 %2462
        %2466 = vrot.lane.b32.xlu0 %v2424, 16
        %v2467 = vpop.permute.xlu0 %2466
        %2470 = vrot.lane.b32.xlu0 %v2426, 32
        %v2471 = vpop.permute.xlu0 %2470
        %2474 = vrot.lane.b32.xlu0 %v2428, 48
        %v2475 = vpop.permute.xlu0 %2474
        %2478 = vrot.lane.b32.xlu0 %v2430, 64
        %v2479 = vpop.permute.xlu0 %2478
        %2482 = vrot.lane.b32.xlu0 %v2432, 80
        %v2483 = vpop.permute.xlu0 %2482
        %2486 = vrot.lane.b32.xlu0 %v2434, 96
        %v2487 = vpop.permute.xlu0 %2486
        %2490 = vrot.lane.b32.xlu0 %v2436, 112
        %v2491 = vpop.permute.xlu0 %2490
        %v2493 = vsel %vm1543, %v2310, %v2439
        %vm2494 = vcmask 261120
        %v2495 = vsel %vm2494, %v2493, %v2443
        %vm2496 = vcmask 392192
        %v2497 = vsel %vm2496, %v2495, %v2447
        %vm2498 = vcmask 523264
        %v2499 = vsel %vm2498, %v2497, %v2451
        %vm2500 = vcmask 654336
        %v2501 = vsel %vm2500, %v2499, %v2455
        %vm2502 = vcmask 785408
        %v2503 = vsel %vm2502, %v2501, %v2459
        %vm2504 = vcmask 916480
        %v2505 = vsel %vm2504, %v2503, %v2463
        %v2506 = vsel %vm1543, %v2422, %v2467
        %v2507 = vsel %vm2494, %v2506, %v2471
        %v2508 = vsel %vm2496, %v2507, %v2475
        %v2509 = vsel %vm2498, %v2508, %v2479
        %v2510 = vsel %vm2500, %v2509, %v2483
        %v2511 = vsel %vm2502, %v2510, %v2487
        %v2512 = vsel %vm2504, %v2511, %v2491
        %2514 = vset.pattern.permute.xlu0 0
        %2515 = vperm.xlu0 %2514, %v1957
        %v2516 = vpop.permute.xlu0 %2515
        %2519 = vset.pattern.permute.xlu0 0
        %2520 = vperm.xlu0 %2519, %v1958
        %v2521 = vpop.permute.xlu0 %2520
        %vm2523 = vcmask 64512
        %v2525 = vsel %vm2523, %v1949, 0
        %v2528 = vsel %vm2523, %v1950, 0
        %2530 = vmatpush.msra.mxu0 0.0
        %2531 = vmatpush.msra.mxu0 0.0
        %2532 = vmatpush.msra.mxu0 0.0
        %2533 = vmatpush.msra.mxu0 0.0
        %2534 = vmatpush.msra.mxu0 0.0
        %2535 = vmatpush.msra.mxu0 0.0
        %2536 = vmatpush.msra.mxu0 0.0
        %2537 = vmatpush.msra.mxu0 0.0
        %2538 = vmatpush.msra.mxu0 0.0
        %2539 = vmatpush.msra.mxu0 0.0
        %2540 = vmatpush.msra.mxu0 0.0
        %2541 = vmatpush.msra.mxu0 0.0
        %2542 = vmatpush.msra.mxu0 0.0
        %2543 = vmatpush.msra.mxu0 0.0
        %2544 = vmatpush.msra.mxu0 0.0
        %2545 = vmatpush.msra.mxu0 %v2505
        %2546 = vmatmul.f32.gmra.mxu0 %v2525
        %v2547 = vpop.f32.mrf.mxu0
        %v2548 = vadd.f32 %v2516, %v2547
        %2549 = vmatmul.f32.gmra.mxu0 %v2528
        %v2550 = vpop.f32.mrf.mxu0
        %v2551 = vadd.f32 %v2521, %v2550
        %2552 = vdwg.mxu0
        %2553 = vmatpush.msra.mxu0 0.0
        %2554 = vmatpush.msra.mxu0 0.0
        %2555 = vmatpush.msra.mxu0 0.0
        %2556 = vmatpush.msra.mxu0 0.0
        %2557 = vmatpush.msra.mxu0 0.0
        %2558 = vmatpush.msra.mxu0 0.0
        %2559 = vmatpush.msra.mxu0 0.0
        %2560 = vmatpush.msra.mxu0 0.0
        %2561 = vmatpush.msra.mxu0 0.0
        %2562 = vmatpush.msra.mxu0 0.0
        %2563 = vmatpush.msra.mxu0 0.0
        %2564 = vmatpush.msra.mxu0 0.0
        %2565 = vmatpush.msra.mxu0 0.0
        %2566 = vmatpush.msra.mxu0 0.0
        %2567 = vmatpush.msra.mxu0 0.0
        %2568 = vmatpush.msra.mxu0 %v2512
        %2569 = vmatmul.f32.gmra.mxu0 %v2525
        %v2570 = vpop.f32.mrf.mxu0
        %v2571 = vadd.f32 %v2516, %v2570
        %2572 = vmatmul.f32.gmra.mxu0 %v2528
        %v2573 = vpop.f32.mrf.mxu0
        %v2574 = vadd.f32 %v2521, %v2573
        %2575 = vdwg.mxu0
        %2578 = vrot.lane.b32.xlu0 %v2548, 112
        %v2579 = vpop.permute.xlu0 %2578
        %2580 = vrot.lane.b32.xlu0 %v2551, 112
        %v2581 = vpop.permute.xlu0 %2580
        %2584 = vrot.lane.b32.xlu0 %v2548, 96
        %v2585 = vpop.permute.xlu0 %2584
        %2586 = vrot.lane.b32.xlu0 %v2551, 96
        %v2587 = vpop.permute.xlu0 %2586
        %2590 = vrot.lane.b32.xlu0 %v2548, 80
        %v2591 = vpop.permute.xlu0 %2590
        %2592 = vrot.lane.b32.xlu0 %v2551, 80
        %v2593 = vpop.permute.xlu0 %2592
        %2596 = vrot.lane.b32.xlu0 %v2548, 64
        %v2597 = vpop.permute.xlu0 %2596
        %2598 = vrot.lane.b32.xlu0 %v2551, 64
        %v2599 = vpop.permute.xlu0 %2598
        %2602 = vrot.lane.b32.xlu0 %v2548, 48
        %v2603 = vpop.permute.xlu0 %2602
        %2604 = vrot.lane.b32.xlu0 %v2551, 48
        %v2605 = vpop.permute.xlu0 %2604
        %2608 = vrot.lane.b32.xlu0 %v2548, 32
        %v2609 = vpop.permute.xlu0 %2608
        %2610 = vrot.lane.b32.xlu0 %v2551, 32
        %v2611 = vpop.permute.xlu0 %2610
        %2614 = vrot.lane.b32.xlu0 %v2548, 16
        %v2615 = vpop.permute.xlu0 %2614
        %2616 = vrot.lane.b32.xlu0 %v2551, 16
        %v2617 = vpop.permute.xlu0 %2616
        %2622 = vrot.lane.b32.xlu0 %v2571, 112
        %v2623 = vpop.permute.xlu0 %2622
        %2624 = vrot.lane.b32.xlu0 %v2574, 112
        %v2625 = vpop.permute.xlu0 %2624
        %2628 = vrot.lane.b32.xlu0 %v2571, 96
        %v2629 = vpop.permute.xlu0 %2628
        %2630 = vrot.lane.b32.xlu0 %v2574, 96
        %v2631 = vpop.permute.xlu0 %2630
        %2634 = vrot.lane.b32.xlu0 %v2571, 80
        %v2635 = vpop.permute.xlu0 %2634
        %2636 = vrot.lane.b32.xlu0 %v2574, 80
        %v2637 = vpop.permute.xlu0 %2636
        %2640 = vrot.lane.b32.xlu0 %v2571, 64
        %v2641 = vpop.permute.xlu0 %2640
        %2642 = vrot.lane.b32.xlu0 %v2574, 64
        %v2643 = vpop.permute.xlu0 %2642
        %2646 = vrot.lane.b32.xlu0 %v2571, 48
        %v2647 = vpop.permute.xlu0 %2646
        %2648 = vrot.lane.b32.xlu0 %v2574, 48
        %v2649 = vpop.permute.xlu0 %2648
        %2652 = vrot.lane.b32.xlu0 %v2571, 32
        %v2653 = vpop.permute.xlu0 %2652
        %2654 = vrot.lane.b32.xlu0 %v2574, 32
        %v2655 = vpop.permute.xlu0 %2654
        %2658 = vrot.lane.b32.xlu0 %v2571, 16
        %v2659 = vpop.permute.xlu0 %2658
        %2660 = vrot.lane.b32.xlu0 %v2574, 16
        %v2661 = vpop.permute.xlu0 %2660
        %v2664 = vrot.slane %v2585, 4
        %v2665 = vsel %vm645, %v2664, %v2548
        %v2666 = vrot.slane %v2548, 4
        %v2667 = vsel %vm645, %v2585, %v2666
        %v2669 = vunpack.c.l.s4 1983009808
        %v2670 = vunpack.c.0.s8 %v2669
        %v2671 = vperm.slane %v2665, %v2670
        %v2673 = vunpack.c.l.s4 1983009808
        %v2674 = vunpack.c.0.s8 %v2673
        %v2675 = vperm.slane %v2667, %v2674
        %v2676 = vrot.slane %v2591, 4
        %v2677 = vsel %vm645, %v2676, %v2579
        %v2678 = vrot.slane %v2579, 4
        %v2679 = vsel %vm645, %v2591, %v2678
        %v2681 = vunpack.c.l.s4 1983009808
        %v2682 = vunpack.c.0.s8 %v2681
        %v2683 = vperm.slane %v2677, %v2682
        %v2685 = vunpack.c.l.s4 1983009808
        %v2686 = vunpack.c.0.s8 %v2685
        %v2687 = vperm.slane %v2679, %v2686
        %v2688 = vrot.slane %v2609, 4
        %v2689 = vsel %vm645, %v2688, %v2597
        %v2690 = vrot.slane %v2597, 4
        %v2691 = vsel %vm645, %v2609, %v2690
        %v2693 = vunpack.c.l.s4 1983009808
        %v2694 = vunpack.c.0.s8 %v2693
        %v2695 = vperm.slane %v2689, %v2694
        %v2697 = vunpack.c.l.s4 1983009808
        %v2698 = vunpack.c.0.s8 %v2697
        %v2699 = vperm.slane %v2691, %v2698
        %v2700 = vrot.slane %v2615, 4
        %v2701 = vsel %vm645, %v2700, %v2603
        %v2702 = vrot.slane %v2603, 4
        %v2703 = vsel %vm645, %v2615, %v2702
        %v2705 = vunpack.c.l.s4 1983009808
        %v2706 = vunpack.c.0.s8 %v2705
        %v2707 = vperm.slane %v2701, %v2706
        %v2709 = vunpack.c.l.s4 1983009808
        %v2710 = vunpack.c.0.s8 %v2709
        %v2711 = vperm.slane %v2703, %v2710
        %v2712 = vrot.slane %v2683, 4
        %v2713 = vsel %vm645, %v2712, %v2671
        %v2714 = vrot.slane %v2671, 4
        %v2715 = vsel %vm645, %v2683, %v2714
        %v2717 = vunpack.c.l.s4 1934713408
        %v2718 = vunpack.c.0.s8 %v2717
        %v2719 = vperm.slane %v2713, %v2718
        %v2721 = vunpack.c.l.s4 1934713408
        %v2722 = vunpack.c.0.s8 %v2721
        %v2723 = vperm.slane %v2715, %v2722
        %v2724 = vrot.slane %v2687, 4
        %v2725 = vsel %vm645, %v2724, %v2675
        %v2726 = vrot.slane %v2675, 4
        %v2727 = vsel %vm645, %v2687, %v2726
        %v2729 = vunpack.c.l.s4 1934713408
        %v2730 = vunpack.c.0.s8 %v2729
        %v2731 = vperm.slane %v2725, %v2730
        %v2733 = vunpack.c.l.s4 1934713408
        %v2734 = vunpack.c.0.s8 %v2733
        %v2735 = vperm.slane %v2727, %v2734
        %v2736 = vrot.slane %v2707, 4
        %v2737 = vsel %vm645, %v2736, %v2695
        %v2738 = vrot.slane %v2695, 4
        %v2739 = vsel %vm645, %v2707, %v2738
        %v2741 = vunpack.c.l.s4 1934713408
        %v2742 = vunpack.c.0.s8 %v2741
        %v2743 = vperm.slane %v2737, %v2742
        %v2745 = vunpack.c.l.s4 1934713408
        %v2746 = vunpack.c.0.s8 %v2745
        %v2747 = vperm.slane %v2739, %v2746
        %v2748 = vrot.slane %v2711, 4
        %v2749 = vsel %vm645, %v2748, %v2699
        %v2750 = vrot.slane %v2699, 4
        %v2751 = vsel %vm645, %v2711, %v2750
        %v2753 = vunpack.c.l.s4 1934713408
        %v2754 = vunpack.c.0.s8 %v2753
        %v2755 = vperm.slane %v2749, %v2754
        %v2757 = vunpack.c.l.s4 1934713408
        %v2758 = vunpack.c.0.s8 %v2757
        %v2759 = vperm.slane %v2751, %v2758
        %v2760 = vrot.slane %v2743, 4
        %v2761 = vsel %vm645, %v2760, %v2719
        %v2762 = vrot.slane %v2719, 4
        %v2763 = vsel %vm645, %v2743, %v2762
        %v2764 = vrot.slane %v2747, 4
        %v2765 = vsel %vm645, %v2764, %v2723
        %v2766 = vrot.slane %v2723, 4
        %v2767 = vsel %vm645, %v2747, %v2766
        %v2768 = vrot.slane %v2755, 4
        %v2769 = vsel %vm645, %v2768, %v2731
        %v2770 = vrot.slane %v2731, 4
        %v2771 = vsel %vm645, %v2755, %v2770
        %v2772 = vrot.slane %v2759, 4
        %v2773 = vsel %vm645, %v2772, %v2735
        %v2774 = vrot.slane %v2735, 4
        %v2775 = vsel %vm645, %v2759, %v2774
        %v2776 = vrot.slane %v2629, 4
        %v2777 = vsel %vm645, %v2776, %v2571
        %v2778 = vrot.slane %v2571, 4
        %v2779 = vsel %vm645, %v2629, %v2778
        %v2781 = vunpack.c.l.s4 1983009808
        %v2782 = vunpack.c.0.s8 %v2781
        %v2783 = vperm.slane %v2777, %v2782
        %v2785 = vunpack.c.l.s4 1983009808
        %v2786 = vunpack.c.0.s8 %v2785
        %v2787 = vperm.slane %v2779, %v2786
        %v2788 = vrot.slane %v2635, 4
        %v2789 = vsel %vm645, %v2788, %v2623
        %v2790 = vrot.slane %v2623, 4
        %v2791 = vsel %vm645, %v2635, %v2790
        %v2793 = vunpack.c.l.s4 1983009808
        %v2794 = vunpack.c.0.s8 %v2793
        %v2795 = vperm.slane %v2789, %v2794
        %v2797 = vunpack.c.l.s4 1983009808
        %v2798 = vunpack.c.0.s8 %v2797
        %v2799 = vperm.slane %v2791, %v2798
        %v2800 = vrot.slane %v2653, 4
        %v2801 = vsel %vm645, %v2800, %v2641
        %v2802 = vrot.slane %v2641, 4
        %v2803 = vsel %vm645, %v2653, %v2802
        %v2805 = vunpack.c.l.s4 1983009808
        %v2806 = vunpack.c.0.s8 %v2805
        %v2807 = vperm.slane %v2801, %v2806
        %v2809 = vunpack.c.l.s4 1983009808
        %v2810 = vunpack.c.0.s8 %v2809
        %v2811 = vperm.slane %v2803, %v2810
        %v2812 = vrot.slane %v2659, 4
        %v2813 = vsel %vm645, %v2812, %v2647
        %v2814 = vrot.slane %v2647, 4
        %v2815 = vsel %vm645, %v2659, %v2814
        %v2817 = vunpack.c.l.s4 1983009808
        %v2818 = vunpack.c.0.s8 %v2817
        %v2819 = vperm.slane %v2813, %v2818
        %v2821 = vunpack.c.l.s4 1983009808
        %v2822 = vunpack.c.0.s8 %v2821
        %v2823 = vperm.slane %v2815, %v2822
        %v2824 = vrot.slane %v2795, 4
        %v2825 = vsel %vm645, %v2824, %v2783
        %v2826 = vrot.slane %v2783, 4
        %v2827 = vsel %vm645, %v2795, %v2826
        %v2829 = vunpack.c.l.s4 1934713408
        %v2830 = vunpack.c.0.s8 %v2829
        %v2831 = vperm.slane %v2825, %v2830
        %v2833 = vunpack.c.l.s4 1934713408
        %v2834 = vunpack.c.0.s8 %v2833
        %v2835 = vperm.slane %v2827, %v2834
        %v2836 = vrot.slane %v2799, 4
        %v2837 = vsel %vm645, %v2836, %v2787
        %v2838 = vrot.slane %v2787, 4
        %v2839 = vsel %vm645, %v2799, %v2838
        %v2841 = vunpack.c.l.s4 1934713408
        %v2842 = vunpack.c.0.s8 %v2841
        %v2843 = vperm.slane %v2837, %v2842
        %v2845 = vunpack.c.l.s4 1934713408
        %v2846 = vunpack.c.0.s8 %v2845
        %v2847 = vperm.slane %v2839, %v2846
        %v2848 = vrot.slane %v2819, 4
        %v2849 = vsel %vm645, %v2848, %v2807
        %v2850 = vrot.slane %v2807, 4
        %v2851 = vsel %vm645, %v2819, %v2850
        %v2853 = vunpack.c.l.s4 1934713408
        %v2854 = vunpack.c.0.s8 %v2853
        %v2855 = vperm.slane %v2849, %v2854
        %v2857 = vunpack.c.l.s4 1934713408
        %v2858 = vunpack.c.0.s8 %v2857
        %v2859 = vperm.slane %v2851, %v2858
        %v2860 = vrot.slane %v2823, 4
        %v2861 = vsel %vm645, %v2860, %v2811
        %v2862 = vrot.slane %v2811, 4
        %v2863 = vsel %vm645, %v2823, %v2862
        %v2865 = vunpack.c.l.s4 1934713408
        %v2866 = vunpack.c.0.s8 %v2865
        %v2867 = vperm.slane %v2861, %v2866
        %v2869 = vunpack.c.l.s4 1934713408
        %v2870 = vunpack.c.0.s8 %v2869
        %v2871 = vperm.slane %v2863, %v2870
        %v2872 = vrot.slane %v2855, 4
        %v2873 = vsel %vm645, %v2872, %v2831
        %v2874 = vrot.slane %v2831, 4
        %v2875 = vsel %vm645, %v2855, %v2874
        %v2876 = vrot.slane %v2859, 4
        %v2877 = vsel %vm645, %v2876, %v2835
        %v2878 = vrot.slane %v2835, 4
        %v2879 = vsel %vm645, %v2859, %v2878
        %v2880 = vrot.slane %v2867, 4
        %v2881 = vsel %vm645, %v2880, %v2843
        %v2882 = vrot.slane %v2843, 4
        %v2883 = vsel %vm645, %v2867, %v2882
        %v2884 = vrot.slane %v2871, 4
        %v2885 = vsel %vm645, %v2884, %v2847
        %v2886 = vrot.slane %v2847, 4
        %v2887 = vsel %vm645, %v2871, %v2886
        %v2888 = vrot.slane %v2587, 4
        %v2889 = vsel %vm645, %v2888, %v2551
        %v2890 = vrot.slane %v2551, 4
        %v2891 = vsel %vm645, %v2587, %v2890
        %v2893 = vunpack.c.l.s4 1983009808
        %v2894 = vunpack.c.0.s8 %v2893
        %v2895 = vperm.slane %v2889, %v2894
        %v2897 = vunpack.c.l.s4 1983009808
        %v2898 = vunpack.c.0.s8 %v2897
        %v2899 = vperm.slane %v2891, %v2898
        %v2900 = vrot.slane %v2593, 4
        %v2901 = vsel %vm645, %v2900, %v2581
        %v2902 = vrot.slane %v2581, 4
        %v2903 = vsel %vm645, %v2593, %v2902
        %v2905 = vunpack.c.l.s4 1983009808
        %v2906 = vunpack.c.0.s8 %v2905
        %v2907 = vperm.slane %v2901, %v2906
        %v2909 = vunpack.c.l.s4 1983009808
        %v2910 = vunpack.c.0.s8 %v2909
        %v2911 = vperm.slane %v2903, %v2910
        %v2912 = vrot.slane %v2611, 4
        %v2913 = vsel %vm645, %v2912, %v2599
        %v2914 = vrot.slane %v2599, 4
        %v2915 = vsel %vm645, %v2611, %v2914
        %v2917 = vunpack.c.l.s4 1983009808
        %v2918 = vunpack.c.0.s8 %v2917
        %v2919 = vperm.slane %v2913, %v2918
        %v2921 = vunpack.c.l.s4 1983009808
        %v2922 = vunpack.c.0.s8 %v2921
        %v2923 = vperm.slane %v2915, %v2922
        %v2924 = vrot.slane %v2617, 4
        %v2925 = vsel %vm645, %v2924, %v2605
        %v2926 = vrot.slane %v2605, 4
        %v2927 = vsel %vm645, %v2617, %v2926
        %v2929 = vunpack.c.l.s4 1983009808
        %v2930 = vunpack.c.0.s8 %v2929
        %v2931 = vperm.slane %v2925, %v2930
        %v2933 = vunpack.c.l.s4 1983009808
        %v2934 = vunpack.c.0.s8 %v2933
        %v2935 = vperm.slane %v2927, %v2934
        %v2936 = vrot.slane %v2907, 4
        %v2937 = vsel %vm645, %v2936, %v2895
        %v2938 = vrot.slane %v2895, 4
        %v2939 = vsel %vm645, %v2907, %v2938
        %v2941 = vunpack.c.l.s4 1934713408
        %v2942 = vunpack.c.0.s8 %v2941
        %v2943 = vperm.slane %v2937, %v2942
        %v2945 = vunpack.c.l.s4 1934713408
        %v2946 = vunpack.c.0.s8 %v2945
        %v2947 = vperm.slane %v2939, %v2946
        %v2948 = vrot.slane %v2911, 4
        %v2949 = vsel %vm645, %v2948, %v2899
        %v2950 = vrot.slane %v2899, 4
        %v2951 = vsel %vm645, %v2911, %v2950
        %v2953 = vunpack.c.l.s4 1934713408
        %v2954 = vunpack.c.0.s8 %v2953
        %v2955 = vperm.slane %v2949, %v2954
        %v2957 = vunpack.c.l.s4 1934713408
        %v2958 = vunpack.c.0.s8 %v2957
        %v2959 = vperm.slane %v2951, %v2958
        %v2960 = vrot.slane %v2931, 4
        %v2961 = vsel %vm645, %v2960, %v2919
        %v2962 = vrot.slane %v2919, 4
        %v2963 = vsel %vm645, %v2931, %v2962
        %v2965 = vunpack.c.l.s4 1934713408
        %v2966 = vunpack.c.0.s8 %v2965
        %v2967 = vperm.slane %v2961, %v2966
        %v2969 = vunpack.c.l.s4 1934713408
        %v2970 = vunpack.c.0.s8 %v2969
        %v2971 = vperm.slane %v2963, %v2970
        %v2972 = vrot.slane %v2935, 4
        %v2973 = vsel %vm645, %v2972, %v2923
        %v2974 = vrot.slane %v2923, 4
        %v2975 = vsel %vm645, %v2935, %v2974
        %v2977 = vunpack.c.l.s4 1934713408
        %v2978 = vunpack.c.0.s8 %v2977
        %v2979 = vperm.slane %v2973, %v2978
        %v2981 = vunpack.c.l.s4 1934713408
        %v2982 = vunpack.c.0.s8 %v2981
        %v2983 = vperm.slane %v2975, %v2982
        %v2984 = vrot.slane %v2967, 4
        %v2985 = vsel %vm645, %v2984, %v2943
        %v2986 = vrot.slane %v2943, 4
        %v2987 = vsel %vm645, %v2967, %v2986
        %v2988 = vrot.slane %v2971, 4
        %v2989 = vsel %vm645, %v2988, %v2947
        %v2990 = vrot.slane %v2947, 4
        %v2991 = vsel %vm645, %v2971, %v2990
        %v2992 = vrot.slane %v2979, 4
        %v2993 = vsel %vm645, %v2992, %v2955
        %v2994 = vrot.slane %v2955, 4
        %v2995 = vsel %vm645, %v2979, %v2994
        %v2996 = vrot.slane %v2983, 4
        %v2997 = vsel %vm645, %v2996, %v2959
        %v2998 = vrot.slane %v2959, 4
        %v2999 = vsel %vm645, %v2983, %v2998
        %v3000 = vrot.slane %v2631, 4
        %v3001 = vsel %vm645, %v3000, %v2574
        %v3002 = vrot.slane %v2574, 4
        %v3003 = vsel %vm645, %v2631, %v3002
        %v3005 = vunpack.c.l.s4 1983009808
        %v3006 = vunpack.c.0.s8 %v3005
        %v3007 = vperm.slane %v3001, %v3006
        %v3009 = vunpack.c.l.s4 1983009808
        %v3010 = vunpack.c.0.s8 %v3009
        %v3011 = vperm.slane %v3003, %v3010
        %v3012 = vrot.slane %v2637, 4
        %v3013 = vsel %vm645, %v3012, %v2625
        %v3014 = vrot.slane %v2625, 4
        %v3015 = vsel %vm645, %v2637, %v3014
        %v3017 = vunpack.c.l.s4 1983009808
        %v3018 = vunpack.c.0.s8 %v3017
        %v3019 = vperm.slane %v3013, %v3018
        %v3021 = vunpack.c.l.s4 1983009808
        %v3022 = vunpack.c.0.s8 %v3021
        %v3023 = vperm.slane %v3015, %v3022
        %v3024 = vrot.slane %v2655, 4
        %v3025 = vsel %vm645, %v3024, %v2643
        %v3026 = vrot.slane %v2643, 4
        %v3027 = vsel %vm645, %v2655, %v3026
        %v3029 = vunpack.c.l.s4 1983009808
        %v3030 = vunpack.c.0.s8 %v3029
        %v3031 = vperm.slane %v3025, %v3030
        %v3033 = vunpack.c.l.s4 1983009808
        %v3034 = vunpack.c.0.s8 %v3033
        %v3035 = vperm.slane %v3027, %v3034
        %v3036 = vrot.slane %v2661, 4
        %v3037 = vsel %vm645, %v3036, %v2649
        %v3038 = vrot.slane %v2649, 4
        %v3039 = vsel %vm645, %v2661, %v3038
        %v3041 = vunpack.c.l.s4 1983009808
        %v3042 = vunpack.c.0.s8 %v3041
        %v3043 = vperm.slane %v3037, %v3042
        %v3045 = vunpack.c.l.s4 1983009808
        %v3046 = vunpack.c.0.s8 %v3045
        %v3047 = vperm.slane %v3039, %v3046
        %v3048 = vrot.slane %v3019, 4
        %v3049 = vsel %vm645, %v3048, %v3007
        %v3050 = vrot.slane %v3007, 4
        %v3051 = vsel %vm645, %v3019, %v3050
        %v3053 = vunpack.c.l.s4 1934713408
        %v3054 = vunpack.c.0.s8 %v3053
        %v3055 = vperm.slane %v3049, %v3054
        %v3057 = vunpack.c.l.s4 1934713408
        %v3058 = vunpack.c.0.s8 %v3057
        %v3059 = vperm.slane %v3051, %v3058
        %v3060 = vrot.slane %v3023, 4
        %v3061 = vsel %vm645, %v3060, %v3011
        %v3062 = vrot.slane %v3011, 4
        %v3063 = vsel %vm645, %v3023, %v3062
        %v3065 = vunpack.c.l.s4 1934713408
        %v3066 = vunpack.c.0.s8 %v3065
        %v3067 = vperm.slane %v3061, %v3066
        %v3069 = vunpack.c.l.s4 1934713408
        %v3070 = vunpack.c.0.s8 %v3069
        %v3071 = vperm.slane %v3063, %v3070
        %v3072 = vrot.slane %v3043, 4
        %v3073 = vsel %vm645, %v3072, %v3031
        %v3074 = vrot.slane %v3031, 4
        %v3075 = vsel %vm645, %v3043, %v3074
        %v3077 = vunpack.c.l.s4 1934713408
        %v3078 = vunpack.c.0.s8 %v3077
        %v3079 = vperm.slane %v3073, %v3078
        %v3081 = vunpack.c.l.s4 1934713408
        %v3082 = vunpack.c.0.s8 %v3081
        %v3083 = vperm.slane %v3075, %v3082
        %v3084 = vrot.slane %v3047, 4
        %v3085 = vsel %vm645, %v3084, %v3035
        %v3086 = vrot.slane %v3035, 4
        %v3087 = vsel %vm645, %v3047, %v3086
        %v3089 = vunpack.c.l.s4 1934713408
        %v3090 = vunpack.c.0.s8 %v3089
        %v3091 = vperm.slane %v3085, %v3090
        %v3093 = vunpack.c.l.s4 1934713408
        %v3094 = vunpack.c.0.s8 %v3093
        %v3095 = vperm.slane %v3087, %v3094
        %v3096 = vrot.slane %v3079, 4
        %v3097 = vsel %vm645, %v3096, %v3055
        %v3098 = vrot.slane %v3055, 4
        %v3099 = vsel %vm645, %v3079, %v3098
        %v3100 = vrot.slane %v3083, 4
        %v3101 = vsel %vm645, %v3100, %v3059
        %v3102 = vrot.slane %v3059, 4
        %v3103 = vsel %vm645, %v3083, %v3102
        %v3104 = vrot.slane %v3091, 4
        %v3105 = vsel %vm645, %v3104, %v3067
        %v3106 = vrot.slane %v3067, 4
        %v3107 = vsel %vm645, %v3091, %v3106
        %v3108 = vrot.slane %v3095, 4
        %v3109 = vsel %vm645, %v3108, %v3071
        %v3110 = vrot.slane %v3071, 4
        %v3111 = vsel %vm645, %v3095, %v3110
        %v3113 = vrot.slane %v2039, 1
        %v3114 = vrot.slane %v2039, 2
        %v3115 = vrot.slane %v2039, 3
        %v3116 = vrot.slane %v2039, 4
        %v3117 = vrot.slane %v2039, 5
        %v3118 = vrot.slane %v2039, 6
        %v3119 = vrot.slane %v2039, 7
        %v3120 = vperm.slane %v2048, 0
        %v3121 = vlaneseq
        %v3122 = vshrl.u32 %v3121, 7
        %3124 = vset.pattern.permute.xlu0 %v3122
        %3125 = vperm.xlu0 %3124, %v3120
        %v3126 = vpop.permute.xlu0 %3125
        %v3127 = vlaneseq
        %v3128 = vshrl.u32 %v3127, 7
        %v3129 = vadd.s32 %v3128, 8
        %3130 = vset.pattern.permute.xlu0 %v3129
        %3131 = vperm.xlu0 %3130, %v3120
        %v3132 = vpop.permute.xlu0 %3131
        %v3133 = vperm.slane %v2048, 1
        %v3134 = vlaneseq
        %v3135 = vshrl.u32 %v3134, 7
        %3137 = vset.pattern.permute.xlu0 %v3135
        %3138 = vperm.xlu0 %3137, %v3133
        %v3139 = vpop.permute.xlu0 %3138
        %v3140 = vlaneseq
        %v3141 = vshrl.u32 %v3140, 7
        %v3142 = vadd.s32 %v3141, 8
        %3143 = vset.pattern.permute.xlu0 %v3142
        %3144 = vperm.xlu0 %3143, %v3133
        %v3145 = vpop.permute.xlu0 %3144
        %v3146 = vperm.slane %v2048, 2
        %v3147 = vlaneseq
        %v3148 = vshrl.u32 %v3147, 7
        %3150 = vset.pattern.permute.xlu0 %v3148
        %3151 = vperm.xlu0 %3150, %v3146
        %v3152 = vpop.permute.xlu0 %3151
        %v3153 = vlaneseq
        %v3154 = vshrl.u32 %v3153, 7
        %v3155 = vadd.s32 %v3154, 8
        %3156 = vset.pattern.permute.xlu0 %v3155
        %3157 = vperm.xlu0 %3156, %v3146
        %v3158 = vpop.permute.xlu0 %3157
        %v3159 = vperm.slane %v2048, 3
        %v3160 = vlaneseq
        %v3161 = vshrl.u32 %v3160, 7
        %3163 = vset.pattern.permute.xlu0 %v3161
        %3164 = vperm.xlu0 %3163, %v3159
        %v3165 = vpop.permute.xlu0 %3164
        %v3166 = vlaneseq
        %v3167 = vshrl.u32 %v3166, 7
        %v3168 = vadd.s32 %v3167, 8
        %3169 = vset.pattern.permute.xlu0 %v3168
        %3170 = vperm.xlu0 %3169, %v3159
        %v3171 = vpop.permute.xlu0 %3170
        %v3172 = vperm.slane %v2048, 4
        %v3173 = vlaneseq
        %v3174 = vshrl.u32 %v3173, 7
        %3176 = vset.pattern.permute.xlu0 %v3174
        %3177 = vperm.xlu0 %3176, %v3172
        %v3178 = vpop.permute.xlu0 %3177
        %v3179 = vlaneseq
        %v3180 = vshrl.u32 %v3179, 7
        %v3181 = vadd.s32 %v3180, 8
        %3182 = vset.pattern.permute.xlu0 %v3181
        %3183 = vperm.xlu0 %3182, %v3172
        %v3184 = vpop.permute.xlu0 %3183
        %v3185 = vperm.slane %v2048, 5
        %v3186 = vlaneseq
        %v3187 = vshrl.u32 %v3186, 7
        %3189 = vset.pattern.permute.xlu0 %v3187
        %3190 = vperm.xlu0 %3189, %v3185
        %v3191 = vpop.permute.xlu0 %3190
        %v3192 = vlaneseq
        %v3193 = vshrl.u32 %v3192, 7
        %v3194 = vadd.s32 %v3193, 8
        %3195 = vset.pattern.permute.xlu0 %v3194
        %3196 = vperm.xlu0 %3195, %v3185
        %v3197 = vpop.permute.xlu0 %3196
        %v3198 = vperm.slane %v2048, 6
        %v3199 = vlaneseq
        %v3200 = vshrl.u32 %v3199, 7
        %3202 = vset.pattern.permute.xlu0 %v3200
        %3203 = vperm.xlu0 %3202, %v3198
        %v3204 = vpop.permute.xlu0 %3203
        %v3205 = vlaneseq
        %v3206 = vshrl.u32 %v3205, 7
        %v3207 = vadd.s32 %v3206, 8
        %3208 = vset.pattern.permute.xlu0 %v3207
        %3209 = vperm.xlu0 %3208, %v3198
        %v3210 = vpop.permute.xlu0 %3209
        %v3211 = vperm.slane %v2048, 7
        %v3212 = vlaneseq
        %v3213 = vshrl.u32 %v3212, 7
        %3215 = vset.pattern.permute.xlu0 %v3213
        %3216 = vperm.xlu0 %3215, %v3211
        %v3217 = vpop.permute.xlu0 %3216
        %v3218 = vlaneseq
        %v3219 = vshrl.u32 %v3218, 7
        %v3220 = vadd.s32 %v3219, 8
        %3221 = vset.pattern.permute.xlu0 %v3220
        %3222 = vperm.xlu0 %3221, %v3211
        %v3223 = vpop.permute.xlu0 %3222
        %v3224 = vperm.slane %v2039, 0
        %v3225 = vperm.slane %v3113, 0
        %v3226 = vperm.slane %v3114, 0
        %v3227 = vperm.slane %v3115, 0
        %v3228 = vperm.slane %v3116, 0
        %v3229 = vperm.slane %v3117, 0
        %v3230 = vperm.slane %v3118, 0
        %v3231 = vperm.slane %v3119, 0
        %v3240 = vsub.f32 %v3224, %v3126
        %v3241 = vsub.f32 %v3224, %v3132
        %v3242 = vsub.f32 %v3225, %v3139
        %v3243 = vsub.f32 %v3225, %v3145
        %v3244 = vsub.f32 %v3226, %v3152
        %v3245 = vsub.f32 %v3226, %v3158
        %v3246 = vsub.f32 %v3227, %v3165
        %v3247 = vsub.f32 %v3227, %v3171
        %v3248 = vsub.f32 %v3228, %v3178
        %v3249 = vsub.f32 %v3228, %v3184
        %v3250 = vsub.f32 %v3229, %v3191
        %v3251 = vsub.f32 %v3229, %v3197
        %v3252 = vsub.f32 %v3230, %v3204
        %v3253 = vsub.f32 %v3230, %v3210
        %v3254 = vsub.f32 %v3231, %v3217
        %v3255 = vsub.f32 %v3231, %v3223
        %v3256 = vtanh.pop %v3240
        %v3257 = vtanh.pop %v3241
        %v3258 = vtanh.pop %v3242
        %v3259 = vtanh.pop %v3243
        %v3260 = vtanh.pop %v3244
        %v3261 = vtanh.pop %v3245
        %v3262 = vtanh.pop %v3246
        %v3263 = vtanh.pop %v3247
        %v3264 = vtanh.pop %v3248
        %v3265 = vtanh.pop %v3249
        %v3266 = vtanh.pop %v3250
        %v3267 = vtanh.pop %v3251
        %v3268 = vtanh.pop %v3252
        %v3269 = vtanh.pop %v3253
        %v3270 = vtanh.pop %v3254
        %v3271 = vtanh.pop %v3255
        %v3272 = vrot.slane %v3260, 4
        %v3273 = vsel %vm645, %v3272, %v3256
        %v3274 = vrot.slane %v3256, 4
        %v3275 = vsel %vm645, %v3260, %v3274
        %v3277 = vunpack.c.l.s4 1983009808
        %v3278 = vunpack.c.0.s8 %v3277
        %v3279 = vperm.slane %v3273, %v3278
        %v3281 = vunpack.c.l.s4 1983009808
        %v3282 = vunpack.c.0.s8 %v3281
        %v3283 = vperm.slane %v3275, %v3282
        %v3284 = vrot.slane %v3262, 4
        %v3285 = vsel %vm645, %v3284, %v3258
        %v3286 = vrot.slane %v3258, 4
        %v3287 = vsel %vm645, %v3262, %v3286
        %v3289 = vunpack.c.l.s4 1983009808
        %v3290 = vunpack.c.0.s8 %v3289
        %v3291 = vperm.slane %v3285, %v3290
        %v3293 = vunpack.c.l.s4 1983009808
        %v3294 = vunpack.c.0.s8 %v3293
        %v3295 = vperm.slane %v3287, %v3294
        %v3296 = vrot.slane %v3268, 4
        %v3297 = vsel %vm645, %v3296, %v3264
        %v3298 = vrot.slane %v3264, 4
        %v3299 = vsel %vm645, %v3268, %v3298
        %v3301 = vunpack.c.l.s4 1983009808
        %v3302 = vunpack.c.0.s8 %v3301
        %v3303 = vperm.slane %v3297, %v3302
        %v3305 = vunpack.c.l.s4 1983009808
        %v3306 = vunpack.c.0.s8 %v3305
        %v3307 = vperm.slane %v3299, %v3306
        %v3308 = vrot.slane %v3270, 4
        %v3309 = vsel %vm645, %v3308, %v3266
        %v3310 = vrot.slane %v3266, 4
        %v3311 = vsel %vm645, %v3270, %v3310
        %v3313 = vunpack.c.l.s4 1983009808
        %v3314 = vunpack.c.0.s8 %v3313
        %v3315 = vperm.slane %v3309, %v3314
        %v3317 = vunpack.c.l.s4 1983009808
        %v3318 = vunpack.c.0.s8 %v3317
        %v3319 = vperm.slane %v3311, %v3318
        %v3320 = vrot.slane %v3291, 4
        %v3321 = vsel %vm645, %v3320, %v3279
        %v3322 = vrot.slane %v3279, 4
        %v3323 = vsel %vm645, %v3291, %v3322
        %v3325 = vunpack.c.l.s4 1934713408
        %v3326 = vunpack.c.0.s8 %v3325
        %v3327 = vperm.slane %v3321, %v3326
        %v3329 = vunpack.c.l.s4 1934713408
        %v3330 = vunpack.c.0.s8 %v3329
        %v3331 = vperm.slane %v3323, %v3330
        %v3332 = vrot.slane %v3295, 4
        %v3333 = vsel %vm645, %v3332, %v3283
        %v3334 = vrot.slane %v3283, 4
        %v3335 = vsel %vm645, %v3295, %v3334
        %v3337 = vunpack.c.l.s4 1934713408
        %v3338 = vunpack.c.0.s8 %v3337
        %v3339 = vperm.slane %v3333, %v3338
        %v3341 = vunpack.c.l.s4 1934713408
        %v3342 = vunpack.c.0.s8 %v3341
        %v3343 = vperm.slane %v3335, %v3342
        %v3344 = vrot.slane %v3315, 4
        %v3345 = vsel %vm645, %v3344, %v3303
        %v3346 = vrot.slane %v3303, 4
        %v3347 = vsel %vm645, %v3315, %v3346
        %v3349 = vunpack.c.l.s4 1934713408
        %v3350 = vunpack.c.0.s8 %v3349
        %v3351 = vperm.slane %v3345, %v3350
        %v3353 = vunpack.c.l.s4 1934713408
        %v3354 = vunpack.c.0.s8 %v3353
        %v3355 = vperm.slane %v3347, %v3354
        %v3356 = vrot.slane %v3319, 4
        %v3357 = vsel %vm645, %v3356, %v3307
        %v3358 = vrot.slane %v3307, 4
        %v3359 = vsel %vm645, %v3319, %v3358
        %v3361 = vunpack.c.l.s4 1934713408
        %v3362 = vunpack.c.0.s8 %v3361
        %v3363 = vperm.slane %v3357, %v3362
        %v3365 = vunpack.c.l.s4 1934713408
        %v3366 = vunpack.c.0.s8 %v3365
        %v3367 = vperm.slane %v3359, %v3366
        %v3368 = vrot.slane %v3351, 4
        %v3369 = vsel %vm645, %v3368, %v3327
        %v3370 = vrot.slane %v3327, 4
        %v3371 = vsel %vm645, %v3351, %v3370
        %v3372 = vrot.slane %v3355, 4
        %v3373 = vsel %vm645, %v3372, %v3331
        %v3374 = vrot.slane %v3331, 4
        %v3375 = vsel %vm645, %v3355, %v3374
        %v3376 = vrot.slane %v3363, 4
        %v3377 = vsel %vm645, %v3376, %v3339
        %v3378 = vrot.slane %v3339, 4
        %v3379 = vsel %vm645, %v3363, %v3378
        %v3380 = vrot.slane %v3367, 4
        %v3381 = vsel %vm645, %v3380, %v3343
        %v3382 = vrot.slane %v3343, 4
        %v3383 = vsel %vm645, %v3367, %v3382
        %v3384 = vrot.slane %v3261, 4
        %v3385 = vsel %vm645, %v3384, %v3257
        %v3386 = vrot.slane %v3257, 4
        %v3387 = vsel %vm645, %v3261, %v3386
        %v3389 = vunpack.c.l.s4 1983009808
        %v3390 = vunpack.c.0.s8 %v3389
        %v3391 = vperm.slane %v3385, %v3390
        %v3393 = vunpack.c.l.s4 1983009808
        %v3394 = vunpack.c.0.s8 %v3393
        %v3395 = vperm.slane %v3387, %v3394
        %v3396 = vrot.slane %v3263, 4
        %v3397 = vsel %vm645, %v3396, %v3259
        %v3398 = vrot.slane %v3259, 4
        %v3399 = vsel %vm645, %v3263, %v3398
        %v3401 = vunpack.c.l.s4 1983009808
        %v3402 = vunpack.c.0.s8 %v3401
        %v3403 = vperm.slane %v3397, %v3402
        %v3405 = vunpack.c.l.s4 1983009808
        %v3406 = vunpack.c.0.s8 %v3405
        %v3407 = vperm.slane %v3399, %v3406
        %v3408 = vrot.slane %v3269, 4
        %v3409 = vsel %vm645, %v3408, %v3265
        %v3410 = vrot.slane %v3265, 4
        %v3411 = vsel %vm645, %v3269, %v3410
        %v3413 = vunpack.c.l.s4 1983009808
        %v3414 = vunpack.c.0.s8 %v3413
        %v3415 = vperm.slane %v3409, %v3414
        %v3417 = vunpack.c.l.s4 1983009808
        %v3418 = vunpack.c.0.s8 %v3417
        %v3419 = vperm.slane %v3411, %v3418
        %v3420 = vrot.slane %v3271, 4
        %v3421 = vsel %vm645, %v3420, %v3267
        %v3422 = vrot.slane %v3267, 4
        %v3423 = vsel %vm645, %v3271, %v3422
        %v3425 = vunpack.c.l.s4 1983009808
        %v3426 = vunpack.c.0.s8 %v3425
        %v3427 = vperm.slane %v3421, %v3426
        %v3429 = vunpack.c.l.s4 1983009808
        %v3430 = vunpack.c.0.s8 %v3429
        %v3431 = vperm.slane %v3423, %v3430
        %v3432 = vrot.slane %v3403, 4
        %v3433 = vsel %vm645, %v3432, %v3391
        %v3434 = vrot.slane %v3391, 4
        %v3435 = vsel %vm645, %v3403, %v3434
        %v3437 = vunpack.c.l.s4 1934713408
        %v3438 = vunpack.c.0.s8 %v3437
        %v3439 = vperm.slane %v3433, %v3438
        %v3441 = vunpack.c.l.s4 1934713408
        %v3442 = vunpack.c.0.s8 %v3441
        %v3443 = vperm.slane %v3435, %v3442
        %v3444 = vrot.slane %v3407, 4
        %v3445 = vsel %vm645, %v3444, %v3395
        %v3446 = vrot.slane %v3395, 4
        %v3447 = vsel %vm645, %v3407, %v3446
        %v3449 = vunpack.c.l.s4 1934713408
        %v3450 = vunpack.c.0.s8 %v3449
        %v3451 = vperm.slane %v3445, %v3450
        %v3453 = vunpack.c.l.s4 1934713408
        %v3454 = vunpack.c.0.s8 %v3453
        %v3455 = vperm.slane %v3447, %v3454
        %v3456 = vrot.slane %v3427, 4
        %v3457 = vsel %vm645, %v3456, %v3415
        %v3458 = vrot.slane %v3415, 4
        %v3459 = vsel %vm645, %v3427, %v3458
        %v3461 = vunpack.c.l.s4 1934713408
        %v3462 = vunpack.c.0.s8 %v3461
        %v3463 = vperm.slane %v3457, %v3462
        %v3465 = vunpack.c.l.s4 1934713408
        %v3466 = vunpack.c.0.s8 %v3465
        %v3467 = vperm.slane %v3459, %v3466
        %v3468 = vrot.slane %v3431, 4
        %v3469 = vsel %vm645, %v3468, %v3419
        %v3470 = vrot.slane %v3419, 4
        %v3471 = vsel %vm645, %v3431, %v3470
        %v3473 = vunpack.c.l.s4 1934713408
        %v3474 = vunpack.c.0.s8 %v3473
        %v3475 = vperm.slane %v3469, %v3474
        %v3477 = vunpack.c.l.s4 1934713408
        %v3478 = vunpack.c.0.s8 %v3477
        %v3479 = vperm.slane %v3471, %v3478
        %v3480 = vrot.slane %v3463, 4
        %v3481 = vsel %vm645, %v3480, %v3439
        %v3482 = vrot.slane %v3439, 4
        %v3483 = vsel %vm645, %v3463, %v3482
        %v3484 = vrot.slane %v3467, 4
        %v3485 = vsel %vm645, %v3484, %v3443
        %v3486 = vrot.slane %v3443, 4
        %v3487 = vsel %vm645, %v3467, %v3486
        %v3488 = vrot.slane %v3475, 4
        %v3489 = vsel %vm645, %v3488, %v3451
        %v3490 = vrot.slane %v3451, 4
        %v3491 = vsel %vm645, %v3475, %v3490
        %v3492 = vrot.slane %v3479, 4
        %v3493 = vsel %vm645, %v3492, %v3455
        %v3494 = vrot.slane %v3455, 4
        %v3495 = vsel %vm645, %v3479, %v3494
        %3497 = vrot.lane.b32.xlu0 %v3371, 16
        %v3498 = vpop.permute.xlu0 %3497
        %3501 = vrot.lane.b32.xlu0 %v3373, 32
        %v3502 = vpop.permute.xlu0 %3501
        %3505 = vrot.lane.b32.xlu0 %v3375, 48
        %v3506 = vpop.permute.xlu0 %3505
        %3509 = vrot.lane.b32.xlu0 %v3377, 64
        %v3510 = vpop.permute.xlu0 %3509
        %3513 = vrot.lane.b32.xlu0 %v3379, 80
        %v3514 = vpop.permute.xlu0 %3513
        %3517 = vrot.lane.b32.xlu0 %v3381, 96
        %v3518 = vpop.permute.xlu0 %3517
        %3521 = vrot.lane.b32.xlu0 %v3383, 112
        %v3522 = vpop.permute.xlu0 %3521
        %3525 = vrot.lane.b32.xlu0 %v3483, 16
        %v3526 = vpop.permute.xlu0 %3525
        %3529 = vrot.lane.b32.xlu0 %v3485, 32
        %v3530 = vpop.permute.xlu0 %3529
        %3533 = vrot.lane.b32.xlu0 %v3487, 48
        %v3534 = vpop.permute.xlu0 %3533
        %3537 = vrot.lane.b32.xlu0 %v3489, 64
        %v3538 = vpop.permute.xlu0 %3537
        %3541 = vrot.lane.b32.xlu0 %v3491, 80
        %v3542 = vpop.permute.xlu0 %3541
        %3545 = vrot.lane.b32.xlu0 %v3493, 96
        %v3546 = vpop.permute.xlu0 %3545
        %3549 = vrot.lane.b32.xlu0 %v3495, 112
        %v3550 = vpop.permute.xlu0 %3549
        %v3552 = vsel %vm1543, %v3369, %v3498
        %v3553 = vsel %vm2494, %v3552, %v3502
        %v3554 = vsel %vm2496, %v3553, %v3506
        %v3555 = vsel %vm2498, %v3554, %v3510
        %v3556 = vsel %vm2500, %v3555, %v3514
        %v3557 = vsel %vm2502, %v3556, %v3518
        %v3558 = vsel %vm2504, %v3557, %v3522
        %v3559 = vsel %vm1543, %v3481, %v3526
        %v3560 = vsel %vm2494, %v3559, %v3530
        %v3561 = vsel %vm2496, %v3560, %v3534
        %v3562 = vsel %vm2498, %v3561, %v3538
        %v3563 = vsel %vm2500, %v3562, %v3542
        %v3564 = vsel %vm2502, %v3563, %v3546
        %v3565 = vsel %vm2504, %v3564, %v3550
        %3567 = vset.pattern.permute.xlu0 0
        %3568 = vperm.xlu0 %3567, %v1960
        %v3569 = vpop.permute.xlu0 %3568
        %3572 = vset.pattern.permute.xlu0 0
        %3573 = vperm.xlu0 %3572, %v1961
        %v3574 = vpop.permute.xlu0 %3573
        %v3577 = vsel %vm2523, %v1952, 0
        %v3580 = vsel %vm2523, %v1953, 0
        %3582 = vmatpush.msra.mxu0 0.0
        %3583 = vmatpush.msra.mxu0 0.0
        %3584 = vmatpush.msra.mxu0 0.0
        %3585 = vmatpush.msra.mxu0 0.0
        %3586 = vmatpush.msra.mxu0 0.0
        %3587 = vmatpush.msra.mxu0 0.0
        %3588 = vmatpush.msra.mxu0 0.0
        %3589 = vmatpush.msra.mxu0 0.0
        %3590 = vmatpush.msra.mxu0 0.0
        %3591 = vmatpush.msra.mxu0 0.0
        %3592 = vmatpush.msra.mxu0 0.0
        %3593 = vmatpush.msra.mxu0 0.0
        %3594 = vmatpush.msra.mxu0 0.0
        %3595 = vmatpush.msra.mxu0 0.0
        %3596 = vmatpush.msra.mxu0 0.0
        %3597 = vmatpush.msra.mxu0 %v3558
        %3598 = vmatmul.f32.gmra.mxu0 %v3577
        %v3599 = vpop.f32.mrf.mxu0
        %v3600 = vadd.f32 %v3569, %v3599
        %3601 = vmatmul.f32.gmra.mxu0 %v3580
        %v3602 = vpop.f32.mrf.mxu0
        %v3603 = vadd.f32 %v3574, %v3602
        %3604 = vdwg.mxu0
        %3605 = vmatpush.msra.mxu0 0.0
        %3606 = vmatpush.msra.mxu0 0.0
        %3607 = vmatpush.msra.mxu0 0.0
        %3608 = vmatpush.msra.mxu0 0.0
        %3609 = vmatpush.msra.mxu0 0.0
        %3610 = vmatpush.msra.mxu0 0.0
        %3611 = vmatpush.msra.mxu0 0.0
        %3612 = vmatpush.msra.mxu0 0.0
        %3613 = vmatpush.msra.mxu0 0.0
        %3614 = vmatpush.msra.mxu0 0.0
        %3615 = vmatpush.msra.mxu0 0.0
        %3616 = vmatpush.msra.mxu0 0.0
        %3617 = vmatpush.msra.mxu0 0.0
        %3618 = vmatpush.msra.mxu0 0.0
        %3619 = vmatpush.msra.mxu0 0.0
        %3620 = vmatpush.msra.mxu0 %v3565
        %3621 = vmatmul.f32.gmra.mxu0 %v3577
        %v3622 = vpop.f32.mrf.mxu0
        %v3623 = vadd.f32 %v3569, %v3622
        %3624 = vmatmul.f32.gmra.mxu0 %v3580
        %v3625 = vpop.f32.mrf.mxu0
        %v3626 = vadd.f32 %v3574, %v3625
        %3627 = vdwg.mxu0
        %3630 = vrot.lane.b32.xlu0 %v3600, 112
        %v3631 = vpop.permute.xlu0 %3630
        %3632 = vrot.lane.b32.xlu0 %v3603, 112
        %v3633 = vpop.permute.xlu0 %3632
        %3636 = vrot.lane.b32.xlu0 %v3600, 96
        %v3637 = vpop.permute.xlu0 %3636
        %3638 = vrot.lane.b32.xlu0 %v3603, 96
        %v3639 = vpop.permute.xlu0 %3638
        %3642 = vrot.lane.b32.xlu0 %v3600, 80
        %v3643 = vpop.permute.xlu0 %3642
        %3644 = vrot.lane.b32.xlu0 %v3603, 80
        %v3645 = vpop.permute.xlu0 %3644
        %3648 = vrot.lane.b32.xlu0 %v3600, 64
        %v3649 = vpop.permute.xlu0 %3648
        %3650 = vrot.lane.b32.xlu0 %v3603, 64
        %v3651 = vpop.permute.xlu0 %3650
        %3654 = vrot.lane.b32.xlu0 %v3600, 48
        %v3655 = vpop.permute.xlu0 %3654
        %3656 = vrot.lane.b32.xlu0 %v3603, 48
        %v3657 = vpop.permute.xlu0 %3656
        %3660 = vrot.lane.b32.xlu0 %v3600, 32
        %v3661 = vpop.permute.xlu0 %3660
        %3662 = vrot.lane.b32.xlu0 %v3603, 32
        %v3663 = vpop.permute.xlu0 %3662
        %3666 = vrot.lane.b32.xlu0 %v3600, 16
        %v3667 = vpop.permute.xlu0 %3666
        %3668 = vrot.lane.b32.xlu0 %v3603, 16
        %v3669 = vpop.permute.xlu0 %3668
        %3674 = vrot.lane.b32.xlu0 %v3623, 112
        %v3675 = vpop.permute.xlu0 %3674
        %3676 = vrot.lane.b32.xlu0 %v3626, 112
        %v3677 = vpop.permute.xlu0 %3676
        %3680 = vrot.lane.b32.xlu0 %v3623, 96
        %v3681 = vpop.permute.xlu0 %3680
        %3682 = vrot.lane.b32.xlu0 %v3626, 96
        %v3683 = vpop.permute.xlu0 %3682
        %3686 = vrot.lane.b32.xlu0 %v3623, 80
        %v3687 = vpop.permute.xlu0 %3686
        %3688 = vrot.lane.b32.xlu0 %v3626, 80
        %v3689 = vpop.permute.xlu0 %3688
        %3692 = vrot.lane.b32.xlu0 %v3623, 64
        %v3693 = vpop.permute.xlu0 %3692
        %3694 = vrot.lane.b32.xlu0 %v3626, 64
        %v3695 = vpop.permute.xlu0 %3694
        %3698 = vrot.lane.b32.xlu0 %v3623, 48
        %v3699 = vpop.permute.xlu0 %3698
        %3700 = vrot.lane.b32.xlu0 %v3626, 48
        %v3701 = vpop.permute.xlu0 %3700
        %3704 = vrot.lane.b32.xlu0 %v3623, 32
        %v3705 = vpop.permute.xlu0 %3704
        %3706 = vrot.lane.b32.xlu0 %v3626, 32
        %v3707 = vpop.permute.xlu0 %3706
        %3710 = vrot.lane.b32.xlu0 %v3623, 16
        %v3711 = vpop.permute.xlu0 %3710
        %3712 = vrot.lane.b32.xlu0 %v3626, 16
        %v3713 = vpop.permute.xlu0 %3712
        %v3716 = vrot.slane %v3637, 4
        %v3717 = vsel %vm645, %v3716, %v3600
        %v3718 = vrot.slane %v3600, 4
        %v3719 = vsel %vm645, %v3637, %v3718
        %v3721 = vunpack.c.l.s4 1983009808
        %v3722 = vunpack.c.0.s8 %v3721
        %v3723 = vperm.slane %v3717, %v3722
        %v3725 = vunpack.c.l.s4 1983009808
        %v3726 = vunpack.c.0.s8 %v3725
        %v3727 = vperm.slane %v3719, %v3726
        %v3728 = vrot.slane %v3643, 4
        %v3729 = vsel %vm645, %v3728, %v3631
        %v3730 = vrot.slane %v3631, 4
        %v3731 = vsel %vm645, %v3643, %v3730
        %v3733 = vunpack.c.l.s4 1983009808
        %v3734 = vunpack.c.0.s8 %v3733
        %v3735 = vperm.slane %v3729, %v3734
        %v3737 = vunpack.c.l.s4 1983009808
        %v3738 = vunpack.c.0.s8 %v3737
        %v3739 = vperm.slane %v3731, %v3738
        %v3740 = vrot.slane %v3661, 4
        %v3741 = vsel %vm645, %v3740, %v3649
        %v3742 = vrot.slane %v3649, 4
        %v3743 = vsel %vm645, %v3661, %v3742
        %v3745 = vunpack.c.l.s4 1983009808
        %v3746 = vunpack.c.0.s8 %v3745
        %v3747 = vperm.slane %v3741, %v3746
        %v3749 = vunpack.c.l.s4 1983009808
        %v3750 = vunpack.c.0.s8 %v3749
        %v3751 = vperm.slane %v3743, %v3750
        %v3752 = vrot.slane %v3667, 4
        %v3753 = vsel %vm645, %v3752, %v3655
        %v3754 = vrot.slane %v3655, 4
        %v3755 = vsel %vm645, %v3667, %v3754
        %v3757 = vunpack.c.l.s4 1983009808
        %v3758 = vunpack.c.0.s8 %v3757
        %v3759 = vperm.slane %v3753, %v3758
        %v3761 = vunpack.c.l.s4 1983009808
        %v3762 = vunpack.c.0.s8 %v3761
        %v3763 = vperm.slane %v3755, %v3762
        %v3764 = vrot.slane %v3735, 4
        %v3765 = vsel %vm645, %v3764, %v3723
        %v3766 = vrot.slane %v3723, 4
        %v3767 = vsel %vm645, %v3735, %v3766
        %v3769 = vunpack.c.l.s4 1934713408
        %v3770 = vunpack.c.0.s8 %v3769
        %v3771 = vperm.slane %v3765, %v3770
        %v3773 = vunpack.c.l.s4 1934713408
        %v3774 = vunpack.c.0.s8 %v3773
        %v3775 = vperm.slane %v3767, %v3774
        %v3776 = vrot.slane %v3739, 4
        %v3777 = vsel %vm645, %v3776, %v3727
        %v3778 = vrot.slane %v3727, 4
        %v3779 = vsel %vm645, %v3739, %v3778
        %v3781 = vunpack.c.l.s4 1934713408
        %v3782 = vunpack.c.0.s8 %v3781
        %v3783 = vperm.slane %v3777, %v3782
        %v3785 = vunpack.c.l.s4 1934713408
        %v3786 = vunpack.c.0.s8 %v3785
        %v3787 = vperm.slane %v3779, %v3786
        %v3788 = vrot.slane %v3759, 4
        %v3789 = vsel %vm645, %v3788, %v3747
        %v3790 = vrot.slane %v3747, 4
        %v3791 = vsel %vm645, %v3759, %v3790
        %v3793 = vunpack.c.l.s4 1934713408
        %v3794 = vunpack.c.0.s8 %v3793
        %v3795 = vperm.slane %v3789, %v3794
        %v3797 = vunpack.c.l.s4 1934713408
        %v3798 = vunpack.c.0.s8 %v3797
        %v3799 = vperm.slane %v3791, %v3798
        %v3800 = vrot.slane %v3763, 4
        %v3801 = vsel %vm645, %v3800, %v3751
        %v3802 = vrot.slane %v3751, 4
        %v3803 = vsel %vm645, %v3763, %v3802
        %v3805 = vunpack.c.l.s4 1934713408
        %v3806 = vunpack.c.0.s8 %v3805
        %v3807 = vperm.slane %v3801, %v3806
        %v3809 = vunpack.c.l.s4 1934713408
        %v3810 = vunpack.c.0.s8 %v3809
        %v3811 = vperm.slane %v3803, %v3810
        %v3812 = vrot.slane %v3795, 4
        %v3813 = vsel %vm645, %v3812, %v3771
        %v3814 = vrot.slane %v3771, 4
        %v3815 = vsel %vm645, %v3795, %v3814
        %v3816 = vrot.slane %v3799, 4
        %v3817 = vsel %vm645, %v3816, %v3775
        %v3818 = vrot.slane %v3775, 4
        %v3819 = vsel %vm645, %v3799, %v3818
        %v3820 = vrot.slane %v3807, 4
        %v3821 = vsel %vm645, %v3820, %v3783
        %v3822 = vrot.slane %v3783, 4
        %v3823 = vsel %vm645, %v3807, %v3822
        %v3824 = vrot.slane %v3811, 4
        %v3825 = vsel %vm645, %v3824, %v3787
        %v3826 = vrot.slane %v3787, 4
        %v3827 = vsel %vm645, %v3811, %v3826
        %v3828 = vrot.slane %v3681, 4
        %v3829 = vsel %vm645, %v3828, %v3623
        %v3830 = vrot.slane %v3623, 4
        %v3831 = vsel %vm645, %v3681, %v3830
        %v3833 = vunpack.c.l.s4 1983009808
        %v3834 = vunpack.c.0.s8 %v3833
        %v3835 = vperm.slane %v3829, %v3834
        %v3837 = vunpack.c.l.s4 1983009808
        %v3838 = vunpack.c.0.s8 %v3837
        %v3839 = vperm.slane %v3831, %v3838
        %v3840 = vrot.slane %v3687, 4
        %v3841 = vsel %vm645, %v3840, %v3675
        %v3842 = vrot.slane %v3675, 4
        %v3843 = vsel %vm645, %v3687, %v3842
        %v3845 = vunpack.c.l.s4 1983009808
        %v3846 = vunpack.c.0.s8 %v3845
        %v3847 = vperm.slane %v3841, %v3846
        %v3849 = vunpack.c.l.s4 1983009808
        %v3850 = vunpack.c.0.s8 %v3849
        %v3851 = vperm.slane %v3843, %v3850
        %v3852 = vrot.slane %v3705, 4
        %v3853 = vsel %vm645, %v3852, %v3693
        %v3854 = vrot.slane %v3693, 4
        %v3855 = vsel %vm645, %v3705, %v3854
        %v3857 = vunpack.c.l.s4 1983009808
        %v3858 = vunpack.c.0.s8 %v3857
        %v3859 = vperm.slane %v3853, %v3858
        %v3861 = vunpack.c.l.s4 1983009808
        %v3862 = vunpack.c.0.s8 %v3861
        %v3863 = vperm.slane %v3855, %v3862
        %v3864 = vrot.slane %v3711, 4
        %v3865 = vsel %vm645, %v3864, %v3699
        %v3866 = vrot.slane %v3699, 4
        %v3867 = vsel %vm645, %v3711, %v3866
        %v3869 = vunpack.c.l.s4 1983009808
        %v3870 = vunpack.c.0.s8 %v3869
        %v3871 = vperm.slane %v3865, %v3870
        %v3873 = vunpack.c.l.s4 1983009808
        %v3874 = vunpack.c.0.s8 %v3873
        %v3875 = vperm.slane %v3867, %v3874
        %v3876 = vrot.slane %v3847, 4
        %v3877 = vsel %vm645, %v3876, %v3835
        %v3878 = vrot.slane %v3835, 4
        %v3879 = vsel %vm645, %v3847, %v3878
        %v3881 = vunpack.c.l.s4 1934713408
        %v3882 = vunpack.c.0.s8 %v3881
        %v3883 = vperm.slane %v3877, %v3882
        %v3885 = vunpack.c.l.s4 1934713408
        %v3886 = vunpack.c.0.s8 %v3885
        %v3887 = vperm.slane %v3879, %v3886
        %v3888 = vrot.slane %v3851, 4
        %v3889 = vsel %vm645, %v3888, %v3839
        %v3890 = vrot.slane %v3839, 4
        %v3891 = vsel %vm645, %v3851, %v3890
        %v3893 = vunpack.c.l.s4 1934713408
        %v3894 = vunpack.c.0.s8 %v3893
        %v3895 = vperm.slane %v3889, %v3894
        %v3897 = vunpack.c.l.s4 1934713408
        %v3898 = vunpack.c.0.s8 %v3897
        %v3899 = vperm.slane %v3891, %v3898
        %v3900 = vrot.slane %v3871, 4
        %v3901 = vsel %vm645, %v3900, %v3859
        %v3902 = vrot.slane %v3859, 4
        %v3903 = vsel %vm645, %v3871, %v3902
        %v3905 = vunpack.c.l.s4 1934713408
        %v3906 = vunpack.c.0.s8 %v3905
        %v3907 = vperm.slane %v3901, %v3906
        %v3909 = vunpack.c.l.s4 1934713408
        %v3910 = vunpack.c.0.s8 %v3909
        %v3911 = vperm.slane %v3903, %v3910
        %v3912 = vrot.slane %v3875, 4
        %v3913 = vsel %vm645, %v3912, %v3863
        %v3914 = vrot.slane %v3863, 4
        %v3915 = vsel %vm645, %v3875, %v3914
        %v3917 = vunpack.c.l.s4 1934713408
        %v3918 = vunpack.c.0.s8 %v3917
        %v3919 = vperm.slane %v3913, %v3918
        %v3921 = vunpack.c.l.s4 1934713408
        %v3922 = vunpack.c.0.s8 %v3921
        %v3923 = vperm.slane %v3915, %v3922
        %v3924 = vrot.slane %v3907, 4
        %v3925 = vsel %vm645, %v3924, %v3883
        %v3926 = vrot.slane %v3883, 4
        %v3927 = vsel %vm645, %v3907, %v3926
        %v3928 = vrot.slane %v3911, 4
        %v3929 = vsel %vm645, %v3928, %v3887
        %v3930 = vrot.slane %v3887, 4
        %v3931 = vsel %vm645, %v3911, %v3930
        %v3932 = vrot.slane %v3919, 4
        %v3933 = vsel %vm645, %v3932, %v3895
        %v3934 = vrot.slane %v3895, 4
        %v3935 = vsel %vm645, %v3919, %v3934
        %v3936 = vrot.slane %v3923, 4
        %v3937 = vsel %vm645, %v3936, %v3899
        %v3938 = vrot.slane %v3899, 4
        %v3939 = vsel %vm645, %v3923, %v3938
        %v3940 = vrot.slane %v3639, 4
        %v3941 = vsel %vm645, %v3940, %v3603
        %v3942 = vrot.slane %v3603, 4
        %v3943 = vsel %vm645, %v3639, %v3942
        %v3945 = vunpack.c.l.s4 1983009808
        %v3946 = vunpack.c.0.s8 %v3945
        %v3947 = vperm.slane %v3941, %v3946
        %v3949 = vunpack.c.l.s4 1983009808
        %v3950 = vunpack.c.0.s8 %v3949
        %v3951 = vperm.slane %v3943, %v3950
        %v3952 = vrot.slane %v3645, 4
        %v3953 = vsel %vm645, %v3952, %v3633
        %v3954 = vrot.slane %v3633, 4
        %v3955 = vsel %vm645, %v3645, %v3954
        %v3957 = vunpack.c.l.s4 1983009808
        %v3958 = vunpack.c.0.s8 %v3957
        %v3959 = vperm.slane %v3953, %v3958
        %v3961 = vunpack.c.l.s4 1983009808
        %v3962 = vunpack.c.0.s8 %v3961
        %v3963 = vperm.slane %v3955, %v3962
        %v3964 = vrot.slane %v3663, 4
        %v3965 = vsel %vm645, %v3964, %v3651
        %v3966 = vrot.slane %v3651, 4
        %v3967 = vsel %vm645, %v3663, %v3966
        %v3969 = vunpack.c.l.s4 1983009808
        %v3970 = vunpack.c.0.s8 %v3969
        %v3971 = vperm.slane %v3965, %v3970
        %v3973 = vunpack.c.l.s4 1983009808
        %v3974 = vunpack.c.0.s8 %v3973
        %v3975 = vperm.slane %v3967, %v3974
        %v3976 = vrot.slane %v3669, 4
        %v3977 = vsel %vm645, %v3976, %v3657
        %v3978 = vrot.slane %v3657, 4
        %v3979 = vsel %vm645, %v3669, %v3978
        %v3981 = vunpack.c.l.s4 1983009808
        %v3982 = vunpack.c.0.s8 %v3981
        %v3983 = vperm.slane %v3977, %v3982
        %v3985 = vunpack.c.l.s4 1983009808
        %v3986 = vunpack.c.0.s8 %v3985
        %v3987 = vperm.slane %v3979, %v3986
        %v3988 = vrot.slane %v3959, 4
        %v3989 = vsel %vm645, %v3988, %v3947
        %v3990 = vrot.slane %v3947, 4
        %v3991 = vsel %vm645, %v3959, %v3990
        %v3993 = vunpack.c.l.s4 1934713408
        %v3994 = vunpack.c.0.s8 %v3993
        %v3995 = vperm.slane %v3989, %v3994
        %v3997 = vunpack.c.l.s4 1934713408
        %v3998 = vunpack.c.0.s8 %v3997
        %v3999 = vperm.slane %v3991, %v3998
        %v4000 = vrot.slane %v3963, 4
        %v4001 = vsel %vm645, %v4000, %v3951
        %v4002 = vrot.slane %v3951, 4
        %v4003 = vsel %vm645, %v3963, %v4002
        %v4005 = vunpack.c.l.s4 1934713408
        %v4006 = vunpack.c.0.s8 %v4005
        %v4007 = vperm.slane %v4001, %v4006
        %v4009 = vunpack.c.l.s4 1934713408
        %v4010 = vunpack.c.0.s8 %v4009
        %v4011 = vperm.slane %v4003, %v4010
        %v4012 = vrot.slane %v3983, 4
        %v4013 = vsel %vm645, %v4012, %v3971
        %v4014 = vrot.slane %v3971, 4
        %v4015 = vsel %vm645, %v3983, %v4014
        %v4017 = vunpack.c.l.s4 1934713408
        %v4018 = vunpack.c.0.s8 %v4017
        %v4019 = vperm.slane %v4013, %v4018
        %v4021 = vunpack.c.l.s4 1934713408
        %v4022 = vunpack.c.0.s8 %v4021
        %v4023 = vperm.slane %v4015, %v4022
        %v4024 = vrot.slane %v3987, 4
        %v4025 = vsel %vm645, %v4024, %v3975
        %v4026 = vrot.slane %v3975, 4
        %v4027 = vsel %vm645, %v3987, %v4026
        %v4029 = vunpack.c.l.s4 1934713408
        %v4030 = vunpack.c.0.s8 %v4029
        %v4031 = vperm.slane %v4025, %v4030
        %v4033 = vunpack.c.l.s4 1934713408
        %v4034 = vunpack.c.0.s8 %v4033
        %v4035 = vperm.slane %v4027, %v4034
        %v4036 = vrot.slane %v4019, 4
        %v4037 = vsel %vm645, %v4036, %v3995
        %v4038 = vrot.slane %v3995, 4
        %v4039 = vsel %vm645, %v4019, %v4038
        %v4040 = vrot.slane %v4023, 4
        %v4041 = vsel %vm645, %v4040, %v3999
        %v4042 = vrot.slane %v3999, 4
        %v4043 = vsel %vm645, %v4023, %v4042
        %v4044 = vrot.slane %v4031, 4
        %v4045 = vsel %vm645, %v4044, %v4007
        %v4046 = vrot.slane %v4007, 4
        %v4047 = vsel %vm645, %v4031, %v4046
        %v4048 = vrot.slane %v4035, 4
        %v4049 = vsel %vm645, %v4048, %v4011
        %v4050 = vrot.slane %v4011, 4
        %v4051 = vsel %vm645, %v4035, %v4050
        %v4052 = vrot.slane %v3683, 4
        %v4053 = vsel %vm645, %v4052, %v3626
        %v4054 = vrot.slane %v3626, 4
        %v4055 = vsel %vm645, %v3683, %v4054
        %v4057 = vunpack.c.l.s4 1983009808
        %v4058 = vunpack.c.0.s8 %v4057
        %v4059 = vperm.slane %v4053, %v4058
        %v4061 = vunpack.c.l.s4 1983009808
        %v4062 = vunpack.c.0.s8 %v4061
        %v4063 = vperm.slane %v4055, %v4062
        %v4064 = vrot.slane %v3689, 4
        %v4065 = vsel %vm645, %v4064, %v3677
        %v4066 = vrot.slane %v3677, 4
        %v4067 = vsel %vm645, %v3689, %v4066
        %v4069 = vunpack.c.l.s4 1983009808
        %v4070 = vunpack.c.0.s8 %v4069
        %v4071 = vperm.slane %v4065, %v4070
        %v4073 = vunpack.c.l.s4 1983009808
        %v4074 = vunpack.c.0.s8 %v4073
        %v4075 = vperm.slane %v4067, %v4074
        %v4076 = vrot.slane %v3707, 4
        %v4077 = vsel %vm645, %v4076, %v3695
        %v4078 = vrot.slane %v3695, 4
        %v4079 = vsel %vm645, %v3707, %v4078
        %v4081 = vunpack.c.l.s4 1983009808
        %v4082 = vunpack.c.0.s8 %v4081
        %v4083 = vperm.slane %v4077, %v4082
        %v4085 = vunpack.c.l.s4 1983009808
        %v4086 = vunpack.c.0.s8 %v4085
        %v4087 = vperm.slane %v4079, %v4086
        %v4088 = vrot.slane %v3713, 4
        %v4089 = vsel %vm645, %v4088, %v3701
        %v4090 = vrot.slane %v3701, 4
        %v4091 = vsel %vm645, %v3713, %v4090
        %v4093 = vunpack.c.l.s4 1983009808
        %v4094 = vunpack.c.0.s8 %v4093
        %v4095 = vperm.slane %v4089, %v4094
        %v4097 = vunpack.c.l.s4 1983009808
        %v4098 = vunpack.c.0.s8 %v4097
        %v4099 = vperm.slane %v4091, %v4098
        %v4100 = vrot.slane %v4071, 4
        %v4101 = vsel %vm645, %v4100, %v4059
        %v4102 = vrot.slane %v4059, 4
        %v4103 = vsel %vm645, %v4071, %v4102
        %v4105 = vunpack.c.l.s4 1934713408
        %v4106 = vunpack.c.0.s8 %v4105
        %v4107 = vperm.slane %v4101, %v4106
        %v4109 = vunpack.c.l.s4 1934713408
        %v4110 = vunpack.c.0.s8 %v4109
        %v4111 = vperm.slane %v4103, %v4110
        %v4112 = vrot.slane %v4075, 4
        %v4113 = vsel %vm645, %v4112, %v4063
        %v4114 = vrot.slane %v4063, 4
        %v4115 = vsel %vm645, %v4075, %v4114
        %v4117 = vunpack.c.l.s4 1934713408
        %v4118 = vunpack.c.0.s8 %v4117
        %v4119 = vperm.slane %v4113, %v4118
        %v4121 = vunpack.c.l.s4 1934713408
        %v4122 = vunpack.c.0.s8 %v4121
        %v4123 = vperm.slane %v4115, %v4122
        %v4124 = vrot.slane %v4095, 4
        %v4125 = vsel %vm645, %v4124, %v4083
        %v4126 = vrot.slane %v4083, 4
        %v4127 = vsel %vm645, %v4095, %v4126
        %v4129 = vunpack.c.l.s4 1934713408
        %v4130 = vunpack.c.0.s8 %v4129
        %v4131 = vperm.slane %v4125, %v4130
        %v4133 = vunpack.c.l.s4 1934713408
        %v4134 = vunpack.c.0.s8 %v4133
        %v4135 = vperm.slane %v4127, %v4134
        %v4136 = vrot.slane %v4099, 4
        %v4137 = vsel %vm645, %v4136, %v4087
        %v4138 = vrot.slane %v4087, 4
        %v4139 = vsel %vm645, %v4099, %v4138
        %v4141 = vunpack.c.l.s4 1934713408
        %v4142 = vunpack.c.0.s8 %v4141
        %v4143 = vperm.slane %v4137, %v4142
        %v4145 = vunpack.c.l.s4 1934713408
        %v4146 = vunpack.c.0.s8 %v4145
        %v4147 = vperm.slane %v4139, %v4146
        %v4148 = vrot.slane %v4131, 4
        %v4149 = vsel %vm645, %v4148, %v4107
        %v4150 = vrot.slane %v4107, 4
        %v4151 = vsel %vm645, %v4131, %v4150
        %v4152 = vrot.slane %v4135, 4
        %v4153 = vsel %vm645, %v4152, %v4111
        %v4154 = vrot.slane %v4111, 4
        %v4155 = vsel %vm645, %v4135, %v4154
        %v4156 = vrot.slane %v4143, 4
        %v4157 = vsel %vm645, %v4156, %v4119
        %v4158 = vrot.slane %v4119, 4
        %v4159 = vsel %vm645, %v4143, %v4158
        %v4160 = vrot.slane %v4147, 4
        %v4161 = vsel %vm645, %v4160, %v4123
        %v4162 = vrot.slane %v4123, 4
        %v4163 = vsel %vm645, %v4147, %v4162
        %4164 = vmatpush.msra.mxu0 0.0
        %4165 = vmatpush.msra.mxu0 0.0
        %4166 = vmatpush.msra.mxu0 0.0
        %4167 = vmatpush.msra.mxu0 0.0
        %4168 = vmatpush.msra.mxu0 0.0
        %4169 = vmatpush.msra.mxu0 0.0
        %4170 = vmatpush.msra.mxu0 0.0
        %4171 = vmatpush.msra.mxu0 0.0
        %4172 = vmatpush.msra.mxu0 0.0
        %4173 = vmatpush.msra.mxu0 0.0
        %4174 = vmatpush.msra.mxu0 0.0
        %4175 = vmatpush.msra.mxu0 0.0
        %4176 = vmatpush.msra.mxu0 0.0
        %4177 = vmatpush.msra.mxu0 0.0
        %4178 = vmatpush.msra.mxu0 %v3925
        %4179 = vmatpush.msra.mxu0 %v3813
        %4180 = vmatmul.f32.gmra.mxu0 %v1677
        %v4181 = vpop.f32.mrf.mxu0
        %v4182 = vadd.f32 0.0, %v4181
        %4183 = vdwg.mxu0
        %4184 = vmatpush.msra.mxu0 0.0
        %4185 = vmatpush.msra.mxu0 0.0
        %4186 = vmatpush.msra.mxu0 0.0
        %4187 = vmatpush.msra.mxu0 0.0
        %4188 = vmatpush.msra.mxu0 0.0
        %4189 = vmatpush.msra.mxu0 0.0
        %4190 = vmatpush.msra.mxu0 0.0
        %4191 = vmatpush.msra.mxu0 0.0
        %4192 = vmatpush.msra.mxu0 0.0
        %4193 = vmatpush.msra.mxu0 0.0
        %4194 = vmatpush.msra.mxu0 0.0
        %4195 = vmatpush.msra.mxu0 0.0
        %4196 = vmatpush.msra.mxu0 0.0
        %4197 = vmatpush.msra.mxu0 0.0
        %4198 = vmatpush.msra.mxu0 %v3927
        %4199 = vmatpush.msra.mxu0 %v3815
        %4200 = vmatmul.f32.gmra.mxu0 %v1680
        %v4201 = vpop.f32.mrf.mxu0
        %v4202 = vadd.f32 0.0, %v4201
        %4203 = vdwg.mxu0
        %4204 = vmatpush.msra.mxu0 0.0
        %4205 = vmatpush.msra.mxu0 0.0
        %4206 = vmatpush.msra.mxu0 0.0
        %4207 = vmatpush.msra.mxu0 0.0
        %4208 = vmatpush.msra.mxu0 0.0
        %4209 = vmatpush.msra.mxu0 0.0
        %4210 = vmatpush.msra.mxu0 0.0
        %4211 = vmatpush.msra.mxu0 0.0
        %4212 = vmatpush.msra.mxu0 0.0
        %4213 = vmatpush.msra.mxu0 0.0
        %4214 = vmatpush.msra.mxu0 0.0
        %4215 = vmatpush.msra.mxu0 0.0
        %4216 = vmatpush.msra.mxu0 0.0
        %4217 = vmatpush.msra.mxu0 0.0
        %4218 = vmatpush.msra.mxu0 %v3929
        %4219 = vmatpush.msra.mxu0 %v3817
        %4220 = vmatmul.f32.gmra.mxu0 %v1683
        %v4221 = vpop.f32.mrf.mxu0
        %v4222 = vadd.f32 0.0, %v4221
        %4223 = vdwg.mxu0
        %4224 = vmatpush.msra.mxu0 0.0
        %4225 = vmatpush.msra.mxu0 0.0
        %4226 = vmatpush.msra.mxu0 0.0
        %4227 = vmatpush.msra.mxu0 0.0
        %4228 = vmatpush.msra.mxu0 0.0
        %4229 = vmatpush.msra.mxu0 0.0
        %4230 = vmatpush.msra.mxu0 0.0
        %4231 = vmatpush.msra.mxu0 0.0
        %4232 = vmatpush.msra.mxu0 0.0
        %4233 = vmatpush.msra.mxu0 0.0
        %4234 = vmatpush.msra.mxu0 0.0
        %4235 = vmatpush.msra.mxu0 0.0
        %4236 = vmatpush.msra.mxu0 0.0
        %4237 = vmatpush.msra.mxu0 0.0
        %4238 = vmatpush.msra.mxu0 %v3931
        %4239 = vmatpush.msra.mxu0 %v3819
        %4240 = vmatmul.f32.gmra.mxu0 %v1686
        %v4241 = vpop.f32.mrf.mxu0
        %v4242 = vadd.f32 0.0, %v4241
        %4243 = vdwg.mxu0
        %4244 = vmatpush.msra.mxu0 0.0
        %4245 = vmatpush.msra.mxu0 0.0
        %4246 = vmatpush.msra.mxu0 0.0
        %4247 = vmatpush.msra.mxu0 0.0
        %4248 = vmatpush.msra.mxu0 0.0
        %4249 = vmatpush.msra.mxu0 0.0
        %4250 = vmatpush.msra.mxu0 0.0
        %4251 = vmatpush.msra.mxu0 0.0
        %4252 = vmatpush.msra.mxu0 0.0
        %4253 = vmatpush.msra.mxu0 0.0
        %4254 = vmatpush.msra.mxu0 0.0
        %4255 = vmatpush.msra.mxu0 0.0
        %4256 = vmatpush.msra.mxu0 0.0
        %4257 = vmatpush.msra.mxu0 0.0
        %4258 = vmatpush.msra.mxu0 %v3933
        %4259 = vmatpush.msra.mxu0 %v3821
        %4260 = vmatmul.f32.gmra.mxu0 %v1689
        %v4261 = vpop.f32.mrf.mxu0
        %v4262 = vadd.f32 0.0, %v4261
        %4263 = vdwg.mxu0
        %4264 = vmatpush.msra.mxu0 0.0
        %4265 = vmatpush.msra.mxu0 0.0
        %4266 = vmatpush.msra.mxu0 0.0
        %4267 = vmatpush.msra.mxu0 0.0
        %4268 = vmatpush.msra.mxu0 0.0
        %4269 = vmatpush.msra.mxu0 0.0
        %4270 = vmatpush.msra.mxu0 0.0
        %4271 = vmatpush.msra.mxu0 0.0
        %4272 = vmatpush.msra.mxu0 0.0
        %4273 = vmatpush.msra.mxu0 0.0
        %4274 = vmatpush.msra.mxu0 0.0
        %4275 = vmatpush.msra.mxu0 0.0
        %4276 = vmatpush.msra.mxu0 0.0
        %4277 = vmatpush.msra.mxu0 0.0
        %4278 = vmatpush.msra.mxu0 %v3935
        %4279 = vmatpush.msra.mxu0 %v3823
        %4280 = vmatmul.f32.gmra.mxu0 %v1692
        %v4281 = vpop.f32.mrf.mxu0
        %v4282 = vadd.f32 0.0, %v4281
        %4283 = vdwg.mxu0
        %4284 = vmatpush.msra.mxu0 0.0
        %4285 = vmatpush.msra.mxu0 0.0
        %4286 = vmatpush.msra.mxu0 0.0
        %4287 = vmatpush.msra.mxu0 0.0
        %4288 = vmatpush.msra.mxu0 0.0
        %4289 = vmatpush.msra.mxu0 0.0
        %4290 = vmatpush.msra.mxu0 0.0
        %4291 = vmatpush.msra.mxu0 0.0
        %4292 = vmatpush.msra.mxu0 0.0
        %4293 = vmatpush.msra.mxu0 0.0
        %4294 = vmatpush.msra.mxu0 0.0
        %4295 = vmatpush.msra.mxu0 0.0
        %4296 = vmatpush.msra.mxu0 0.0
        %4297 = vmatpush.msra.mxu0 0.0
        %4298 = vmatpush.msra.mxu0 %v3937
        %4299 = vmatpush.msra.mxu0 %v3825
        %4300 = vmatmul.f32.gmra.mxu0 %v1695
        %v4301 = vpop.f32.mrf.mxu0
        %v4302 = vadd.f32 0.0, %v4301
        %4303 = vdwg.mxu0
        %4304 = vmatpush.msra.mxu0 0.0
        %4305 = vmatpush.msra.mxu0 0.0
        %4306 = vmatpush.msra.mxu0 0.0
        %4307 = vmatpush.msra.mxu0 0.0
        %4308 = vmatpush.msra.mxu0 0.0
        %4309 = vmatpush.msra.mxu0 0.0
        %4310 = vmatpush.msra.mxu0 0.0
        %4311 = vmatpush.msra.mxu0 0.0
        %4312 = vmatpush.msra.mxu0 0.0
        %4313 = vmatpush.msra.mxu0 0.0
        %4314 = vmatpush.msra.mxu0 0.0
        %4315 = vmatpush.msra.mxu0 0.0
        %4316 = vmatpush.msra.mxu0 0.0
        %4317 = vmatpush.msra.mxu0 0.0
        %4318 = vmatpush.msra.mxu0 %v3939
        %4319 = vmatpush.msra.mxu0 %v3827
        %4320 = vmatmul.f32.gmra.mxu0 %v1698
        %v4321 = vpop.f32.mrf.mxu0
        %v4322 = vadd.f32 0.0, %v4321
        %4323 = vdwg.mxu0
        %4324 = vmatpush.msra.mxu0 0.0
        %4325 = vmatpush.msra.mxu0 0.0
        %4326 = vmatpush.msra.mxu0 0.0
        %4327 = vmatpush.msra.mxu0 0.0
        %4328 = vmatpush.msra.mxu0 0.0
        %4329 = vmatpush.msra.mxu0 0.0
        %4330 = vmatpush.msra.mxu0 0.0
        %4331 = vmatpush.msra.mxu0 0.0
        %4332 = vmatpush.msra.mxu0 0.0
        %4333 = vmatpush.msra.mxu0 0.0
        %4334 = vmatpush.msra.mxu0 0.0
        %4335 = vmatpush.msra.mxu0 0.0
        %4336 = vmatpush.msra.mxu0 0.0
        %4337 = vmatpush.msra.mxu0 0.0
        %4338 = vmatpush.msra.mxu0 %v4149
        %4339 = vmatpush.msra.mxu0 %v4037
        %4340 = vmatmul.f32.gmra.mxu0 %v1701
        %v4341 = vpop.f32.mrf.mxu0
        %v4342 = vadd.f32 0.0, %v4341
        %4343 = vdwg.mxu0
        %4344 = vmatpush.msra.mxu0 0.0
        %4345 = vmatpush.msra.mxu0 0.0
        %4346 = vmatpush.msra.mxu0 0.0
        %4347 = vmatpush.msra.mxu0 0.0
        %4348 = vmatpush.msra.mxu0 0.0
        %4349 = vmatpush.msra.mxu0 0.0
        %4350 = vmatpush.msra.mxu0 0.0
        %4351 = vmatpush.msra.mxu0 0.0
        %4352 = vmatpush.msra.mxu0 0.0
        %4353 = vmatpush.msra.mxu0 0.0
        %4354 = vmatpush.msra.mxu0 0.0
        %4355 = vmatpush.msra.mxu0 0.0
        %4356 = vmatpush.msra.mxu0 0.0
        %4357 = vmatpush.msra.mxu0 0.0
        %4358 = vmatpush.msra.mxu0 %v4151
        %4359 = vmatpush.msra.mxu0 %v4039
        %4360 = vmatmul.f32.gmra.mxu0 %v1704
        %v4361 = vpop.f32.mrf.mxu0
        %v4362 = vadd.f32 0.0, %v4361
        %4363 = vdwg.mxu0
        %4364 = vmatpush.msra.mxu0 0.0
        %4365 = vmatpush.msra.mxu0 0.0
        %4366 = vmatpush.msra.mxu0 0.0
        %4367 = vmatpush.msra.mxu0 0.0
        %4368 = vmatpush.msra.mxu0 0.0
        %4369 = vmatpush.msra.mxu0 0.0
        %4370 = vmatpush.msra.mxu0 0.0
        %4371 = vmatpush.msra.mxu0 0.0
        %4372 = vmatpush.msra.mxu0 0.0
        %4373 = vmatpush.msra.mxu0 0.0
        %4374 = vmatpush.msra.mxu0 0.0
        %4375 = vmatpush.msra.mxu0 0.0
        %4376 = vmatpush.msra.mxu0 0.0
        %4377 = vmatpush.msra.mxu0 0.0
        %4378 = vmatpush.msra.mxu0 %v4153
        %4379 = vmatpush.msra.mxu0 %v4041
        %4380 = vmatmul.f32.gmra.mxu0 %v1707
        %v4381 = vpop.f32.mrf.mxu0
        %v4382 = vadd.f32 0.0, %v4381
        %4383 = vdwg.mxu0
        %4384 = vmatpush.msra.mxu0 0.0
        %4385 = vmatpush.msra.mxu0 0.0
        %4386 = vmatpush.msra.mxu0 0.0
        %4387 = vmatpush.msra.mxu0 0.0
        %4388 = vmatpush.msra.mxu0 0.0
        %4389 = vmatpush.msra.mxu0 0.0
        %4390 = vmatpush.msra.mxu0 0.0
        %4391 = vmatpush.msra.mxu0 0.0
        %4392 = vmatpush.msra.mxu0 0.0
        %4393 = vmatpush.msra.mxu0 0.0
        %4394 = vmatpush.msra.mxu0 0.0
        %4395 = vmatpush.msra.mxu0 0.0
        %4396 = vmatpush.msra.mxu0 0.0
        %4397 = vmatpush.msra.mxu0 0.0
        %4398 = vmatpush.msra.mxu0 %v4155
        %4399 = vmatpush.msra.mxu0 %v4043
        %4400 = vmatmul.f32.gmra.mxu0 %v1710
        %v4401 = vpop.f32.mrf.mxu0
        %v4402 = vadd.f32 0.0, %v4401
        %4403 = vdwg.mxu0
        %4404 = vmatpush.msra.mxu0 0.0
        %4405 = vmatpush.msra.mxu0 0.0
        %4406 = vmatpush.msra.mxu0 0.0
        %4407 = vmatpush.msra.mxu0 0.0
        %4408 = vmatpush.msra.mxu0 0.0
        %4409 = vmatpush.msra.mxu0 0.0
        %4410 = vmatpush.msra.mxu0 0.0
        %4411 = vmatpush.msra.mxu0 0.0
        %4412 = vmatpush.msra.mxu0 0.0
        %4413 = vmatpush.msra.mxu0 0.0
        %4414 = vmatpush.msra.mxu0 0.0
        %4415 = vmatpush.msra.mxu0 0.0
        %4416 = vmatpush.msra.mxu0 0.0
        %4417 = vmatpush.msra.mxu0 0.0
        %4418 = vmatpush.msra.mxu0 %v4157
        %4419 = vmatpush.msra.mxu0 %v4045
        %4420 = vmatmul.f32.gmra.mxu0 %v1713
        %v4421 = vpop.f32.mrf.mxu0
        %v4422 = vadd.f32 0.0, %v4421
        %4423 = vdwg.mxu0
        %4424 = vmatpush.msra.mxu0 0.0
        %4425 = vmatpush.msra.mxu0 0.0
        %4426 = vmatpush.msra.mxu0 0.0
        %4427 = vmatpush.msra.mxu0 0.0
        %4428 = vmatpush.msra.mxu0 0.0
        %4429 = vmatpush.msra.mxu0 0.0
        %4430 = vmatpush.msra.mxu0 0.0
        %4431 = vmatpush.msra.mxu0 0.0
        %4432 = vmatpush.msra.mxu0 0.0
        %4433 = vmatpush.msra.mxu0 0.0
        %4434 = vmatpush.msra.mxu0 0.0
        %4435 = vmatpush.msra.mxu0 0.0
        %4436 = vmatpush.msra.mxu0 0.0
        %4437 = vmatpush.msra.mxu0 0.0
        %4438 = vmatpush.msra.mxu0 %v4159
        %4439 = vmatpush.msra.mxu0 %v4047
        %4440 = vmatmul.f32.gmra.mxu0 %v1716
        %v4441 = vpop.f32.mrf.mxu0
        %v4442 = vadd.f32 0.0, %v4441
        %4443 = vdwg.mxu0
        %4444 = vmatpush.msra.mxu0 0.0
        %4445 = vmatpush.msra.mxu0 0.0
        %4446 = vmatpush.msra.mxu0 0.0
        %4447 = vmatpush.msra.mxu0 0.0
        %4448 = vmatpush.msra.mxu0 0.0
        %4449 = vmatpush.msra.mxu0 0.0
        %4450 = vmatpush.msra.mxu0 0.0
        %4451 = vmatpush.msra.mxu0 0.0
        %4452 = vmatpush.msra.mxu0 0.0
        %4453 = vmatpush.msra.mxu0 0.0
        %4454 = vmatpush.msra.mxu0 0.0
        %4455 = vmatpush.msra.mxu0 0.0
        %4456 = vmatpush.msra.mxu0 0.0
        %4457 = vmatpush.msra.mxu0 0.0
        %4458 = vmatpush.msra.mxu0 %v4161
        %4459 = vmatpush.msra.mxu0 %v4049
        %4460 = vmatmul.f32.gmra.mxu0 %v1719
        %v4461 = vpop.f32.mrf.mxu0
        %v4462 = vadd.f32 0.0, %v4461
        %4463 = vdwg.mxu0
        %4464 = vmatpush.msra.mxu0 0.0
        %4465 = vmatpush.msra.mxu0 0.0
        %4466 = vmatpush.msra.mxu0 0.0
        %4467 = vmatpush.msra.mxu0 0.0
        %4468 = vmatpush.msra.mxu0 0.0
        %4469 = vmatpush.msra.mxu0 0.0
        %4470 = vmatpush.msra.mxu0 0.0
        %4471 = vmatpush.msra.mxu0 0.0
        %4472 = vmatpush.msra.mxu0 0.0
        %4473 = vmatpush.msra.mxu0 0.0
        %4474 = vmatpush.msra.mxu0 0.0
        %4475 = vmatpush.msra.mxu0 0.0
        %4476 = vmatpush.msra.mxu0 0.0
        %4477 = vmatpush.msra.mxu0 0.0
        %4478 = vmatpush.msra.mxu0 %v4163
        %4479 = vmatpush.msra.mxu0 %v4051
        %4480 = vmatmul.f32.gmra.mxu0 %v1722
        %v4481 = vpop.f32.mrf.mxu0
        %v4482 = vadd.f32 0.0, %v4481
        %4483 = vdwg.mxu0
        %4484 = vmatpush.msra.mxu0 0.0
        %4485 = vmatpush.msra.mxu0 0.0
        %4486 = vmatpush.msra.mxu0 0.0
        %4487 = vmatpush.msra.mxu0 0.0
        %4488 = vmatpush.msra.mxu0 0.0
        %4489 = vmatpush.msra.mxu0 0.0
        %4490 = vmatpush.msra.mxu0 0.0
        %4491 = vmatpush.msra.mxu0 0.0
        %4492 = vmatpush.msra.mxu0 0.0
        %4493 = vmatpush.msra.mxu0 0.0
        %4494 = vmatpush.msra.mxu0 0.0
        %4495 = vmatpush.msra.mxu0 0.0
        %4496 = vmatpush.msra.mxu0 0.0
        %4497 = vmatpush.msra.mxu0 0.0
        %4498 = vmatpush.msra.mxu0 %v2873
        %4499 = vmatpush.msra.mxu0 %v2761
        %4500 = vmatmul.f32.gmra.mxu0 %v1545
        %v4501 = vpop.f32.mrf.mxu0
        %v4502 = vadd.f32 %v4182, %v4501
        %4503 = vdwg.mxu0
        %4504 = vmatpush.msra.mxu0 0.0
        %4505 = vmatpush.msra.mxu0 0.0
        %4506 = vmatpush.msra.mxu0 0.0
        %4507 = vmatpush.msra.mxu0 0.0
        %4508 = vmatpush.msra.mxu0 0.0
        %4509 = vmatpush.msra.mxu0 0.0
        %4510 = vmatpush.msra.mxu0 0.0
        %4511 = vmatpush.msra.mxu0 0.0
        %4512 = vmatpush.msra.mxu0 0.0
        %4513 = vmatpush.msra.mxu0 0.0
        %4514 = vmatpush.msra.mxu0 0.0
        %4515 = vmatpush.msra.mxu0 0.0
        %4516 = vmatpush.msra.mxu0 0.0
        %4517 = vmatpush.msra.mxu0 0.0
        %4518 = vmatpush.msra.mxu0 %v2875
        %4519 = vmatpush.msra.mxu0 %v2763
        %4520 = vmatmul.f32.gmra.mxu0 %v1548
        %v4521 = vpop.f32.mrf.mxu0
        %v4522 = vadd.f32 %v4202, %v4521
        %4523 = vdwg.mxu0
        %4524 = vmatpush.msra.mxu0 0.0
        %4525 = vmatpush.msra.mxu0 0.0
        %4526 = vmatpush.msra.mxu0 0.0
        %4527 = vmatpush.msra.mxu0 0.0
        %4528 = vmatpush.msra.mxu0 0.0
        %4529 = vmatpush.msra.mxu0 0.0
        %4530 = vmatpush.msra.mxu0 0.0
        %4531 = vmatpush.msra.mxu0 0.0
        %4532 = vmatpush.msra.mxu0 0.0
        %4533 = vmatpush.msra.mxu0 0.0
        %4534 = vmatpush.msra.mxu0 0.0
        %4535 = vmatpush.msra.mxu0 0.0
        %4536 = vmatpush.msra.mxu0 0.0
        %4537 = vmatpush.msra.mxu0 0.0
        %4538 = vmatpush.msra.mxu0 %v2877
        %4539 = vmatpush.msra.mxu0 %v2765
        %4540 = vmatmul.f32.gmra.mxu0 %v1551
        %v4541 = vpop.f32.mrf.mxu0
        %v4542 = vadd.f32 %v4222, %v4541
        %4543 = vdwg.mxu0
        %4544 = vmatpush.msra.mxu0 0.0
        %4545 = vmatpush.msra.mxu0 0.0
        %4546 = vmatpush.msra.mxu0 0.0
        %4547 = vmatpush.msra.mxu0 0.0
        %4548 = vmatpush.msra.mxu0 0.0
        %4549 = vmatpush.msra.mxu0 0.0
        %4550 = vmatpush.msra.mxu0 0.0
        %4551 = vmatpush.msra.mxu0 0.0
        %4552 = vmatpush.msra.mxu0 0.0
        %4553 = vmatpush.msra.mxu0 0.0
        %4554 = vmatpush.msra.mxu0 0.0
        %4555 = vmatpush.msra.mxu0 0.0
        %4556 = vmatpush.msra.mxu0 0.0
        %4557 = vmatpush.msra.mxu0 0.0
        %4558 = vmatpush.msra.mxu0 %v2879
        %4559 = vmatpush.msra.mxu0 %v2767
        %4560 = vmatmul.f32.gmra.mxu0 %v1554
        %v4561 = vpop.f32.mrf.mxu0
        %v4562 = vadd.f32 %v4242, %v4561
        %4563 = vdwg.mxu0
        %4564 = vmatpush.msra.mxu0 0.0
        %4565 = vmatpush.msra.mxu0 0.0
        %4566 = vmatpush.msra.mxu0 0.0
        %4567 = vmatpush.msra.mxu0 0.0
        %4568 = vmatpush.msra.mxu0 0.0
        %4569 = vmatpush.msra.mxu0 0.0
        %4570 = vmatpush.msra.mxu0 0.0
        %4571 = vmatpush.msra.mxu0 0.0
        %4572 = vmatpush.msra.mxu0 0.0
        %4573 = vmatpush.msra.mxu0 0.0
        %4574 = vmatpush.msra.mxu0 0.0
        %4575 = vmatpush.msra.mxu0 0.0
        %4576 = vmatpush.msra.mxu0 0.0
        %4577 = vmatpush.msra.mxu0 0.0
        %4578 = vmatpush.msra.mxu0 %v2881
        %4579 = vmatpush.msra.mxu0 %v2769
        %4580 = vmatmul.f32.gmra.mxu0 %v1557
        %v4581 = vpop.f32.mrf.mxu0
        %v4582 = vadd.f32 %v4262, %v4581
        %4583 = vdwg.mxu0
        %4584 = vmatpush.msra.mxu0 0.0
        %4585 = vmatpush.msra.mxu0 0.0
        %4586 = vmatpush.msra.mxu0 0.0
        %4587 = vmatpush.msra.mxu0 0.0
        %4588 = vmatpush.msra.mxu0 0.0
        %4589 = vmatpush.msra.mxu0 0.0
        %4590 = vmatpush.msra.mxu0 0.0
        %4591 = vmatpush.msra.mxu0 0.0
        %4592 = vmatpush.msra.mxu0 0.0
        %4593 = vmatpush.msra.mxu0 0.0
        %4594 = vmatpush.msra.mxu0 0.0
        %4595 = vmatpush.msra.mxu0 0.0
        %4596 = vmatpush.msra.mxu0 0.0
        %4597 = vmatpush.msra.mxu0 0.0
        %4598 = vmatpush.msra.mxu0 %v2883
        %4599 = vmatpush.msra.mxu0 %v2771
        %4600 = vmatmul.f32.gmra.mxu0 %v1560
        %v4601 = vpop.f32.mrf.mxu0
        %v4602 = vadd.f32 %v4282, %v4601
        %4603 = vdwg.mxu0
        %4604 = vmatpush.msra.mxu0 0.0
        %4605 = vmatpush.msra.mxu0 0.0
        %4606 = vmatpush.msra.mxu0 0.0
        %4607 = vmatpush.msra.mxu0 0.0
        %4608 = vmatpush.msra.mxu0 0.0
        %4609 = vmatpush.msra.mxu0 0.0
        %4610 = vmatpush.msra.mxu0 0.0
        %4611 = vmatpush.msra.mxu0 0.0
        %4612 = vmatpush.msra.mxu0 0.0
        %4613 = vmatpush.msra.mxu0 0.0
        %4614 = vmatpush.msra.mxu0 0.0
        %4615 = vmatpush.msra.mxu0 0.0
        %4616 = vmatpush.msra.mxu0 0.0
        %4617 = vmatpush.msra.mxu0 0.0
        %4618 = vmatpush.msra.mxu0 %v2885
        %4619 = vmatpush.msra.mxu0 %v2773
        %4620 = vmatmul.f32.gmra.mxu0 %v1563
        %v4621 = vpop.f32.mrf.mxu0
        %v4622 = vadd.f32 %v4302, %v4621
        %4623 = vdwg.mxu0
        %4624 = vmatpush.msra.mxu0 0.0
        %4625 = vmatpush.msra.mxu0 0.0
        %4626 = vmatpush.msra.mxu0 0.0
        %4627 = vmatpush.msra.mxu0 0.0
        %4628 = vmatpush.msra.mxu0 0.0
        %4629 = vmatpush.msra.mxu0 0.0
        %4630 = vmatpush.msra.mxu0 0.0
        %4631 = vmatpush.msra.mxu0 0.0
        %4632 = vmatpush.msra.mxu0 0.0
        %4633 = vmatpush.msra.mxu0 0.0
        %4634 = vmatpush.msra.mxu0 0.0
        %4635 = vmatpush.msra.mxu0 0.0
        %4636 = vmatpush.msra.mxu0 0.0
        %4637 = vmatpush.msra.mxu0 0.0
        %4638 = vmatpush.msra.mxu0 %v2887
        %4639 = vmatpush.msra.mxu0 %v2775
        %4640 = vmatmul.f32.gmra.mxu0 %v1566
        %v4641 = vpop.f32.mrf.mxu0
        %v4642 = vadd.f32 %v4322, %v4641
        %4643 = vdwg.mxu0
        %4644 = vmatpush.msra.mxu0 0.0
        %4645 = vmatpush.msra.mxu0 0.0
        %4646 = vmatpush.msra.mxu0 0.0
        %4647 = vmatpush.msra.mxu0 0.0
        %4648 = vmatpush.msra.mxu0 0.0
        %4649 = vmatpush.msra.mxu0 0.0
        %4650 = vmatpush.msra.mxu0 0.0
        %4651 = vmatpush.msra.mxu0 0.0
        %4652 = vmatpush.msra.mxu0 0.0
        %4653 = vmatpush.msra.mxu0 0.0
        %4654 = vmatpush.msra.mxu0 0.0
        %4655 = vmatpush.msra.mxu0 0.0
        %4656 = vmatpush.msra.mxu0 0.0
        %4657 = vmatpush.msra.mxu0 0.0
        %4658 = vmatpush.msra.mxu0 %v3097
        %4659 = vmatpush.msra.mxu0 %v2985
        %4660 = vmatmul.f32.gmra.mxu0 %v1569
        %v4661 = vpop.f32.mrf.mxu0
        %v4662 = vadd.f32 %v4342, %v4661
        %4663 = vdwg.mxu0
        %4664 = vmatpush.msra.mxu0 0.0
        %4665 = vmatpush.msra.mxu0 0.0
        %4666 = vmatpush.msra.mxu0 0.0
        %4667 = vmatpush.msra.mxu0 0.0
        %4668 = vmatpush.msra.mxu0 0.0
        %4669 = vmatpush.msra.mxu0 0.0
        %4670 = vmatpush.msra.mxu0 0.0
        %4671 = vmatpush.msra.mxu0 0.0
        %4672 = vmatpush.msra.mxu0 0.0
        %4673 = vmatpush.msra.mxu0 0.0
        %4674 = vmatpush.msra.mxu0 0.0
        %4675 = vmatpush.msra.mxu0 0.0
        %4676 = vmatpush.msra.mxu0 0.0
        %4677 = vmatpush.msra.mxu0 0.0
        %4678 = vmatpush.msra.mxu0 %v3099
        %4679 = vmatpush.msra.mxu0 %v2987
        %4680 = vmatmul.f32.gmra.mxu0 %v1572
        %v4681 = vpop.f32.mrf.mxu0
        %v4682 = vadd.f32 %v4362, %v4681
        %4683 = vdwg.mxu0
        %4684 = vmatpush.msra.mxu0 0.0
        %4685 = vmatpush.msra.mxu0 0.0
        %4686 = vmatpush.msra.mxu0 0.0
        %4687 = vmatpush.msra.mxu0 0.0
        %4688 = vmatpush.msra.mxu0 0.0
        %4689 = vmatpush.msra.mxu0 0.0
        %4690 = vmatpush.msra.mxu0 0.0
        %4691 = vmatpush.msra.mxu0 0.0
        %4692 = vmatpush.msra.mxu0 0.0
        %4693 = vmatpush.msra.mxu0 0.0
        %4694 = vmatpush.msra.mxu0 0.0
        %4695 = vmatpush.msra.mxu0 0.0
        %4696 = vmatpush.msra.mxu0 0.0
        %4697 = vmatpush.msra.mxu0 0.0
        %4698 = vmatpush.msra.mxu0 %v3101
        %4699 = vmatpush.msra.mxu0 %v2989
        %4700 = vmatmul.f32.gmra.mxu0 %v1575
        %v4701 = vpop.f32.mrf.mxu0
        %v4702 = vadd.f32 %v4382, %v4701
        %4703 = vdwg.mxu0
        %4704 = vmatpush.msra.mxu0 0.0
        %4705 = vmatpush.msra.mxu0 0.0
        %4706 = vmatpush.msra.mxu0 0.0
        %4707 = vmatpush.msra.mxu0 0.0
        %4708 = vmatpush.msra.mxu0 0.0
        %4709 = vmatpush.msra.mxu0 0.0
        %4710 = vmatpush.msra.mxu0 0.0
        %4711 = vmatpush.msra.mxu0 0.0
        %4712 = vmatpush.msra.mxu0 0.0
        %4713 = vmatpush.msra.mxu0 0.0
        %4714 = vmatpush.msra.mxu0 0.0
        %4715 = vmatpush.msra.mxu0 0.0
        %4716 = vmatpush.msra.mxu0 0.0
        %4717 = vmatpush.msra.mxu0 0.0
        %4718 = vmatpush.msra.mxu0 %v3103
        %4719 = vmatpush.msra.mxu0 %v2991
        %4720 = vmatmul.f32.gmra.mxu0 %v1578
        %v4721 = vpop.f32.mrf.mxu0
        %v4722 = vadd.f32 %v4402, %v4721
        %4723 = vdwg.mxu0
        %4724 = vmatpush.msra.mxu0 0.0
        %4725 = vmatpush.msra.mxu0 0.0
        %4726 = vmatpush.msra.mxu0 0.0
        %4727 = vmatpush.msra.mxu0 0.0
        %4728 = vmatpush.msra.mxu0 0.0
        %4729 = vmatpush.msra.mxu0 0.0
        %4730 = vmatpush.msra.mxu0 0.0
        %4731 = vmatpush.msra.mxu0 0.0
        %4732 = vmatpush.msra.mxu0 0.0
        %4733 = vmatpush.msra.mxu0 0.0
        %4734 = vmatpush.msra.mxu0 0.0
        %4735 = vmatpush.msra.mxu0 0.0
        %4736 = vmatpush.msra.mxu0 0.0
        %4737 = vmatpush.msra.mxu0 0.0
        %4738 = vmatpush.msra.mxu0 %v3105
        %4739 = vmatpush.msra.mxu0 %v2993
        %4740 = vmatmul.f32.gmra.mxu0 %v1581
        %v4741 = vpop.f32.mrf.mxu0
        %v4742 = vadd.f32 %v4422, %v4741
        %4743 = vdwg.mxu0
        %4744 = vmatpush.msra.mxu0 0.0
        %4745 = vmatpush.msra.mxu0 0.0
        %4746 = vmatpush.msra.mxu0 0.0
        %4747 = vmatpush.msra.mxu0 0.0
        %4748 = vmatpush.msra.mxu0 0.0
        %4749 = vmatpush.msra.mxu0 0.0
        %4750 = vmatpush.msra.mxu0 0.0
        %4751 = vmatpush.msra.mxu0 0.0
        %4752 = vmatpush.msra.mxu0 0.0
        %4753 = vmatpush.msra.mxu0 0.0
        %4754 = vmatpush.msra.mxu0 0.0
        %4755 = vmatpush.msra.mxu0 0.0
        %4756 = vmatpush.msra.mxu0 0.0
        %4757 = vmatpush.msra.mxu0 0.0
        %4758 = vmatpush.msra.mxu0 %v3107
        %4759 = vmatpush.msra.mxu0 %v2995
        %4760 = vmatmul.f32.gmra.mxu0 %v1584
        %v4761 = vpop.f32.mrf.mxu0
        %v4762 = vadd.f32 %v4442, %v4761
        %4763 = vdwg.mxu0
        %4764 = vmatpush.msra.mxu0 0.0
        %4765 = vmatpush.msra.mxu0 0.0
        %4766 = vmatpush.msra.mxu0 0.0
        %4767 = vmatpush.msra.mxu0 0.0
        %4768 = vmatpush.msra.mxu0 0.0
        %4769 = vmatpush.msra.mxu0 0.0
        %4770 = vmatpush.msra.mxu0 0.0
        %4771 = vmatpush.msra.mxu0 0.0
        %4772 = vmatpush.msra.mxu0 0.0
        %4773 = vmatpush.msra.mxu0 0.0
        %4774 = vmatpush.msra.mxu0 0.0
        %4775 = vmatpush.msra.mxu0 0.0
        %4776 = vmatpush.msra.mxu0 0.0
        %4777 = vmatpush.msra.mxu0 0.0
        %4778 = vmatpush.msra.mxu0 %v3109
        %4779 = vmatpush.msra.mxu0 %v2997
        %4780 = vmatmul.f32.gmra.mxu0 %v1587
        %v4781 = vpop.f32.mrf.mxu0
        %v4782 = vadd.f32 %v4462, %v4781
        %4783 = vdwg.mxu0
        %4784 = vmatpush.msra.mxu0 0.0
        %4785 = vmatpush.msra.mxu0 0.0
        %4786 = vmatpush.msra.mxu0 0.0
        %4787 = vmatpush.msra.mxu0 0.0
        %4788 = vmatpush.msra.mxu0 0.0
        %4789 = vmatpush.msra.mxu0 0.0
        %4790 = vmatpush.msra.mxu0 0.0
        %4791 = vmatpush.msra.mxu0 0.0
        %4792 = vmatpush.msra.mxu0 0.0
        %4793 = vmatpush.msra.mxu0 0.0
        %4794 = vmatpush.msra.mxu0 0.0
        %4795 = vmatpush.msra.mxu0 0.0
        %4796 = vmatpush.msra.mxu0 0.0
        %4797 = vmatpush.msra.mxu0 0.0
        %4798 = vmatpush.msra.mxu0 %v3111
        %4799 = vmatpush.msra.mxu0 %v2999
        %4800 = vmatmul.f32.gmra.mxu0 %v1590
        %v4801 = vpop.f32.mrf.mxu0
        %v4802 = vadd.f32 %v4482, %v4801
        %4803 = vdwg.mxu0
        %v4805 = vrot.slane %v2042, 1
        %v4806 = vrot.slane %v2042, 2
        %v4807 = vrot.slane %v2042, 3
        %v4808 = vrot.slane %v2042, 4
        %v4809 = vrot.slane %v2042, 5
        %v4810 = vrot.slane %v2042, 6
        %v4811 = vrot.slane %v2042, 7
        %v4812 = vperm.slane %v2051, 0
        %v4813 = vlaneseq
        %v4814 = vshrl.u32 %v4813, 7
        %4816 = vset.pattern.permute.xlu0 %v4814
        %4817 = vperm.xlu0 %4816, %v4812
        %v4818 = vpop.permute.xlu0 %4817
        %v4819 = vlaneseq
        %v4820 = vshrl.u32 %v4819, 7
        %v4821 = vadd.s32 %v4820, 8
        %4822 = vset.pattern.permute.xlu0 %v4821
        %4823 = vperm.xlu0 %4822, %v4812
        %v4824 = vpop.permute.xlu0 %4823
        %v4825 = vperm.slane %v2051, 1
        %v4826 = vlaneseq
        %v4827 = vshrl.u32 %v4826, 7
        %4829 = vset.pattern.permute.xlu0 %v4827
        %4830 = vperm.xlu0 %4829, %v4825
        %v4831 = vpop.permute.xlu0 %4830
        %v4832 = vlaneseq
        %v4833 = vshrl.u32 %v4832, 7
        %v4834 = vadd.s32 %v4833, 8
        %4835 = vset.pattern.permute.xlu0 %v4834
        %4836 = vperm.xlu0 %4835, %v4825
        %v4837 = vpop.permute.xlu0 %4836
        %v4838 = vperm.slane %v2051, 2
        %v4839 = vlaneseq
        %v4840 = vshrl.u32 %v4839, 7
        %4842 = vset.pattern.permute.xlu0 %v4840
        %4843 = vperm.xlu0 %4842, %v4838
        %v4844 = vpop.permute.xlu0 %4843
        %v4845 = vlaneseq
        %v4846 = vshrl.u32 %v4845, 7
        %v4847 = vadd.s32 %v4846, 8
        %4848 = vset.pattern.permute.xlu0 %v4847
        %4849 = vperm.xlu0 %4848, %v4838
        %v4850 = vpop.permute.xlu0 %4849
        %v4851 = vperm.slane %v2051, 3
        %v4852 = vlaneseq
        %v4853 = vshrl.u32 %v4852, 7
        %4855 = vset.pattern.permute.xlu0 %v4853
        %4856 = vperm.xlu0 %4855, %v4851
        %v4857 = vpop.permute.xlu0 %4856
        %v4858 = vlaneseq
        %v4859 = vshrl.u32 %v4858, 7
        %v4860 = vadd.s32 %v4859, 8
        %4861 = vset.pattern.permute.xlu0 %v4860
        %4862 = vperm.xlu0 %4861, %v4851
        %v4863 = vpop.permute.xlu0 %4862
        %v4864 = vperm.slane %v2051, 4
        %v4865 = vlaneseq
        %v4866 = vshrl.u32 %v4865, 7
        %4868 = vset.pattern.permute.xlu0 %v4866
        %4869 = vperm.xlu0 %4868, %v4864
        %v4870 = vpop.permute.xlu0 %4869
        %v4871 = vlaneseq
        %v4872 = vshrl.u32 %v4871, 7
        %v4873 = vadd.s32 %v4872, 8
        %4874 = vset.pattern.permute.xlu0 %v4873
        %4875 = vperm.xlu0 %4874, %v4864
        %v4876 = vpop.permute.xlu0 %4875
        %v4877 = vperm.slane %v2051, 5
        %v4878 = vlaneseq
        %v4879 = vshrl.u32 %v4878, 7
        %4881 = vset.pattern.permute.xlu0 %v4879
        %4882 = vperm.xlu0 %4881, %v4877
        %v4883 = vpop.permute.xlu0 %4882
        %v4884 = vlaneseq
        %v4885 = vshrl.u32 %v4884, 7
        %v4886 = vadd.s32 %v4885, 8
        %4887 = vset.pattern.permute.xlu0 %v4886
        %4888 = vperm.xlu0 %4887, %v4877
        %v4889 = vpop.permute.xlu0 %4888
        %v4890 = vperm.slane %v2051, 6
        %v4891 = vlaneseq
        %v4892 = vshrl.u32 %v4891, 7
        %4894 = vset.pattern.permute.xlu0 %v4892
        %4895 = vperm.xlu0 %4894, %v4890
        %v4896 = vpop.permute.xlu0 %4895
        %v4897 = vlaneseq
        %v4898 = vshrl.u32 %v4897, 7
        %v4899 = vadd.s32 %v4898, 8
        %4900 = vset.pattern.permute.xlu0 %v4899
        %4901 = vperm.xlu0 %4900, %v4890
        %v4902 = vpop.permute.xlu0 %4901
        %v4903 = vperm.slane %v2051, 7
        %v4904 = vlaneseq
        %v4905 = vshrl.u32 %v4904, 7
        %4907 = vset.pattern.permute.xlu0 %v4905
        %4908 = vperm.xlu0 %4907, %v4903
        %v4909 = vpop.permute.xlu0 %4908
        %v4910 = vlaneseq
        %v4911 = vshrl.u32 %v4910, 7
        %v4912 = vadd.s32 %v4911, 8
        %4913 = vset.pattern.permute.xlu0 %v4912
        %4914 = vperm.xlu0 %4913, %v4903
        %v4915 = vpop.permute.xlu0 %4914
        %v4916 = vperm.slane %v2042, 0
        %v4917 = vperm.slane %v4805, 0
        %v4918 = vperm.slane %v4806, 0
        %v4919 = vperm.slane %v4807, 0
        %v4920 = vperm.slane %v4808, 0
        %v4921 = vperm.slane %v4809, 0
        %v4922 = vperm.slane %v4810, 0
        %v4923 = vperm.slane %v4811, 0
        %v4932 = vsub.f32 %v4916, %v4818
        %v4933 = vsub.f32 %v4916, %v4824
        %v4934 = vsub.f32 %v4917, %v4831
        %v4935 = vsub.f32 %v4917, %v4837
        %v4936 = vsub.f32 %v4918, %v4844
        %v4937 = vsub.f32 %v4918, %v4850
        %v4938 = vsub.f32 %v4919, %v4857
        %v4939 = vsub.f32 %v4919, %v4863
        %v4940 = vsub.f32 %v4920, %v4870
        %v4941 = vsub.f32 %v4920, %v4876
        %v4942 = vsub.f32 %v4921, %v4883
        %v4943 = vsub.f32 %v4921, %v4889
        %v4944 = vsub.f32 %v4922, %v4896
        %v4945 = vsub.f32 %v4922, %v4902
        %v4946 = vsub.f32 %v4923, %v4909
        %v4947 = vsub.f32 %v4923, %v4915
        %v4948 = vtanh.pop %v4932
        %v4949 = vtanh.pop %v4933
        %v4950 = vtanh.pop %v4934
        %v4951 = vtanh.pop %v4935
        %v4952 = vtanh.pop %v4936
        %v4953 = vtanh.pop %v4937
        %v4954 = vtanh.pop %v4938
        %v4955 = vtanh.pop %v4939
        %v4956 = vtanh.pop %v4940
        %v4957 = vtanh.pop %v4941
        %v4958 = vtanh.pop %v4942
        %v4959 = vtanh.pop %v4943
        %v4960 = vtanh.pop %v4944
        %v4961 = vtanh.pop %v4945
        %v4962 = vtanh.pop %v4946
        %v4963 = vtanh.pop %v4947
        %v4964 = vrot.slane %v4952, 4
        %v4965 = vsel %vm645, %v4964, %v4948
        %v4966 = vrot.slane %v4948, 4
        %v4967 = vsel %vm645, %v4952, %v4966
        %v4969 = vunpack.c.l.s4 1983009808
        %v4970 = vunpack.c.0.s8 %v4969
        %v4971 = vperm.slane %v4965, %v4970
        %v4973 = vunpack.c.l.s4 1983009808
        %v4974 = vunpack.c.0.s8 %v4973
        %v4975 = vperm.slane %v4967, %v4974
        %v4976 = vrot.slane %v4954, 4
        %v4977 = vsel %vm645, %v4976, %v4950
        %v4978 = vrot.slane %v4950, 4
        %v4979 = vsel %vm645, %v4954, %v4978
        %v4981 = vunpack.c.l.s4 1983009808
        %v4982 = vunpack.c.0.s8 %v4981
        %v4983 = vperm.slane %v4977, %v4982
        %v4985 = vunpack.c.l.s4 1983009808
        %v4986 = vunpack.c.0.s8 %v4985
        %v4987 = vperm.slane %v4979, %v4986
        %v4988 = vrot.slane %v4960, 4
        %v4989 = vsel %vm645, %v4988, %v4956
        %v4990 = vrot.slane %v4956, 4
        %v4991 = vsel %vm645, %v4960, %v4990
        %v4993 = vunpack.c.l.s4 1983009808
        %v4994 = vunpack.c.0.s8 %v4993
        %v4995 = vperm.slane %v4989, %v4994
        %v4997 = vunpack.c.l.s4 1983009808
        %v4998 = vunpack.c.0.s8 %v4997
        %v4999 = vperm.slane %v4991, %v4998
        %v5000 = vrot.slane %v4962, 4
        %v5001 = vsel %vm645, %v5000, %v4958
        %v5002 = vrot.slane %v4958, 4
        %v5003 = vsel %vm645, %v4962, %v5002
        %v5005 = vunpack.c.l.s4 1983009808
        %v5006 = vunpack.c.0.s8 %v5005
        %v5007 = vperm.slane %v5001, %v5006
        %v5009 = vunpack.c.l.s4 1983009808
        %v5010 = vunpack.c.0.s8 %v5009
        %v5011 = vperm.slane %v5003, %v5010
        %v5012 = vrot.slane %v4983, 4
        %v5013 = vsel %vm645, %v5012, %v4971
        %v5014 = vrot.slane %v4971, 4
        %v5015 = vsel %vm645, %v4983, %v5014
        %v5017 = vunpack.c.l.s4 1934713408
        %v5018 = vunpack.c.0.s8 %v5017
        %v5019 = vperm.slane %v5013, %v5018
        %v5021 = vunpack.c.l.s4 1934713408
        %v5022 = vunpack.c.0.s8 %v5021
        %v5023 = vperm.slane %v5015, %v5022
        %v5024 = vrot.slane %v4987, 4
        %v5025 = vsel %vm645, %v5024, %v4975
        %v5026 = vrot.slane %v4975, 4
        %v5027 = vsel %vm645, %v4987, %v5026
        %v5029 = vunpack.c.l.s4 1934713408
        %v5030 = vunpack.c.0.s8 %v5029
        %v5031 = vperm.slane %v5025, %v5030
        %v5033 = vunpack.c.l.s4 1934713408
        %v5034 = vunpack.c.0.s8 %v5033
        %v5035 = vperm.slane %v5027, %v5034
        %v5036 = vrot.slane %v5007, 4
        %v5037 = vsel %vm645, %v5036, %v4995
        %v5038 = vrot.slane %v4995, 4
        %v5039 = vsel %vm645, %v5007, %v5038
        %v5041 = vunpack.c.l.s4 1934713408
        %v5042 = vunpack.c.0.s8 %v5041
        %v5043 = vperm.slane %v5037, %v5042
        %v5045 = vunpack.c.l.s4 1934713408
        %v5046 = vunpack.c.0.s8 %v5045
        %v5047 = vperm.slane %v5039, %v5046
        %v5048 = vrot.slane %v5011, 4
        %v5049 = vsel %vm645, %v5048, %v4999
        %v5050 = vrot.slane %v4999, 4
        %v5051 = vsel %vm645, %v5011, %v5050
        %v5053 = vunpack.c.l.s4 1934713408
        %v5054 = vunpack.c.0.s8 %v5053
        %v5055 = vperm.slane %v5049, %v5054
        %v5057 = vunpack.c.l.s4 1934713408
        %v5058 = vunpack.c.0.s8 %v5057
        %v5059 = vperm.slane %v5051, %v5058
        %v5060 = vrot.slane %v5043, 4
        %v5061 = vsel %vm645, %v5060, %v5019
        %v5062 = vrot.slane %v5019, 4
        %v5063 = vsel %vm645, %v5043, %v5062
        %v5064 = vrot.slane %v5047, 4
        %v5065 = vsel %vm645, %v5064, %v5023
        %v5066 = vrot.slane %v5023, 4
        %v5067 = vsel %vm645, %v5047, %v5066
        %v5068 = vrot.slane %v5055, 4
        %v5069 = vsel %vm645, %v5068, %v5031
        %v5070 = vrot.slane %v5031, 4
        %v5071 = vsel %vm645, %v5055, %v5070
        %v5072 = vrot.slane %v5059, 4
        %v5073 = vsel %vm645, %v5072, %v5035
        %v5074 = vrot.slane %v5035, 4
        %v5075 = vsel %vm645, %v5059, %v5074
        %v5076 = vrot.slane %v4953, 4
        %v5077 = vsel %vm645, %v5076, %v4949
        %v5078 = vrot.slane %v4949, 4
        %v5079 = vsel %vm645, %v4953, %v5078
        %v5081 = vunpack.c.l.s4 1983009808
        %v5082 = vunpack.c.0.s8 %v5081
        %v5083 = vperm.slane %v5077, %v5082
        %v5085 = vunpack.c.l.s4 1983009808
        %v5086 = vunpack.c.0.s8 %v5085
        %v5087 = vperm.slane %v5079, %v5086
        %v5088 = vrot.slane %v4955, 4
        %v5089 = vsel %vm645, %v5088, %v4951
        %v5090 = vrot.slane %v4951, 4
        %v5091 = vsel %vm645, %v4955, %v5090
        %v5093 = vunpack.c.l.s4 1983009808
        %v5094 = vunpack.c.0.s8 %v5093
        %v5095 = vperm.slane %v5089, %v5094
        %v5097 = vunpack.c.l.s4 1983009808
        %v5098 = vunpack.c.0.s8 %v5097
        %v5099 = vperm.slane %v5091, %v5098
        %v5100 = vrot.slane %v4961, 4
        %v5101 = vsel %vm645, %v5100, %v4957
        %v5102 = vrot.slane %v4957, 4
        %v5103 = vsel %vm645, %v4961, %v5102
        %v5105 = vunpack.c.l.s4 1983009808
        %v5106 = vunpack.c.0.s8 %v5105
        %v5107 = vperm.slane %v5101, %v5106
        %v5109 = vunpack.c.l.s4 1983009808
        %v5110 = vunpack.c.0.s8 %v5109
        %v5111 = vperm.slane %v5103, %v5110
        %v5112 = vrot.slane %v4963, 4
        %v5113 = vsel %vm645, %v5112, %v4959
        %v5114 = vrot.slane %v4959, 4
        %v5115 = vsel %vm645, %v4963, %v5114
        %v5117 = vunpack.c.l.s4 1983009808
        %v5118 = vunpack.c.0.s8 %v5117
        %v5119 = vperm.slane %v5113, %v5118
        %v5121 = vunpack.c.l.s4 1983009808
        %v5122 = vunpack.c.0.s8 %v5121
        %v5123 = vperm.slane %v5115, %v5122
        %v5124 = vrot.slane %v5095, 4
        %v5125 = vsel %vm645, %v5124, %v5083
        %v5126 = vrot.slane %v5083, 4
        %v5127 = vsel %vm645, %v5095, %v5126
        %v5129 = vunpack.c.l.s4 1934713408
        %v5130 = vunpack.c.0.s8 %v5129
        %v5131 = vperm.slane %v5125, %v5130
        %v5133 = vunpack.c.l.s4 1934713408
        %v5134 = vunpack.c.0.s8 %v5133
        %v5135 = vperm.slane %v5127, %v5134
        %v5136 = vrot.slane %v5099, 4
        %v5137 = vsel %vm645, %v5136, %v5087
        %v5138 = vrot.slane %v5087, 4
        %v5139 = vsel %vm645, %v5099, %v5138
        %v5141 = vunpack.c.l.s4 1934713408
        %v5142 = vunpack.c.0.s8 %v5141
        %v5143 = vperm.slane %v5137, %v5142
        %v5145 = vunpack.c.l.s4 1934713408
        %v5146 = vunpack.c.0.s8 %v5145
        %v5147 = vperm.slane %v5139, %v5146
        %v5148 = vrot.slane %v5119, 4
        %v5149 = vsel %vm645, %v5148, %v5107
        %v5150 = vrot.slane %v5107, 4
        %v5151 = vsel %vm645, %v5119, %v5150
        %v5153 = vunpack.c.l.s4 1934713408
        %v5154 = vunpack.c.0.s8 %v5153
        %v5155 = vperm.slane %v5149, %v5154
        %v5157 = vunpack.c.l.s4 1934713408
        %v5158 = vunpack.c.0.s8 %v5157
        %v5159 = vperm.slane %v5151, %v5158
        %v5160 = vrot.slane %v5123, 4
        %v5161 = vsel %vm645, %v5160, %v5111
        %v5162 = vrot.slane %v5111, 4
        %v5163 = vsel %vm645, %v5123, %v5162
        %v5165 = vunpack.c.l.s4 1934713408
        %v5166 = vunpack.c.0.s8 %v5165
        %v5167 = vperm.slane %v5161, %v5166
        %v5169 = vunpack.c.l.s4 1934713408
        %v5170 = vunpack.c.0.s8 %v5169
        %v5171 = vperm.slane %v5163, %v5170
        %v5172 = vrot.slane %v5155, 4
        %v5173 = vsel %vm645, %v5172, %v5131
        %v5174 = vrot.slane %v5131, 4
        %v5175 = vsel %vm645, %v5155, %v5174
        %v5176 = vrot.slane %v5159, 4
        %v5177 = vsel %vm645, %v5176, %v5135
        %v5178 = vrot.slane %v5135, 4
        %v5179 = vsel %vm645, %v5159, %v5178
        %v5180 = vrot.slane %v5167, 4
        %v5181 = vsel %vm645, %v5180, %v5143
        %v5182 = vrot.slane %v5143, 4
        %v5183 = vsel %vm645, %v5167, %v5182
        %v5184 = vrot.slane %v5171, 4
        %v5185 = vsel %vm645, %v5184, %v5147
        %v5186 = vrot.slane %v5147, 4
        %v5187 = vsel %vm645, %v5171, %v5186
        %5189 = vrot.lane.b32.xlu0 %v5063, 16
        %v5190 = vpop.permute.xlu0 %5189
        %5193 = vrot.lane.b32.xlu0 %v5065, 32
        %v5194 = vpop.permute.xlu0 %5193
        %5197 = vrot.lane.b32.xlu0 %v5067, 48
        %v5198 = vpop.permute.xlu0 %5197
        %5201 = vrot.lane.b32.xlu0 %v5069, 64
        %v5202 = vpop.permute.xlu0 %5201
        %5205 = vrot.lane.b32.xlu0 %v5071, 80
        %v5206 = vpop.permute.xlu0 %5205
        %5209 = vrot.lane.b32.xlu0 %v5073, 96
        %v5210 = vpop.permute.xlu0 %5209
        %5213 = vrot.lane.b32.xlu0 %v5075, 112
        %v5214 = vpop.permute.xlu0 %5213
        %5217 = vrot.lane.b32.xlu0 %v5175, 16
        %v5218 = vpop.permute.xlu0 %5217
        %5221 = vrot.lane.b32.xlu0 %v5177, 32
        %v5222 = vpop.permute.xlu0 %5221
        %5225 = vrot.lane.b32.xlu0 %v5179, 48
        %v5226 = vpop.permute.xlu0 %5225
        %5229 = vrot.lane.b32.xlu0 %v5181, 64
        %v5230 = vpop.permute.xlu0 %5229
        %5233 = vrot.lane.b32.xlu0 %v5183, 80
        %v5234 = vpop.permute.xlu0 %5233
        %5237 = vrot.lane.b32.xlu0 %v5185, 96
        %v5238 = vpop.permute.xlu0 %5237
        %5241 = vrot.lane.b32.xlu0 %v5187, 112
        %v5242 = vpop.permute.xlu0 %5241
        %v5244 = vsel %vm1543, %v5061, %v5190
        %v5245 = vsel %vm2494, %v5244, %v5194
        %v5246 = vsel %vm2496, %v5245, %v5198
        %v5247 = vsel %vm2498, %v5246, %v5202
        %v5248 = vsel %vm2500, %v5247, %v5206
        %v5249 = vsel %vm2502, %v5248, %v5210
        %v5250 = vsel %vm2504, %v5249, %v5214
        %v5251 = vsel %vm1543, %v5173, %v5218
        %v5252 = vsel %vm2494, %v5251, %v5222
        %v5253 = vsel %vm2496, %v5252, %v5226
        %v5254 = vsel %vm2498, %v5253, %v5230
        %v5255 = vsel %vm2500, %v5254, %v5234
        %v5256 = vsel %vm2502, %v5255, %v5238
        %v5257 = vsel %vm2504, %v5256, %v5242
        %5259 = vset.pattern.permute.xlu0 0
        %5260 = vperm.xlu0 %5259, %v1963
        %v5261 = vpop.permute.xlu0 %5260
        %5264 = vset.pattern.permute.xlu0 0
        %5265 = vperm.xlu0 %5264, %v1964
        %v5266 = vpop.permute.xlu0 %5265
        %v5269 = vsel %vm2523, %v1955, 0
        %v5272 = vsel %vm2523, %v1956, 0
        %5274 = vmatpush.msra.mxu0 0.0
        %5275 = vmatpush.msra.mxu0 0.0
        %5276 = vmatpush.msra.mxu0 0.0
        %5277 = vmatpush.msra.mxu0 0.0
        %5278 = vmatpush.msra.mxu0 0.0
        %5279 = vmatpush.msra.mxu0 0.0
        %5280 = vmatpush.msra.mxu0 0.0
        %5281 = vmatpush.msra.mxu0 0.0
        %5282 = vmatpush.msra.mxu0 0.0
        %5283 = vmatpush.msra.mxu0 0.0
        %5284 = vmatpush.msra.mxu0 0.0
        %5285 = vmatpush.msra.mxu0 0.0
        %5286 = vmatpush.msra.mxu0 0.0
        %5287 = vmatpush.msra.mxu0 0.0
        %5288 = vmatpush.msra.mxu0 0.0
        %5289 = vmatpush.msra.mxu0 %v5250
        %5290 = vmatmul.f32.gmra.mxu0 %v5269
        %v5291 = vpop.f32.mrf.mxu0
        %v5292 = vadd.f32 %v5261, %v5291
        %5293 = vmatmul.f32.gmra.mxu0 %v5272
        %v5294 = vpop.f32.mrf.mxu0
        %v5295 = vadd.f32 %v5266, %v5294
        %5296 = vdwg.mxu0
        %5297 = vmatpush.msra.mxu0 0.0
        %5298 = vmatpush.msra.mxu0 0.0
        %5299 = vmatpush.msra.mxu0 0.0
        %5300 = vmatpush.msra.mxu0 0.0
        %5301 = vmatpush.msra.mxu0 0.0
        %5302 = vmatpush.msra.mxu0 0.0
        %5303 = vmatpush.msra.mxu0 0.0
        %5304 = vmatpush.msra.mxu0 0.0
        %5305 = vmatpush.msra.mxu0 0.0
        %5306 = vmatpush.msra.mxu0 0.0
        %5307 = vmatpush.msra.mxu0 0.0
        %5308 = vmatpush.msra.mxu0 0.0
        %5309 = vmatpush.msra.mxu0 0.0
        %5310 = vmatpush.msra.mxu0 0.0
        %5311 = vmatpush.msra.mxu0 0.0
        %5312 = vmatpush.msra.mxu0 %v5257
        %5313 = vmatmul.f32.gmra.mxu0 %v5269
        %v5314 = vpop.f32.mrf.mxu0
        %v5315 = vadd.f32 %v5261, %v5314
        %5316 = vmatmul.f32.gmra.mxu0 %v5272
        %v5317 = vpop.f32.mrf.mxu0
        %v5318 = vadd.f32 %v5266, %v5317
        %5319 = vdwg.mxu0
        %5322 = vrot.lane.b32.xlu0 %v5292, 112
        %v5323 = vpop.permute.xlu0 %5322
        %5324 = vrot.lane.b32.xlu0 %v5295, 112
        %v5325 = vpop.permute.xlu0 %5324
        %5328 = vrot.lane.b32.xlu0 %v5292, 96
        %v5329 = vpop.permute.xlu0 %5328
        %5330 = vrot.lane.b32.xlu0 %v5295, 96
        %v5331 = vpop.permute.xlu0 %5330
        %5334 = vrot.lane.b32.xlu0 %v5292, 80
        %v5335 = vpop.permute.xlu0 %5334
        %5336 = vrot.lane.b32.xlu0 %v5295, 80
        %v5337 = vpop.permute.xlu0 %5336
        %5340 = vrot.lane.b32.xlu0 %v5292, 64
        %v5341 = vpop.permute.xlu0 %5340
        %5342 = vrot.lane.b32.xlu0 %v5295, 64
        %v5343 = vpop.permute.xlu0 %5342
        %5346 = vrot.lane.b32.xlu0 %v5292, 48
        %v5347 = vpop.permute.xlu0 %5346
        %5348 = vrot.lane.b32.xlu0 %v5295, 48
        %v5349 = vpop.permute.xlu0 %5348
        %5352 = vrot.lane.b32.xlu0 %v5292, 32
        %v5353 = vpop.permute.xlu0 %5352
        %5354 = vrot.lane.b32.xlu0 %v5295, 32
        %v5355 = vpop.permute.xlu0 %5354
        %5358 = vrot.lane.b32.xlu0 %v5292, 16
        %v5359 = vpop.permute.xlu0 %5358
        %5360 = vrot.lane.b32.xlu0 %v5295, 16
        %v5361 = vpop.permute.xlu0 %5360
        %5366 = vrot.lane.b32.xlu0 %v5315, 112
        %v5367 = vpop.permute.xlu0 %5366
        %5368 = vrot.lane.b32.xlu0 %v5318, 112
        %v5369 = vpop.permute.xlu0 %5368
        %5372 = vrot.lane.b32.xlu0 %v5315, 96
        %v5373 = vpop.permute.xlu0 %5372
        %5374 = vrot.lane.b32.xlu0 %v5318, 96
        %v5375 = vpop.permute.xlu0 %5374
        %5378 = vrot.lane.b32.xlu0 %v5315, 80
        %v5379 = vpop.permute.xlu0 %5378
        %5380 = vrot.lane.b32.xlu0 %v5318, 80
        %v5381 = vpop.permute.xlu0 %5380
        %5384 = vrot.lane.b32.xlu0 %v5315, 64
        %v5385 = vpop.permute.xlu0 %5384
        %5386 = vrot.lane.b32.xlu0 %v5318, 64
        %v5387 = vpop.permute.xlu0 %5386
        %5390 = vrot.lane.b32.xlu0 %v5315, 48
        %v5391 = vpop.permute.xlu0 %5390
        %5392 = vrot.lane.b32.xlu0 %v5318, 48
        %v5393 = vpop.permute.xlu0 %5392
        %5396 = vrot.lane.b32.xlu0 %v5315, 32
        %v5397 = vpop.permute.xlu0 %5396
        %5398 = vrot.lane.b32.xlu0 %v5318, 32
        %v5399 = vpop.permute.xlu0 %5398
        %5402 = vrot.lane.b32.xlu0 %v5315, 16
        %v5403 = vpop.permute.xlu0 %5402
        %5404 = vrot.lane.b32.xlu0 %v5318, 16
        %v5405 = vpop.permute.xlu0 %5404
        %v5408 = vrot.slane %v5329, 4
        %v5409 = vsel %vm645, %v5408, %v5292
        %v5410 = vrot.slane %v5292, 4
        %v5411 = vsel %vm645, %v5329, %v5410
        %v5413 = vunpack.c.l.s4 1983009808
        %v5414 = vunpack.c.0.s8 %v5413
        %v5415 = vperm.slane %v5409, %v5414
        %v5417 = vunpack.c.l.s4 1983009808
        %v5418 = vunpack.c.0.s8 %v5417
        %v5419 = vperm.slane %v5411, %v5418
        %v5420 = vrot.slane %v5335, 4
        %v5421 = vsel %vm645, %v5420, %v5323
        %v5422 = vrot.slane %v5323, 4
        %v5423 = vsel %vm645, %v5335, %v5422
        %v5425 = vunpack.c.l.s4 1983009808
        %v5426 = vunpack.c.0.s8 %v5425
        %v5427 = vperm.slane %v5421, %v5426
        %v5429 = vunpack.c.l.s4 1983009808
        %v5430 = vunpack.c.0.s8 %v5429
        %v5431 = vperm.slane %v5423, %v5430
        %v5432 = vrot.slane %v5353, 4
        %v5433 = vsel %vm645, %v5432, %v5341
        %v5434 = vrot.slane %v5341, 4
        %v5435 = vsel %vm645, %v5353, %v5434
        %v5437 = vunpack.c.l.s4 1983009808
        %v5438 = vunpack.c.0.s8 %v5437
        %v5439 = vperm.slane %v5433, %v5438
        %v5441 = vunpack.c.l.s4 1983009808
        %v5442 = vunpack.c.0.s8 %v5441
        %v5443 = vperm.slane %v5435, %v5442
        %v5444 = vrot.slane %v5359, 4
        %v5445 = vsel %vm645, %v5444, %v5347
        %v5446 = vrot.slane %v5347, 4
        %v5447 = vsel %vm645, %v5359, %v5446
        %v5449 = vunpack.c.l.s4 1983009808
        %v5450 = vunpack.c.0.s8 %v5449
        %v5451 = vperm.slane %v5445, %v5450
        %v5453 = vunpack.c.l.s4 1983009808
        %v5454 = vunpack.c.0.s8 %v5453
        %v5455 = vperm.slane %v5447, %v5454
        %v5456 = vrot.slane %v5427, 4
        %v5457 = vsel %vm645, %v5456, %v5415
        %v5458 = vrot.slane %v5415, 4
        %v5459 = vsel %vm645, %v5427, %v5458
        %v5461 = vunpack.c.l.s4 1934713408
        %v5462 = vunpack.c.0.s8 %v5461
        %v5463 = vperm.slane %v5457, %v5462
        %v5465 = vunpack.c.l.s4 1934713408
        %v5466 = vunpack.c.0.s8 %v5465
        %v5467 = vperm.slane %v5459, %v5466
        %v5468 = vrot.slane %v5431, 4
        %v5469 = vsel %vm645, %v5468, %v5419
        %v5470 = vrot.slane %v5419, 4
        %v5471 = vsel %vm645, %v5431, %v5470
        %v5473 = vunpack.c.l.s4 1934713408
        %v5474 = vunpack.c.0.s8 %v5473
        %v5475 = vperm.slane %v5469, %v5474
        %v5477 = vunpack.c.l.s4 1934713408
        %v5478 = vunpack.c.0.s8 %v5477
        %v5479 = vperm.slane %v5471, %v5478
        %v5480 = vrot.slane %v5451, 4
        %v5481 = vsel %vm645, %v5480, %v5439
        %v5482 = vrot.slane %v5439, 4
        %v5483 = vsel %vm645, %v5451, %v5482
        %v5485 = vunpack.c.l.s4 1934713408
        %v5486 = vunpack.c.0.s8 %v5485
        %v5487 = vperm.slane %v5481, %v5486
        %v5489 = vunpack.c.l.s4 1934713408
        %v5490 = vunpack.c.0.s8 %v5489
        %v5491 = vperm.slane %v5483, %v5490
        %v5492 = vrot.slane %v5455, 4
        %v5493 = vsel %vm645, %v5492, %v5443
        %v5494 = vrot.slane %v5443, 4
        %v5495 = vsel %vm645, %v5455, %v5494
        %v5497 = vunpack.c.l.s4 1934713408
        %v5498 = vunpack.c.0.s8 %v5497
        %v5499 = vperm.slane %v5493, %v5498
        %v5501 = vunpack.c.l.s4 1934713408
        %v5502 = vunpack.c.0.s8 %v5501
        %v5503 = vperm.slane %v5495, %v5502
        %v5504 = vrot.slane %v5487, 4
        %v5505 = vsel %vm645, %v5504, %v5463
        %v5506 = vrot.slane %v5463, 4
        %v5507 = vsel %vm645, %v5487, %v5506
        %v5508 = vrot.slane %v5491, 4
        %v5509 = vsel %vm645, %v5508, %v5467
        %v5510 = vrot.slane %v5467, 4
        %v5511 = vsel %vm645, %v5491, %v5510
        %v5512 = vrot.slane %v5499, 4
        %v5513 = vsel %vm645, %v5512, %v5475
        %v5514 = vrot.slane %v5475, 4
        %v5515 = vsel %vm645, %v5499, %v5514
        %v5516 = vrot.slane %v5503, 4
        %v5517 = vsel %vm645, %v5516, %v5479
        %v5518 = vrot.slane %v5479, 4
        %v5519 = vsel %vm645, %v5503, %v5518
        %v5520 = vrot.slane %v5373, 4
        %v5521 = vsel %vm645, %v5520, %v5315
        %v5522 = vrot.slane %v5315, 4
        %v5523 = vsel %vm645, %v5373, %v5522
        %v5525 = vunpack.c.l.s4 1983009808
        %v5526 = vunpack.c.0.s8 %v5525
        %v5527 = vperm.slane %v5521, %v5526
        %v5529 = vunpack.c.l.s4 1983009808
        %v5530 = vunpack.c.0.s8 %v5529
        %v5531 = vperm.slane %v5523, %v5530
        %v5532 = vrot.slane %v5379, 4
        %v5533 = vsel %vm645, %v5532, %v5367
        %v5534 = vrot.slane %v5367, 4
        %v5535 = vsel %vm645, %v5379, %v5534
        %v5537 = vunpack.c.l.s4 1983009808
        %v5538 = vunpack.c.0.s8 %v5537
        %v5539 = vperm.slane %v5533, %v5538
        %v5541 = vunpack.c.l.s4 1983009808
        %v5542 = vunpack.c.0.s8 %v5541
        %v5543 = vperm.slane %v5535, %v5542
        %v5544 = vrot.slane %v5397, 4
        %v5545 = vsel %vm645, %v5544, %v5385
        %v5546 = vrot.slane %v5385, 4
        %v5547 = vsel %vm645, %v5397, %v5546
        %v5549 = vunpack.c.l.s4 1983009808
        %v5550 = vunpack.c.0.s8 %v5549
        %v5551 = vperm.slane %v5545, %v5550
        %v5553 = vunpack.c.l.s4 1983009808
        %v5554 = vunpack.c.0.s8 %v5553
        %v5555 = vperm.slane %v5547, %v5554
        %v5556 = vrot.slane %v5403, 4
        %v5557 = vsel %vm645, %v5556, %v5391
        %v5558 = vrot.slane %v5391, 4
        %v5559 = vsel %vm645, %v5403, %v5558
        %v5561 = vunpack.c.l.s4 1983009808
        %v5562 = vunpack.c.0.s8 %v5561
        %v5563 = vperm.slane %v5557, %v5562
        %v5565 = vunpack.c.l.s4 1983009808
        %v5566 = vunpack.c.0.s8 %v5565
        %v5567 = vperm.slane %v5559, %v5566
        %v5568 = vrot.slane %v5539, 4
        %v5569 = vsel %vm645, %v5568, %v5527
        %v5570 = vrot.slane %v5527, 4
        %v5571 = vsel %vm645, %v5539, %v5570
        %v5573 = vunpack.c.l.s4 1934713408
        %v5574 = vunpack.c.0.s8 %v5573
        %v5575 = vperm.slane %v5569, %v5574
        %v5577 = vunpack.c.l.s4 1934713408
        %v5578 = vunpack.c.0.s8 %v5577
        %v5579 = vperm.slane %v5571, %v5578
        %v5580 = vrot.slane %v5543, 4
        %v5581 = vsel %vm645, %v5580, %v5531
        %v5582 = vrot.slane %v5531, 4
        %v5583 = vsel %vm645, %v5543, %v5582
        %v5585 = vunpack.c.l.s4 1934713408
        %v5586 = vunpack.c.0.s8 %v5585
        %v5587 = vperm.slane %v5581, %v5586
        %v5589 = vunpack.c.l.s4 1934713408
        %v5590 = vunpack.c.0.s8 %v5589
        %v5591 = vperm.slane %v5583, %v5590
        %v5592 = vrot.slane %v5563, 4
        %v5593 = vsel %vm645, %v5592, %v5551
        %v5594 = vrot.slane %v5551, 4
        %v5595 = vsel %vm645, %v5563, %v5594
        %v5597 = vunpack.c.l.s4 1934713408
        %v5598 = vunpack.c.0.s8 %v5597
        %v5599 = vperm.slane %v5593, %v5598
        %v5601 = vunpack.c.l.s4 1934713408
        %v5602 = vunpack.c.0.s8 %v5601
        %v5603 = vperm.slane %v5595, %v5602
        %v5604 = vrot.slane %v5567, 4
        %v5605 = vsel %vm645, %v5604, %v5555
        %v5606 = vrot.slane %v5555, 4
        %v5607 = vsel %vm645, %v5567, %v5606
        %v5609 = vunpack.c.l.s4 1934713408
        %v5610 = vunpack.c.0.s8 %v5609
        %v5611 = vperm.slane %v5605, %v5610
        %v5613 = vunpack.c.l.s4 1934713408
        %v5614 = vunpack.c.0.s8 %v5613
        %v5615 = vperm.slane %v5607, %v5614
        %v5616 = vrot.slane %v5599, 4
        %v5617 = vsel %vm645, %v5616, %v5575
        %v5618 = vrot.slane %v5575, 4
        %v5619 = vsel %vm645, %v5599, %v5618
        %v5620 = vrot.slane %v5603, 4
        %v5621 = vsel %vm645, %v5620, %v5579
        %v5622 = vrot.slane %v5579, 4
        %v5623 = vsel %vm645, %v5603, %v5622
        %v5624 = vrot.slane %v5611, 4
        %v5625 = vsel %vm645, %v5624, %v5587
        %v5626 = vrot.slane %v5587, 4
        %v5627 = vsel %vm645, %v5611, %v5626
        %v5628 = vrot.slane %v5615, 4
        %v5629 = vsel %vm645, %v5628, %v5591
        %v5630 = vrot.slane %v5591, 4
        %v5631 = vsel %vm645, %v5615, %v5630
        %v5632 = vrot.slane %v5331, 4
        %v5633 = vsel %vm645, %v5632, %v5295
        %v5634 = vrot.slane %v5295, 4
        %v5635 = vsel %vm645, %v5331, %v5634
        %v5637 = vunpack.c.l.s4 1983009808
        %v5638 = vunpack.c.0.s8 %v5637
        %v5639 = vperm.slane %v5633, %v5638
        %v5641 = vunpack.c.l.s4 1983009808
        %v5642 = vunpack.c.0.s8 %v5641
        %v5643 = vperm.slane %v5635, %v5642
        %v5644 = vrot.slane %v5337, 4
        %v5645 = vsel %vm645, %v5644, %v5325
        %v5646 = vrot.slane %v5325, 4
        %v5647 = vsel %vm645, %v5337, %v5646
        %v5649 = vunpack.c.l.s4 1983009808
        %v5650 = vunpack.c.0.s8 %v5649
        %v5651 = vperm.slane %v5645, %v5650
        %v5653 = vunpack.c.l.s4 1983009808
        %v5654 = vunpack.c.0.s8 %v5653
        %v5655 = vperm.slane %v5647, %v5654
        %v5656 = vrot.slane %v5355, 4
        %v5657 = vsel %vm645, %v5656, %v5343
        %v5658 = vrot.slane %v5343, 4
        %v5659 = vsel %vm645, %v5355, %v5658
        %v5661 = vunpack.c.l.s4 1983009808
        %v5662 = vunpack.c.0.s8 %v5661
        %v5663 = vperm.slane %v5657, %v5662
        %v5665 = vunpack.c.l.s4 1983009808
        %v5666 = vunpack.c.0.s8 %v5665
        %v5667 = vperm.slane %v5659, %v5666
        %v5668 = vrot.slane %v5361, 4
        %v5669 = vsel %vm645, %v5668, %v5349
        %v5670 = vrot.slane %v5349, 4
        %v5671 = vsel %vm645, %v5361, %v5670
        %v5673 = vunpack.c.l.s4 1983009808
        %v5674 = vunpack.c.0.s8 %v5673
        %v5675 = vperm.slane %v5669, %v5674
        %v5677 = vunpack.c.l.s4 1983009808
        %v5678 = vunpack.c.0.s8 %v5677
        %v5679 = vperm.slane %v5671, %v5678
        %v5680 = vrot.slane %v5651, 4
        %v5681 = vsel %vm645, %v5680, %v5639
        %v5682 = vrot.slane %v5639, 4
        %v5683 = vsel %vm645, %v5651, %v5682
        %v5685 = vunpack.c.l.s4 1934713408
        %v5686 = vunpack.c.0.s8 %v5685
        %v5687 = vperm.slane %v5681, %v5686
        %v5689 = vunpack.c.l.s4 1934713408
        %v5690 = vunpack.c.0.s8 %v5689
        %v5691 = vperm.slane %v5683, %v5690
        %v5692 = vrot.slane %v5655, 4
        %v5693 = vsel %vm645, %v5692, %v5643
        %v5694 = vrot.slane %v5643, 4
        %v5695 = vsel %vm645, %v5655, %v5694
        %v5697 = vunpack.c.l.s4 1934713408
        %v5698 = vunpack.c.0.s8 %v5697
        %v5699 = vperm.slane %v5693, %v5698
        %v5701 = vunpack.c.l.s4 1934713408
        %v5702 = vunpack.c.0.s8 %v5701
        %v5703 = vperm.slane %v5695, %v5702
        %v5704 = vrot.slane %v5675, 4
        %v5705 = vsel %vm645, %v5704, %v5663
        %v5706 = vrot.slane %v5663, 4
        %v5707 = vsel %vm645, %v5675, %v5706
        %v5709 = vunpack.c.l.s4 1934713408
        %v5710 = vunpack.c.0.s8 %v5709
        %v5711 = vperm.slane %v5705, %v5710
        %v5713 = vunpack.c.l.s4 1934713408
        %v5714 = vunpack.c.0.s8 %v5713
        %v5715 = vperm.slane %v5707, %v5714
        %v5716 = vrot.slane %v5679, 4
        %v5717 = vsel %vm645, %v5716, %v5667
        %v5718 = vrot.slane %v5667, 4
        %v5719 = vsel %vm645, %v5679, %v5718
        %v5721 = vunpack.c.l.s4 1934713408
        %v5722 = vunpack.c.0.s8 %v5721
        %v5723 = vperm.slane %v5717, %v5722
        %v5725 = vunpack.c.l.s4 1934713408
        %v5726 = vunpack.c.0.s8 %v5725
        %v5727 = vperm.slane %v5719, %v5726
        %v5728 = vrot.slane %v5711, 4
        %v5729 = vsel %vm645, %v5728, %v5687
        %v5730 = vrot.slane %v5687, 4
        %v5731 = vsel %vm645, %v5711, %v5730
        %v5732 = vrot.slane %v5715, 4
        %v5733 = vsel %vm645, %v5732, %v5691
        %v5734 = vrot.slane %v5691, 4
        %v5735 = vsel %vm645, %v5715, %v5734
        %v5736 = vrot.slane %v5723, 4
        %v5737 = vsel %vm645, %v5736, %v5699
        %v5738 = vrot.slane %v5699, 4
        %v5739 = vsel %vm645, %v5723, %v5738
        %v5740 = vrot.slane %v5727, 4
        %v5741 = vsel %vm645, %v5740, %v5703
        %v5742 = vrot.slane %v5703, 4
        %v5743 = vsel %vm645, %v5727, %v5742
        %v5744 = vrot.slane %v5375, 4
        %v5745 = vsel %vm645, %v5744, %v5318
        %v5746 = vrot.slane %v5318, 4
        %v5747 = vsel %vm645, %v5375, %v5746
        %v5749 = vunpack.c.l.s4 1983009808
        %v5750 = vunpack.c.0.s8 %v5749
        %v5751 = vperm.slane %v5745, %v5750
        %v5753 = vunpack.c.l.s4 1983009808
        %v5754 = vunpack.c.0.s8 %v5753
        %v5755 = vperm.slane %v5747, %v5754
        %v5756 = vrot.slane %v5381, 4
        %v5757 = vsel %vm645, %v5756, %v5369
        %v5758 = vrot.slane %v5369, 4
        %v5759 = vsel %vm645, %v5381, %v5758
        %v5761 = vunpack.c.l.s4 1983009808
        %v5762 = vunpack.c.0.s8 %v5761
        %v5763 = vperm.slane %v5757, %v5762
        %v5765 = vunpack.c.l.s4 1983009808
        %v5766 = vunpack.c.0.s8 %v5765
        %v5767 = vperm.slane %v5759, %v5766
        %v5768 = vrot.slane %v5399, 4
        %v5769 = vsel %vm645, %v5768, %v5387
        %v5770 = vrot.slane %v5387, 4
        %v5771 = vsel %vm645, %v5399, %v5770
        %v5773 = vunpack.c.l.s4 1983009808
        %v5774 = vunpack.c.0.s8 %v5773
        %v5775 = vperm.slane %v5769, %v5774
        %v5777 = vunpack.c.l.s4 1983009808
        %v5778 = vunpack.c.0.s8 %v5777
        %v5779 = vperm.slane %v5771, %v5778
        %v5780 = vrot.slane %v5405, 4
        %v5781 = vsel %vm645, %v5780, %v5393
        %v5782 = vrot.slane %v5393, 4
        %v5783 = vsel %vm645, %v5405, %v5782
        %v5785 = vunpack.c.l.s4 1983009808
        %v5786 = vunpack.c.0.s8 %v5785
        %v5787 = vperm.slane %v5781, %v5786
        %v5789 = vunpack.c.l.s4 1983009808
        %v5790 = vunpack.c.0.s8 %v5789
        %v5791 = vperm.slane %v5783, %v5790
        %v5792 = vrot.slane %v5763, 4
        %v5793 = vsel %vm645, %v5792, %v5751
        %v5794 = vrot.slane %v5751, 4
        %v5795 = vsel %vm645, %v5763, %v5794
        %v5797 = vunpack.c.l.s4 1934713408
        %v5798 = vunpack.c.0.s8 %v5797
        %v5799 = vperm.slane %v5793, %v5798
        %v5801 = vunpack.c.l.s4 1934713408
        %v5802 = vunpack.c.0.s8 %v5801
        %v5803 = vperm.slane %v5795, %v5802
        %v5804 = vrot.slane %v5767, 4
        %v5805 = vsel %vm645, %v5804, %v5755
        %v5806 = vrot.slane %v5755, 4
        %v5807 = vsel %vm645, %v5767, %v5806
        %v5809 = vunpack.c.l.s4 1934713408
        %v5810 = vunpack.c.0.s8 %v5809
        %v5811 = vperm.slane %v5805, %v5810
        %v5813 = vunpack.c.l.s4 1934713408
        %v5814 = vunpack.c.0.s8 %v5813
        %v5815 = vperm.slane %v5807, %v5814
        %v5816 = vrot.slane %v5787, 4
        %v5817 = vsel %vm645, %v5816, %v5775
        %v5818 = vrot.slane %v5775, 4
        %v5819 = vsel %vm645, %v5787, %v5818
        %v5821 = vunpack.c.l.s4 1934713408
        %v5822 = vunpack.c.0.s8 %v5821
        %v5823 = vperm.slane %v5817, %v5822
        %v5825 = vunpack.c.l.s4 1934713408
        %v5826 = vunpack.c.0.s8 %v5825
        %v5827 = vperm.slane %v5819, %v5826
        %v5828 = vrot.slane %v5791, 4
        %v5829 = vsel %vm645, %v5828, %v5779
        %v5830 = vrot.slane %v5779, 4
        %v5831 = vsel %vm645, %v5791, %v5830
        %v5833 = vunpack.c.l.s4 1934713408
        %v5834 = vunpack.c.0.s8 %v5833
        %v5835 = vperm.slane %v5829, %v5834
        %v5837 = vunpack.c.l.s4 1934713408
        %v5838 = vunpack.c.0.s8 %v5837
        %v5839 = vperm.slane %v5831, %v5838
        %v5840 = vrot.slane %v5823, 4
        %v5841 = vsel %vm645, %v5840, %v5799
        %v5842 = vrot.slane %v5799, 4
        %v5843 = vsel %vm645, %v5823, %v5842
        %v5844 = vrot.slane %v5827, 4
        %v5845 = vsel %vm645, %v5844, %v5803
        %v5846 = vrot.slane %v5803, 4
        %v5847 = vsel %vm645, %v5827, %v5846
        %v5848 = vrot.slane %v5835, 4
        %v5849 = vsel %vm645, %v5848, %v5811
        %v5850 = vrot.slane %v5811, 4
        %v5851 = vsel %vm645, %v5835, %v5850
        %v5852 = vrot.slane %v5839, 4
        %v5853 = vsel %vm645, %v5852, %v5815
        %v5854 = vrot.slane %v5815, 4
        %v5855 = vsel %vm645, %v5839, %v5854
        %5856 = vmatpush.msra.mxu0 0.0
        %5857 = vmatpush.msra.mxu0 0.0
        %5858 = vmatpush.msra.mxu0 0.0
        %5859 = vmatpush.msra.mxu0 0.0
        %5860 = vmatpush.msra.mxu0 0.0
        %5861 = vmatpush.msra.mxu0 0.0
        %5862 = vmatpush.msra.mxu0 0.0
        %5863 = vmatpush.msra.mxu0 0.0
        %5864 = vmatpush.msra.mxu0 0.0
        %5865 = vmatpush.msra.mxu0 0.0
        %5866 = vmatpush.msra.mxu0 0.0
        %5867 = vmatpush.msra.mxu0 0.0
        %5868 = vmatpush.msra.mxu0 0.0
        %5869 = vmatpush.msra.mxu0 0.0
        %5870 = vmatpush.msra.mxu0 %v5617
        %5871 = vmatpush.msra.mxu0 %v5505
        %5872 = vmatmul.f32.gmra.mxu0 %v1809
        %v5873 = vpop.f32.mrf.mxu0
        %v5874 = vadd.f32 0.0, %v5873
        %5875 = vdwg.mxu0
        %5876 = vmatpush.msra.mxu0 0.0
        %5877 = vmatpush.msra.mxu0 0.0
        %5878 = vmatpush.msra.mxu0 0.0
        %5879 = vmatpush.msra.mxu0 0.0
        %5880 = vmatpush.msra.mxu0 0.0
        %5881 = vmatpush.msra.mxu0 0.0
        %5882 = vmatpush.msra.mxu0 0.0
        %5883 = vmatpush.msra.mxu0 0.0
        %5884 = vmatpush.msra.mxu0 0.0
        %5885 = vmatpush.msra.mxu0 0.0
        %5886 = vmatpush.msra.mxu0 0.0
        %5887 = vmatpush.msra.mxu0 0.0
        %5888 = vmatpush.msra.mxu0 0.0
        %5889 = vmatpush.msra.mxu0 0.0
        %5890 = vmatpush.msra.mxu0 %v5619
        %5891 = vmatpush.msra.mxu0 %v5507
        %5892 = vmatmul.f32.gmra.mxu0 %v1812
        %v5893 = vpop.f32.mrf.mxu0
        %v5894 = vadd.f32 0.0, %v5893
        %5895 = vdwg.mxu0
        %5896 = vmatpush.msra.mxu0 0.0
        %5897 = vmatpush.msra.mxu0 0.0
        %5898 = vmatpush.msra.mxu0 0.0
        %5899 = vmatpush.msra.mxu0 0.0
        %5900 = vmatpush.msra.mxu0 0.0
        %5901 = vmatpush.msra.mxu0 0.0
        %5902 = vmatpush.msra.mxu0 0.0
        %5903 = vmatpush.msra.mxu0 0.0
        %5904 = vmatpush.msra.mxu0 0.0
        %5905 = vmatpush.msra.mxu0 0.0
        %5906 = vmatpush.msra.mxu0 0.0
        %5907 = vmatpush.msra.mxu0 0.0
        %5908 = vmatpush.msra.mxu0 0.0
        %5909 = vmatpush.msra.mxu0 0.0
        %5910 = vmatpush.msra.mxu0 %v5621
        %5911 = vmatpush.msra.mxu0 %v5509
        %5912 = vmatmul.f32.gmra.mxu0 %v1815
        %v5913 = vpop.f32.mrf.mxu0
        %v5914 = vadd.f32 0.0, %v5913
        %5915 = vdwg.mxu0
        %5916 = vmatpush.msra.mxu0 0.0
        %5917 = vmatpush.msra.mxu0 0.0
        %5918 = vmatpush.msra.mxu0 0.0
        %5919 = vmatpush.msra.mxu0 0.0
        %5920 = vmatpush.msra.mxu0 0.0
        %5921 = vmatpush.msra.mxu0 0.0
        %5922 = vmatpush.msra.mxu0 0.0
        %5923 = vmatpush.msra.mxu0 0.0
        %5924 = vmatpush.msra.mxu0 0.0
        %5925 = vmatpush.msra.mxu0 0.0
        %5926 = vmatpush.msra.mxu0 0.0
        %5927 = vmatpush.msra.mxu0 0.0
        %5928 = vmatpush.msra.mxu0 0.0
        %5929 = vmatpush.msra.mxu0 0.0
        %5930 = vmatpush.msra.mxu0 %v5623
        %5931 = vmatpush.msra.mxu0 %v5511
        %5932 = vmatmul.f32.gmra.mxu0 %v1818
        %v5933 = vpop.f32.mrf.mxu0
        %v5934 = vadd.f32 0.0, %v5933
        %5935 = vdwg.mxu0
        %5936 = vmatpush.msra.mxu0 0.0
        %5937 = vmatpush.msra.mxu0 0.0
        %5938 = vmatpush.msra.mxu0 0.0
        %5939 = vmatpush.msra.mxu0 0.0
        %5940 = vmatpush.msra.mxu0 0.0
        %5941 = vmatpush.msra.mxu0 0.0
        %5942 = vmatpush.msra.mxu0 0.0
        %5943 = vmatpush.msra.mxu0 0.0
        %5944 = vmatpush.msra.mxu0 0.0
        %5945 = vmatpush.msra.mxu0 0.0
        %5946 = vmatpush.msra.mxu0 0.0
        %5947 = vmatpush.msra.mxu0 0.0
        %5948 = vmatpush.msra.mxu0 0.0
        %5949 = vmatpush.msra.mxu0 0.0
        %5950 = vmatpush.msra.mxu0 %v5625
        %5951 = vmatpush.msra.mxu0 %v5513
        %5952 = vmatmul.f32.gmra.mxu0 %v1821
        %v5953 = vpop.f32.mrf.mxu0
        %v5954 = vadd.f32 0.0, %v5953
        %5955 = vdwg.mxu0
        %5956 = vmatpush.msra.mxu0 0.0
        %5957 = vmatpush.msra.mxu0 0.0
        %5958 = vmatpush.msra.mxu0 0.0
        %5959 = vmatpush.msra.mxu0 0.0
        %5960 = vmatpush.msra.mxu0 0.0
        %5961 = vmatpush.msra.mxu0 0.0
        %5962 = vmatpush.msra.mxu0 0.0
        %5963 = vmatpush.msra.mxu0 0.0
        %5964 = vmatpush.msra.mxu0 0.0
        %5965 = vmatpush.msra.mxu0 0.0
        %5966 = vmatpush.msra.mxu0 0.0
        %5967 = vmatpush.msra.mxu0 0.0
        %5968 = vmatpush.msra.mxu0 0.0
        %5969 = vmatpush.msra.mxu0 0.0
        %5970 = vmatpush.msra.mxu0 %v5627
        %5971 = vmatpush.msra.mxu0 %v5515
        %5972 = vmatmul.f32.gmra.mxu0 %v1824
        %v5973 = vpop.f32.mrf.mxu0
        %v5974 = vadd.f32 0.0, %v5973
        %5975 = vdwg.mxu0
        %5976 = vmatpush.msra.mxu0 0.0
        %5977 = vmatpush.msra.mxu0 0.0
        %5978 = vmatpush.msra.mxu0 0.0
        %5979 = vmatpush.msra.mxu0 0.0
        %5980 = vmatpush.msra.mxu0 0.0
        %5981 = vmatpush.msra.mxu0 0.0
        %5982 = vmatpush.msra.mxu0 0.0
        %5983 = vmatpush.msra.mxu0 0.0
        %5984 = vmatpush.msra.mxu0 0.0
        %5985 = vmatpush.msra.mxu0 0.0
        %5986 = vmatpush.msra.mxu0 0.0
        %5987 = vmatpush.msra.mxu0 0.0
        %5988 = vmatpush.msra.mxu0 0.0
        %5989 = vmatpush.msra.mxu0 0.0
        %5990 = vmatpush.msra.mxu0 %v5629
        %5991 = vmatpush.msra.mxu0 %v5517
        %5992 = vmatmul.f32.gmra.mxu0 %v1827
        %v5993 = vpop.f32.mrf.mxu0
        %v5994 = vadd.f32 0.0, %v5993
        %5995 = vdwg.mxu0
        %5996 = vmatpush.msra.mxu0 0.0
        %5997 = vmatpush.msra.mxu0 0.0
        %5998 = vmatpush.msra.mxu0 0.0
        %5999 = vmatpush.msra.mxu0 0.0
        %6000 = vmatpush.msra.mxu0 0.0
        %6001 = vmatpush.msra.mxu0 0.0
        %6002 = vmatpush.msra.mxu0 0.0
        %6003 = vmatpush.msra.mxu0 0.0
        %6004 = vmatpush.msra.mxu0 0.0
        %6005 = vmatpush.msra.mxu0 0.0
        %6006 = vmatpush.msra.mxu0 0.0
        %6007 = vmatpush.msra.mxu0 0.0
        %6008 = vmatpush.msra.mxu0 0.0
        %6009 = vmatpush.msra.mxu0 0.0
        %6010 = vmatpush.msra.mxu0 %v5631
        %6011 = vmatpush.msra.mxu0 %v5519
        %6012 = vmatmul.f32.gmra.mxu0 %v1830
        %v6013 = vpop.f32.mrf.mxu0
        %v6014 = vadd.f32 0.0, %v6013
        %6015 = vdwg.mxu0
        %6016 = vmatpush.msra.mxu0 0.0
        %6017 = vmatpush.msra.mxu0 0.0
        %6018 = vmatpush.msra.mxu0 0.0
        %6019 = vmatpush.msra.mxu0 0.0
        %6020 = vmatpush.msra.mxu0 0.0
        %6021 = vmatpush.msra.mxu0 0.0
        %6022 = vmatpush.msra.mxu0 0.0
        %6023 = vmatpush.msra.mxu0 0.0
        %6024 = vmatpush.msra.mxu0 0.0
        %6025 = vmatpush.msra.mxu0 0.0
        %6026 = vmatpush.msra.mxu0 0.0
        %6027 = vmatpush.msra.mxu0 0.0
        %6028 = vmatpush.msra.mxu0 0.0
        %6029 = vmatpush.msra.mxu0 0.0
        %6030 = vmatpush.msra.mxu0 %v5841
        %6031 = vmatpush.msra.mxu0 %v5729
        %6032 = vmatmul.f32.gmra.mxu0 %v1833
        %v6033 = vpop.f32.mrf.mxu0
        %v6034 = vadd.f32 0.0, %v6033
        %6035 = vdwg.mxu0
        %6036 = vmatpush.msra.mxu0 0.0
        %6037 = vmatpush.msra.mxu0 0.0
        %6038 = vmatpush.msra.mxu0 0.0
        %6039 = vmatpush.msra.mxu0 0.0
        %6040 = vmatpush.msra.mxu0 0.0
        %6041 = vmatpush.msra.mxu0 0.0
        %6042 = vmatpush.msra.mxu0 0.0
        %6043 = vmatpush.msra.mxu0 0.0
        %6044 = vmatpush.msra.mxu0 0.0
        %6045 = vmatpush.msra.mxu0 0.0
        %6046 = vmatpush.msra.mxu0 0.0
        %6047 = vmatpush.msra.mxu0 0.0
        %6048 = vmatpush.msra.mxu0 0.0
        %6049 = vmatpush.msra.mxu0 0.0
        %6050 = vmatpush.msra.mxu0 %v5843
        %6051 = vmatpush.msra.mxu0 %v5731
        %6052 = vmatmul.f32.gmra.mxu0 %v1836
        %v6053 = vpop.f32.mrf.mxu0
        %v6054 = vadd.f32 0.0, %v6053
        %6055 = vdwg.mxu0
        %6056 = vmatpush.msra.mxu0 0.0
        %6057 = vmatpush.msra.mxu0 0.0
        %6058 = vmatpush.msra.mxu0 0.0
        %6059 = vmatpush.msra.mxu0 0.0
        %6060 = vmatpush.msra.mxu0 0.0
        %6061 = vmatpush.msra.mxu0 0.0
        %6062 = vmatpush.msra.mxu0 0.0
        %6063 = vmatpush.msra.mxu0 0.0
        %6064 = vmatpush.msra.mxu0 0.0
        %6065 = vmatpush.msra.mxu0 0.0
        %6066 = vmatpush.msra.mxu0 0.0
        %6067 = vmatpush.msra.mxu0 0.0
        %6068 = vmatpush.msra.mxu0 0.0
        %6069 = vmatpush.msra.mxu0 0.0
        %6070 = vmatpush.msra.mxu0 %v5845
        %6071 = vmatpush.msra.mxu0 %v5733
        %6072 = vmatmul.f32.gmra.mxu0 %v1839
        %v6073 = vpop.f32.mrf.mxu0
        %v6074 = vadd.f32 0.0, %v6073
        %6075 = vdwg.mxu0
        %6076 = vmatpush.msra.mxu0 0.0
        %6077 = vmatpush.msra.mxu0 0.0
        %6078 = vmatpush.msra.mxu0 0.0
        %6079 = vmatpush.msra.mxu0 0.0
        %6080 = vmatpush.msra.mxu0 0.0
        %6081 = vmatpush.msra.mxu0 0.0
        %6082 = vmatpush.msra.mxu0 0.0
        %6083 = vmatpush.msra.mxu0 0.0
        %6084 = vmatpush.msra.mxu0 0.0
        %6085 = vmatpush.msra.mxu0 0.0
        %6086 = vmatpush.msra.mxu0 0.0
        %6087 = vmatpush.msra.mxu0 0.0
        %6088 = vmatpush.msra.mxu0 0.0
        %6089 = vmatpush.msra.mxu0 0.0
        %6090 = vmatpush.msra.mxu0 %v5847
        %6091 = vmatpush.msra.mxu0 %v5735
        %6092 = vmatmul.f32.gmra.mxu0 %v1842
        %v6093 = vpop.f32.mrf.mxu0
        %v6094 = vadd.f32 0.0, %v6093
        %6095 = vdwg.mxu0
        %6096 = vmatpush.msra.mxu0 0.0
        %6097 = vmatpush.msra.mxu0 0.0
        %6098 = vmatpush.msra.mxu0 0.0
        %6099 = vmatpush.msra.mxu0 0.0
        %6100 = vmatpush.msra.mxu0 0.0
        %6101 = vmatpush.msra.mxu0 0.0
        %6102 = vmatpush.msra.mxu0 0.0
        %6103 = vmatpush.msra.mxu0 0.0
        %6104 = vmatpush.msra.mxu0 0.0
        %6105 = vmatpush.msra.mxu0 0.0
        %6106 = vmatpush.msra.mxu0 0.0
        %6107 = vmatpush.msra.mxu0 0.0
        %6108 = vmatpush.msra.mxu0 0.0
        %6109 = vmatpush.msra.mxu0 0.0
        %6110 = vmatpush.msra.mxu0 %v5849
        %6111 = vmatpush.msra.mxu0 %v5737
        %6112 = vmatmul.f32.gmra.mxu0 %v1845
        %v6113 = vpop.f32.mrf.mxu0
        %v6114 = vadd.f32 0.0, %v6113
        %6115 = vdwg.mxu0
        %6116 = vmatpush.msra.mxu0 0.0
        %6117 = vmatpush.msra.mxu0 0.0
        %6118 = vmatpush.msra.mxu0 0.0
        %6119 = vmatpush.msra.mxu0 0.0
        %6120 = vmatpush.msra.mxu0 0.0
        %6121 = vmatpush.msra.mxu0 0.0
        %6122 = vmatpush.msra.mxu0 0.0
        %6123 = vmatpush.msra.mxu0 0.0
        %6124 = vmatpush.msra.mxu0 0.0
        %6125 = vmatpush.msra.mxu0 0.0
        %6126 = vmatpush.msra.mxu0 0.0
        %6127 = vmatpush.msra.mxu0 0.0
        %6128 = vmatpush.msra.mxu0 0.0
        %6129 = vmatpush.msra.mxu0 0.0
        %6130 = vmatpush.msra.mxu0 %v5851
        %6131 = vmatpush.msra.mxu0 %v5739
        %6132 = vmatmul.f32.gmra.mxu0 %v1848
        %v6133 = vpop.f32.mrf.mxu0
        %v6134 = vadd.f32 0.0, %v6133
        %6135 = vdwg.mxu0
        %6136 = vmatpush.msra.mxu0 0.0
        %6137 = vmatpush.msra.mxu0 0.0
        %6138 = vmatpush.msra.mxu0 0.0
        %6139 = vmatpush.msra.mxu0 0.0
        %6140 = vmatpush.msra.mxu0 0.0
        %6141 = vmatpush.msra.mxu0 0.0
        %6142 = vmatpush.msra.mxu0 0.0
        %6143 = vmatpush.msra.mxu0 0.0
        %6144 = vmatpush.msra.mxu0 0.0
        %6145 = vmatpush.msra.mxu0 0.0
        %6146 = vmatpush.msra.mxu0 0.0
        %6147 = vmatpush.msra.mxu0 0.0
        %6148 = vmatpush.msra.mxu0 0.0
        %6149 = vmatpush.msra.mxu0 0.0
        %6150 = vmatpush.msra.mxu0 %v5853
        %6151 = vmatpush.msra.mxu0 %v5741
        %6152 = vmatmul.f32.gmra.mxu0 %v1851
        %v6153 = vpop.f32.mrf.mxu0
        %v6154 = vadd.f32 0.0, %v6153
        %6155 = vdwg.mxu0
        %6156 = vmatpush.msra.mxu0 0.0
        %6157 = vmatpush.msra.mxu0 0.0
        %6158 = vmatpush.msra.mxu0 0.0
        %6159 = vmatpush.msra.mxu0 0.0
        %6160 = vmatpush.msra.mxu0 0.0
        %6161 = vmatpush.msra.mxu0 0.0
        %6162 = vmatpush.msra.mxu0 0.0
        %6163 = vmatpush.msra.mxu0 0.0
        %6164 = vmatpush.msra.mxu0 0.0
        %6165 = vmatpush.msra.mxu0 0.0
        %6166 = vmatpush.msra.mxu0 0.0
        %6167 = vmatpush.msra.mxu0 0.0
        %6168 = vmatpush.msra.mxu0 0.0
        %6169 = vmatpush.msra.mxu0 0.0
        %6170 = vmatpush.msra.mxu0 %v5855
        %6171 = vmatpush.msra.mxu0 %v5743
        %6172 = vmatmul.f32.gmra.mxu0 %v1854
        %v6173 = vpop.f32.mrf.mxu0
        %v6174 = vadd.f32 0.0, %v6173
        %6175 = vdwg.mxu0
        %v6176 = vadd.f32 %v4502, %v5874
        %v6177 = vadd.f32 %v4522, %v5894
        %v6178 = vadd.f32 %v4542, %v5914
        %v6179 = vadd.f32 %v4562, %v5934
        %v6180 = vadd.f32 %v4582, %v5954
        %v6181 = vadd.f32 %v4602, %v5974
        %v6182 = vadd.f32 %v4622, %v5994
        %v6183 = vadd.f32 %v4642, %v6014
        %v6184 = vadd.f32 %v4662, %v6034
        %v6185 = vadd.f32 %v4682, %v6054
        %v6186 = vadd.f32 %v4702, %v6074
        %v6187 = vadd.f32 %v4722, %v6094
        %v6188 = vadd.f32 %v4742, %v6114
        %v6189 = vadd.f32 %v4762, %v6134
        %v6190 = vadd.f32 %v4782, %v6154
        %v6191 = vadd.f32 %v4802, %v6174
        %v6192 = vadd.f32 %v1921, %v6176
        %v6193 = vadd.f32 %v1922, %v6177
        %v6194 = vadd.f32 %v1923, %v6178
        %v6195 = vadd.f32 %v1924, %v6179
        %v6196 = vadd.f32 %v1925, %v6180
        %v6197 = vadd.f32 %v1926, %v6181
        %v6198 = vadd.f32 %v1927, %v6182
        %v6199 = vadd.f32 %v1928, %v6183
        %v6200 = vadd.f32 %v1929, %v6184
        %v6201 = vadd.f32 %v1930, %v6185
        %v6202 = vadd.f32 %v1931, %v6186
        %v6203 = vadd.f32 %v1932, %v6187
        %v6204 = vadd.f32 %v1933, %v6188
        %v6205 = vadd.f32 %v1934, %v6189
        %v6206 = vadd.f32 %v1935, %v6190
        %v6207 = vadd.f32 %v1936, %v6191
        %v6208 = vmax.f32 %v6192, 0.0
        %v6209 = vmax.f32 %v6193, 0.0
        %v6210 = vmax.f32 %v6194, 0.0
        %v6211 = vmax.f32 %v6195, 0.0
        %v6212 = vmax.f32 %v6196, 0.0
        %v6213 = vmax.f32 %v6197, 0.0
        %v6214 = vmax.f32 %v6198, 0.0
        %v6215 = vmax.f32 %v6199, 0.0
        %v6216 = vmax.f32 %v6200, 0.0
        %v6217 = vmax.f32 %v6201, 0.0
        %v6218 = vmax.f32 %v6202, 0.0
        %v6219 = vmax.f32 %v6203, 0.0
        %v6220 = vmax.f32 %v6204, 0.0
        %v6221 = vmax.f32 %v6205, 0.0
        %v6222 = vmax.f32 %v6206, 0.0
        %v6223 = vmax.f32 %v6207, 0.0
        %v6224 = vrot.slane %v6210, 4
        %v6225 = vsel %vm645, %v6224, %v6208
        %v6226 = vrot.slane %v6208, 4
        %v6227 = vsel %vm645, %v6210, %v6226
        %v6229 = vunpack.c.l.s4 1983009808
        %v6230 = vunpack.c.0.s8 %v6229
        %v6231 = vperm.slane %v6225, %v6230
        %v6233 = vunpack.c.l.s4 1983009808
        %v6234 = vunpack.c.0.s8 %v6233
        %v6235 = vperm.slane %v6227, %v6234
        %v6236 = vrot.slane %v6211, 4
        %v6237 = vsel %vm645, %v6236, %v6209
        %v6238 = vrot.slane %v6209, 4
        %v6239 = vsel %vm645, %v6211, %v6238
        %v6241 = vunpack.c.l.s4 1983009808
        %v6242 = vunpack.c.0.s8 %v6241
        %v6243 = vperm.slane %v6237, %v6242
        %v6245 = vunpack.c.l.s4 1983009808
        %v6246 = vunpack.c.0.s8 %v6245
        %v6247 = vperm.slane %v6239, %v6246
        %v6248 = vrot.slane %v6214, 4
        %v6249 = vsel %vm645, %v6248, %v6212
        %v6250 = vrot.slane %v6212, 4
        %v6251 = vsel %vm645, %v6214, %v6250
        %v6253 = vunpack.c.l.s4 1983009808
        %v6254 = vunpack.c.0.s8 %v6253
        %v6255 = vperm.slane %v6249, %v6254
        %v6257 = vunpack.c.l.s4 1983009808
        %v6258 = vunpack.c.0.s8 %v6257
        %v6259 = vperm.slane %v6251, %v6258
        %v6260 = vrot.slane %v6215, 4
        %v6261 = vsel %vm645, %v6260, %v6213
        %v6262 = vrot.slane %v6213, 4
        %v6263 = vsel %vm645, %v6215, %v6262
        %v6265 = vunpack.c.l.s4 1983009808
        %v6266 = vunpack.c.0.s8 %v6265
        %v6267 = vperm.slane %v6261, %v6266
        %v6269 = vunpack.c.l.s4 1983009808
        %v6270 = vunpack.c.0.s8 %v6269
        %v6271 = vperm.slane %v6263, %v6270
        %v6272 = vrot.slane %v6243, 4
        %v6273 = vsel %vm645, %v6272, %v6231
        %v6274 = vrot.slane %v6231, 4
        %v6275 = vsel %vm645, %v6243, %v6274
        %v6277 = vunpack.c.l.s4 1934713408
        %v6278 = vunpack.c.0.s8 %v6277
        %v6279 = vperm.slane %v6273, %v6278
        %v6281 = vunpack.c.l.s4 1934713408
        %v6282 = vunpack.c.0.s8 %v6281
        %v6283 = vperm.slane %v6275, %v6282
        %v6284 = vrot.slane %v6247, 4
        %v6285 = vsel %vm645, %v6284, %v6235
        %v6286 = vrot.slane %v6235, 4
        %v6287 = vsel %vm645, %v6247, %v6286
        %v6289 = vunpack.c.l.s4 1934713408
        %v6290 = vunpack.c.0.s8 %v6289
        %v6291 = vperm.slane %v6285, %v6290
        %v6293 = vunpack.c.l.s4 1934713408
        %v6294 = vunpack.c.0.s8 %v6293
        %v6295 = vperm.slane %v6287, %v6294
        %v6296 = vrot.slane %v6267, 4
        %v6297 = vsel %vm645, %v6296, %v6255
        %v6298 = vrot.slane %v6255, 4
        %v6299 = vsel %vm645, %v6267, %v6298
        %v6301 = vunpack.c.l.s4 1934713408
        %v6302 = vunpack.c.0.s8 %v6301
        %v6303 = vperm.slane %v6297, %v6302
        %v6305 = vunpack.c.l.s4 1934713408
        %v6306 = vunpack.c.0.s8 %v6305
        %v6307 = vperm.slane %v6299, %v6306
        %v6308 = vrot.slane %v6271, 4
        %v6309 = vsel %vm645, %v6308, %v6259
        %v6310 = vrot.slane %v6259, 4
        %v6311 = vsel %vm645, %v6271, %v6310
        %v6313 = vunpack.c.l.s4 1934713408
        %v6314 = vunpack.c.0.s8 %v6313
        %v6315 = vperm.slane %v6309, %v6314
        %v6317 = vunpack.c.l.s4 1934713408
        %v6318 = vunpack.c.0.s8 %v6317
        %v6319 = vperm.slane %v6311, %v6318
        %v6320 = vrot.slane %v6303, 4
        %v6321 = vsel %vm645, %v6320, %v6279
        %v6322 = vrot.slane %v6279, 4
        %v6323 = vsel %vm645, %v6303, %v6322
        %v6324 = vrot.slane %v6307, 4
        %v6325 = vsel %vm645, %v6324, %v6283
        %v6326 = vrot.slane %v6283, 4
        %v6327 = vsel %vm645, %v6307, %v6326
        %v6328 = vrot.slane %v6315, 4
        %v6329 = vsel %vm645, %v6328, %v6291
        %v6330 = vrot.slane %v6291, 4
        %v6331 = vsel %vm645, %v6315, %v6330
        %v6332 = vrot.slane %v6319, 4
        %v6333 = vsel %vm645, %v6332, %v6295
        %v6334 = vrot.slane %v6295, 4
        %v6335 = vsel %vm645, %v6319, %v6334
        %v6336 = vrot.slane %v6218, 4
        %v6337 = vsel %vm645, %v6336, %v6216
        %v6338 = vrot.slane %v6216, 4
        %v6339 = vsel %vm645, %v6218, %v6338
        %v6341 = vunpack.c.l.s4 1983009808
        %v6342 = vunpack.c.0.s8 %v6341
        %v6343 = vperm.slane %v6337, %v6342
        %v6345 = vunpack.c.l.s4 1983009808
        %v6346 = vunpack.c.0.s8 %v6345
        %v6347 = vperm.slane %v6339, %v6346
        %v6348 = vrot.slane %v6219, 4
        %v6349 = vsel %vm645, %v6348, %v6217
        %v6350 = vrot.slane %v6217, 4
        %v6351 = vsel %vm645, %v6219, %v6350
        %v6353 = vunpack.c.l.s4 1983009808
        %v6354 = vunpack.c.0.s8 %v6353
        %v6355 = vperm.slane %v6349, %v6354
        %v6357 = vunpack.c.l.s4 1983009808
        %v6358 = vunpack.c.0.s8 %v6357
        %v6359 = vperm.slane %v6351, %v6358
        %v6360 = vrot.slane %v6222, 4
        %v6361 = vsel %vm645, %v6360, %v6220
        %v6362 = vrot.slane %v6220, 4
        %v6363 = vsel %vm645, %v6222, %v6362
        %v6365 = vunpack.c.l.s4 1983009808
        %v6366 = vunpack.c.0.s8 %v6365
        %v6367 = vperm.slane %v6361, %v6366
        %v6369 = vunpack.c.l.s4 1983009808
        %v6370 = vunpack.c.0.s8 %v6369
        %v6371 = vperm.slane %v6363, %v6370
        %v6372 = vrot.slane %v6223, 4
        %v6373 = vsel %vm645, %v6372, %v6221
        %v6374 = vrot.slane %v6221, 4
        %v6375 = vsel %vm645, %v6223, %v6374
        %v6377 = vunpack.c.l.s4 1983009808
        %v6378 = vunpack.c.0.s8 %v6377
        %v6379 = vperm.slane %v6373, %v6378
        %v6381 = vunpack.c.l.s4 1983009808
        %v6382 = vunpack.c.0.s8 %v6381
        %v6383 = vperm.slane %v6375, %v6382
        %v6384 = vrot.slane %v6355, 4
        %v6385 = vsel %vm645, %v6384, %v6343
        %v6386 = vrot.slane %v6343, 4
        %v6387 = vsel %vm645, %v6355, %v6386
        %v6389 = vunpack.c.l.s4 1934713408
        %v6390 = vunpack.c.0.s8 %v6389
        %v6391 = vperm.slane %v6385, %v6390
        %v6393 = vunpack.c.l.s4 1934713408
        %v6394 = vunpack.c.0.s8 %v6393
        %v6395 = vperm.slane %v6387, %v6394
        %v6396 = vrot.slane %v6359, 4
        %v6397 = vsel %vm645, %v6396, %v6347
        %v6398 = vrot.slane %v6347, 4
        %v6399 = vsel %vm645, %v6359, %v6398
        %v6401 = vunpack.c.l.s4 1934713408
        %v6402 = vunpack.c.0.s8 %v6401
        %v6403 = vperm.slane %v6397, %v6402
        %v6405 = vunpack.c.l.s4 1934713408
        %v6406 = vunpack.c.0.s8 %v6405
        %v6407 = vperm.slane %v6399, %v6406
        %v6408 = vrot.slane %v6379, 4
        %v6409 = vsel %vm645, %v6408, %v6367
        %v6410 = vrot.slane %v6367, 4
        %v6411 = vsel %vm645, %v6379, %v6410
        %v6413 = vunpack.c.l.s4 1934713408
        %v6414 = vunpack.c.0.s8 %v6413
        %v6415 = vperm.slane %v6409, %v6414
        %v6417 = vunpack.c.l.s4 1934713408
        %v6418 = vunpack.c.0.s8 %v6417
        %v6419 = vperm.slane %v6411, %v6418
        %v6420 = vrot.slane %v6383, 4
        %v6421 = vsel %vm645, %v6420, %v6371
        %v6422 = vrot.slane %v6371, 4
        %v6423 = vsel %vm645, %v6383, %v6422
        %v6425 = vunpack.c.l.s4 1934713408
        %v6426 = vunpack.c.0.s8 %v6425
        %v6427 = vperm.slane %v6421, %v6426
        %v6429 = vunpack.c.l.s4 1934713408
        %v6430 = vunpack.c.0.s8 %v6429
        %v6431 = vperm.slane %v6423, %v6430
        %v6432 = vrot.slane %v6415, 4
        %v6433 = vsel %vm645, %v6432, %v6391
        %v6434 = vrot.slane %v6391, 4
        %v6435 = vsel %vm645, %v6415, %v6434
        %v6436 = vrot.slane %v6419, 4
        %v6437 = vsel %vm645, %v6436, %v6395
        %v6438 = vrot.slane %v6395, 4
        %v6439 = vsel %vm645, %v6419, %v6438
        %v6440 = vrot.slane %v6427, 4
        %v6441 = vsel %vm645, %v6440, %v6403
        %v6442 = vrot.slane %v6403, 4
        %v6443 = vsel %vm645, %v6427, %v6442
        %v6444 = vrot.slane %v6431, 4
        %v6445 = vsel %vm645, %v6444, %v6407
        %v6446 = vrot.slane %v6407, 4
        %v6447 = vsel %vm645, %v6431, %v6446
        %6450 = vrot.lane.b32.xlu0 %v6323, 16
        %v6451 = vpop.permute.xlu0 %6450
        %6452 = vrot.lane.b32.xlu0 %v6435, 16
        %v6453 = vpop.permute.xlu0 %6452
        %6458 = vrot.lane.b32.xlu0 %v6325, 32
        %v6459 = vpop.permute.xlu0 %6458
        %6460 = vrot.lane.b32.xlu0 %v6437, 32
        %v6461 = vpop.permute.xlu0 %6460
        %6466 = vrot.lane.b32.xlu0 %v6327, 48
        %v6467 = vpop.permute.xlu0 %6466
        %6468 = vrot.lane.b32.xlu0 %v6439, 48
        %v6469 = vpop.permute.xlu0 %6468
        %6474 = vrot.lane.b32.xlu0 %v6329, 64
        %v6475 = vpop.permute.xlu0 %6474
        %6476 = vrot.lane.b32.xlu0 %v6441, 64
        %v6477 = vpop.permute.xlu0 %6476
        %6482 = vrot.lane.b32.xlu0 %v6331, 80
        %v6483 = vpop.permute.xlu0 %6482
        %6484 = vrot.lane.b32.xlu0 %v6443, 80
        %v6485 = vpop.permute.xlu0 %6484
        %6490 = vrot.lane.b32.xlu0 %v6333, 96
        %v6491 = vpop.permute.xlu0 %6490
        %6492 = vrot.lane.b32.xlu0 %v6445, 96
        %v6493 = vpop.permute.xlu0 %6492
        %6498 = vrot.lane.b32.xlu0 %v6335, 112
        %v6499 = vpop.permute.xlu0 %6498
        %6500 = vrot.lane.b32.xlu0 %v6447, 112
        %v6501 = vpop.permute.xlu0 %6500
        %v6504 = vsel %vm1543, %v6321, %v6451
        %v6505 = vsel %vm1543, %v6433, %v6453
        %v6506 = vsel %vm2494, %v6504, %v6459
        %v6507 = vsel %vm2494, %v6505, %v6461
        %v6508 = vsel %vm2496, %v6506, %v6467
        %v6509 = vsel %vm2496, %v6507, %v6469
        %v6510 = vsel %vm2498, %v6508, %v6475
        %v6511 = vsel %vm2498, %v6509, %v6477
        %v6512 = vsel %vm2500, %v6510, %v6483
        %v6513 = vsel %vm2500, %v6511, %v6485
        %v6514 = vsel %vm2502, %v6512, %v6491
        %v6515 = vsel %vm2502, %v6513, %v6493
        %v6516 = vsel %vm2504, %v6514, %v6499
        %v6517 = vsel %vm2504, %v6515, %v6501
        %6518 = vst [vmem:[%s332] sm:$0xff] %v6516
        %6519 = vst [vmem:[%s332 + $0x8] sm:$0xff] %v6517
        %s6520 = sand.u32 %s227, 1
        %s6521 = sand.u32 %s227, 1
        %s6522 = smul.addr %s6521, 16
        %s6523 = scalar_lea.vmem [#allocation2], %s6522
        // Predicated region
        $region57: #{_lambda_.1} parent=55 // pred_check
          %p6524 = pneg %p237
        $region58: #{_lambda_.1} parent=55 // pred_check_branch
          %6526 = sbr.rel (%p6524) target = $region60
        $region59: #{_lambda_.1} parent=55 // pred_region
          %s6527 = smul.addr %s20, 8
          %s6528 = scalar_lea.vmem %s9, %s6527
          // Predicated region
          $region61: #{_lambda_.1} parent=59 // pred_check
            _
          $region62: #{_lambda_.1} parent=59 // pred_check_branch
            %6530 = sbr.rel (0) target = $region64
          $region63: #{_lambda_.1} parent=59 // pred_region
            // Predicated region
            $region65: #{_lambda_.1} parent=63 // pred_check
              _
            $region66: #{_lambda_.1} parent=63 // pred_check_branch
              %6532 = sbr.rel (0) target = $region68
            $region67: #{_lambda_.1} parent=63 // pred_region
              // Predicated region
              $region80: #{_lambda_.1} parent=67 // pred_check
                _
              $region81: #{_lambda_.1} parent=67 // pred_check_branch
                %6550 = sbr.rel (0) target = $region83
              $region82: #{_lambda_.1} parent=67 // pred_region
                loop: start=0, step=1, limit=1
                $region84: #{_lambda_.1} parent=82 // loop_pre_header
                  _
                $region85: #{_lambda_.1} parent=82 // loop_header
                  %s6552 = sphi 0, %s6556
                  %p6553 = scmp.ge.s32.totalorder %s6552, 1
                  %s6557 = sphi %s6523, %s6523
                  %s6558 = sphi %s6528, %s6528
                $region86: #{_lambda_.1} parent=82 // loop_header_branch
                  %6555 = sbr.rel (%p6553) target = $region90
                $region87: #{_lambda_.1} parent=82 // loop_body
                  %v6559 = vld [vmem:[%s6557] sm:$0xff]
                  %6560 = vst [vmem:[%s6558] sm:$0xff] %v6559
                  %v6561 = vld [vmem:[%s6557 + $0x8] sm:$0xff]
                  %6562 = vst [vmem:[%s6558 + $0x10] sm:$0xff] %v6561
                $region88: #{_lambda_.1} parent=82 // loop_footer
                  %s6556 = sadd.s32 1, %s6552
                $region89: #{_lambda_.1} parent=82 // loop_footer_branch
                  %6551 = sbr.rel target = $region85
                $region90: #{_lambda_.1} parent=82 // loop_exit
                  _
              $region83: #{_lambda_.1} parent=67 // pred_fallthru
                _
              // Predicated region
              $region91: #{_lambda_.1} parent=67 // pred_check
                _
              $region92: #{_lambda_.1} parent=67 // pred_check_branch
                %6564 = sbr.rel target = $region94
              $region93: #{_lambda_.1} parent=67 // pred_region
                _
              $region94: #{_lambda_.1} parent=67 // pred_fallthru
                _
            $region68: #{_lambda_.1} parent=63 // pred_fallthru
              _
            // Predicated region
            $region69: #{_lambda_.1} parent=63 // pred_check
              _
            $region70: #{_lambda_.1} parent=63 // pred_check_branch
              %6534 = sbr.rel target = $region72
            $region71: #{_lambda_.1} parent=63 // pred_region
              %s6536 = ssub.s32 256, 1
              loop: start=0, step=1, limit=1
              $region73: #{_lambda_.1} parent=71 // loop_pre_header
                _
              $region74: #{_lambda_.1} parent=71 // loop_header
                %s6538 = sphi 0, %s6542
                %p6539 = scmp.ge.s32.totalorder %s6538, 1
                %s6543 = sphi %s6523, %s6523
                %s6544 = sphi %s6528, %s6528
              $region75: #{_lambda_.1} parent=71 // loop_header_branch
                %6541 = sbr.rel (%p6539) target = $region79
              $region76: #{_lambda_.1} parent=71 // loop_body
                %v6545 = vld [vmem:[%s6543] sm:%s6536]
                %6546 = vst [vmem:[%s6544] sm:%s6536] %v6545
                %v6547 = vld [vmem:[%s6543 + $0x8] sm:%s6536]
                %6548 = vst [vmem:[%s6544 + $0x10] sm:%s6536] %v6547
              $region77: #{_lambda_.1} parent=71 // loop_footer
                %s6542 = sadd.s32 1, %s6538
              $region78: #{_lambda_.1} parent=71 // loop_footer_branch
                %6537 = sbr.rel target = $region74
              $region79: #{_lambda_.1} parent=71 // loop_exit
                _
            $region72: #{_lambda_.1} parent=63 // pred_fallthru
              _
          $region64: #{_lambda_.1} parent=59 // pred_fallthru
            _
          %6565 = vnop
        $region60: #{_lambda_.1} parent=55 // pred_fallthru
          _
      $region56: #{_lambda_.1} parent=5 // pred_fallthru
        _
      %p6566 = scmp.le.s32.totalorder 2, %s15
      // Predicated region
      $region95: #{_lambda_.1} parent=5 // pred_check
        %p6567 = pneg %p6566
      $region96: #{_lambda_.1} parent=5 // pred_check_branch
        %6569 = sbr.rel (%p6567) target = $region98
      $region97: #{_lambda_.1} parent=5 // pred_region
        %s6570 = ssub.s32 %s15, 2
        // Predicated region
        $region99: #{_lambda_.1} parent=97 // pred_check
          %p6571 = pneg %p243
        $region100: #{_lambda_.1} parent=97 // pred_check_branch
          %6573 = sbr.rel (%p6571) target = $region102
        $region101: #{_lambda_.1} parent=97 // pred_region
          %s6574 = sand.u32 %s228, 1
          %s6575 = sand.u32 %s228, 1
          %s6576 = smul.addr %s6575, 16
          %s6577 = scalar_lea.vmem [#allocation2], %s6576
        $region102: #{_lambda_.1} parent=97 // pred_fallthru
          _
      $region98: #{_lambda_.1} parent=5 // pred_fallthru
        _
    $region6: #{_lambda_.1} parent=1 // loop_footer
      %s19 = sadd.s32 1, %s15
    $region7: #{_lambda_.1} parent=1 // loop_footer_branch
      %14 = sbr.rel target = $region3
    $region8: #{_lambda_.1} parent=1 // loop_exit
      _

</llo_original>
